<compile_context>
chip_gen: v6e
topology: v6e:2x2x1
jax: 0.10.0
libtpu: 0.0.40
codegen_flags: <defaults>
</compile_context>

<pallas_src>
import jax
import jax.numpy as jnp
from jax.experimental import pallas as pl
from jax.experimental.pallas import tpu as pltpu


# --------------------------------------------------------------------------
# Fused residual-block kernel factory
# --------------------------------------------------------------------------
def _make_block_kernel(*, k, H, W, c_in, c_out, n_layers, has_proj, do_pool,
                       fuse_head, alpha=0.01):
    p = (k - 1) // 2
    hw = H * W

    def kernel(*refs):
        it = iter(refs)
        x_ref = next(it)                                   # (1, H, W, c_in) f32
        w0 = next(it)                                      # (k*k*c_in, c_out) bf16
        s0 = next(it)                                      # (1, c_out) f32
        t0 = next(it)                                      # (1, c_out) f32
        if n_layers > 1:
            wsh = next(it); ssh = next(it); tsh = next(it)
        if has_proj:
            wsk = next(it); bsk = next(it)
        if do_pool:
            wup = next(it); bup = next(it)
        if fuse_head:
            fcw = next(it); fcb = next(it)
        o_ref = next(it)
        pad_ref = next(it)                                 # (H+2p, W+2p, max_c) f32

        def lrelu(v):
            return jnp.where(v >= 0, v, alpha * v)

        def conv(c, w_mat):
            # Fused-tap im2col from the zero-padded VMEM scratch -> ONE MXU
            # matmul with K = k*k*c instead of k*k tiny dots.
            cols = []
            for ky in range(k):
                for kx in range(k):
                    cols.append(pad_ref[ky:ky + H, kx:kx + W, 0:c].reshape(hw, c))
            patches = jnp.concatenate(cols, axis=1).astype(jnp.bfloat16)
            return jnp.dot(patches, w_mat, preferred_element_type=jnp.float32)

        # Zero the halo ring once per image (interior is overwritten below).
        pad_ref[...] = jnp.zeros_like(pad_ref)

        # ---- layer 0: ConvTranspose2d(k, stride=1, same-pad) + folded BN + LeakyReLU
        pad_ref[p:p + H, p:p + W, 0:c_in] = x_ref[0]
        y = lrelu(conv(c_in, w0[...]) * s0[...] + t0[...])           # (hw, c_out) f32

        # ---- shared layers 1..n-1 (same nn.Module => shared weights), weights
        # and activation stay resident in VMEM across iterations.
        if n_layers > 1:
            w_sh = wsh[...]
            for _ in range(n_layers - 1):
                pad_ref[p:p + H, p:p + W, 0:c_out] = y.reshape(H, W, c_out)
                y = lrelu(conv(c_out, w_sh) * ssh[...] + tsh[...])

        # ---- skip path (1x1 conv or identity) + residual add, fused epilogue
        x_flat = x_ref[0].reshape(hw, c_in)
        if has_proj:
            skip = jnp.dot(x_flat.astype(jnp.bfloat16), wsk[...],
                           preferred_element_type=jnp.float32) + bsk[...]
        else:
            skip = x_flat
        r = skip + y                                                  # (hw, c_out)

        # ---- optional stride-2 ConvTranspose "pooling" (4 taps fused into one
        # matmul, lane-dense (hw, 4*c_out) store) and / or fused GAP+Linear head
        if do_pool:
            y4 = jnp.dot(r.astype(jnp.bfloat16), wup[...],
                         preferred_element_type=jnp.float32) + bup[...]   # (hw, 4C)
            if fuse_head:
                s = jnp.sum(y4, axis=0, keepdims=True)                    # (1, 4C)
                v = (s[:, 0:c_out] + s[:, c_out:2 * c_out]
                     + s[:, 2 * c_out:3 * c_out]
                     + s[:, 3 * c_out:4 * c_out]) / (4.0 * hw)
                o_ref[...] = (jnp.dot(v, fcw[...],
                                      preferred_element_type=jnp.float32)
                              + fcb[...]).reshape(1, 1, 2)
            else:
                o_ref[...] = y4.reshape(1, H, W, 4 * c_out)
        elif fuse_head:
            v = jnp.mean(r, axis=0, keepdims=True)                        # (1, C)
            o_ref[...] = (jnp.dot(v, fcw[...],
                                  preferred_element_type=jnp.float32)
                          + fcb[...]).reshape(1, 1, 2)
        else:
            o_ref[...] = r.reshape(1, H, W, c_out)

    return kernel


def _bcast_spec(arr):
    nd = arr.ndim
    return pl.BlockSpec(arr.shape, lambda i, nd=nd: (0,) * nd)


# --------------------------------------------------------------------------
# Per-block pallas_call wrapper
# --------------------------------------------------------------------------
def residual_block_forward(x, bp, fc_w=None, fc_b=None):
    n, h, w, c_in = x.shape
    k, c_out, n_layers = bp["k"], bp["c_out"], bp["n_layers"]
    do_pool = bp["pool"] is not None
    has_proj = bp["skip"] is not None
    fuse_head = fc_w is not None
    p = (k - 1) // 2
    hp, wp = h + 2 * p, w + 2 * p

    args = [x, bp["layer0"]["w"], bp["layer0"]["scale"], bp["layer0"]["shift"]]
    in_specs = [pl.BlockSpec((1, h, w, c_in), lambda i: (i, 0, 0, 0)),
                _bcast_spec(bp["layer0"]["w"]),
                _bcast_spec(bp["layer0"]["scale"]),
                _bcast_spec(bp["layer0"]["shift"])]
    if n_layers > 1:
        sh = bp["shared"]
        args += [sh["w"], sh["scale"], sh["shift"]]
        in_specs += [_bcast_spec(sh["w"]), _bcast_spec(sh["scale"]),
                     _bcast_spec(sh["shift"])]
    if has_proj:
        args += [bp["skip"]["w"], bp["skip"]["b"]]
        in_specs += [_bcast_spec(bp["skip"]["w"]), _bcast_spec(bp["skip"]["b"])]
    if do_pool:
        args += [bp["pool"]["w"], bp["pool"]["b"]]
        in_specs += [_bcast_spec(bp["pool"]["w"]), _bcast_spec(bp["pool"]["b"])]
    if fuse_head:
        args += [fc_w, fc_b]
        in_specs += [_bcast_spec(fc_w), _bcast_spec(fc_b)]

    if fuse_head:
        out_shape = jax.ShapeDtypeStruct((n, 1, 2), jnp.float32)
        out_spec = pl.BlockSpec((1, 1, 2), lambda i: (i, 0, 0))
    elif do_pool:
        out_shape = jax.ShapeDtypeStruct((n, h, w, 4 * c_out), jnp.float32)
        out_spec = pl.BlockSpec((1, h, w, 4 * c_out), lambda i: (i, 0, 0, 0))
    else:
        out_shape = jax.ShapeDtypeStruct((n, h, w, c_out), jnp.float32)
        out_spec = pl.BlockSpec((1, h, w, c_out), lambda i: (i, 0, 0, 0))

    kernel = _make_block_kernel(k=k, H=h, W=w, c_in=c_in, c_out=c_out,
                                n_layers=n_layers, has_proj=has_proj,
                                do_pool=do_pool, fuse_head=fuse_head)

    out = pl.pallas_call(
        kernel,
        out_shape=out_shape,
        grid_spec=pltpu.PrefetchScalarGridSpec(
            num_scalar_prefetch=0,
            grid=(n,),
            in_specs=in_specs,
            out_specs=out_spec,
            scratch_shapes=[pltpu.VMEM((hp, wp, max(c_in, c_out)), jnp.float32)],
        ),
        compiler_params=pltpu.CompilerParams(
            dimension_semantics=("parallel",),
            vmem_limit_bytes=32 * 1024 * 1024,
        ),
    )(*args)

    if fuse_head:
        return out                                            # (n, 1, 2) logits
    if do_pool:
        # TODO(synk): sub-pixel interleave kept as a tiny XLA transpose; could be
        # folded into the kernel with strided stores to save one small HBM pass.
        out = out.reshape(n, h, w, 2, 2, c_out)
        out = jnp.transpose(out, (0, 1, 3, 2, 4, 5)).reshape(n, 2 * h, 2 * w, c_out)
    return out


# --------------------------------------------------------------------------
# Parameter construction (deterministic, synthetic)
# --------------------------------------------------------------------------
def _convT_same_to_matrix(w_pt):
    # PyTorch ConvTranspose2d weight (c_in, c_out, k, k), stride=1, pad=(k-1)//2
    # == "same" cross-correlation with the spatially flipped kernel.  Taps are
    # fused along the contraction axis: (k*k*c_in, c_out), bf16 for the MXU.
    k = w_pt.shape[-1]
    w = w_pt[:, :, ::-1, ::-1]                 # flip spatial
    w = jnp.transpose(w, (2, 3, 0, 1))         # (k, k, c_in, c_out)
    c_i, c_o = w.shape[2], w.shape[3]
    return w.reshape(k * k * c_i, c_o).astype(jnp.bfloat16)


def _fold_bn(gamma, beta, mean, var, eps=1e-5):
    scale = gamma / jnp.sqrt(var + eps)
    shift = beta - mean * scale
    return scale[None, :], shift[None, :]


def _make_bn(key, c):
    k1, k2, k3, k4 = jax.random.split(key, 4)
    gamma = 1.0 + 0.1 * jax.random.normal(k1, (c,), jnp.float32)
    beta = 0.05 * jax.random.normal(k2, (c,), jnp.float32)
    mean = 0.02 * jax.random.normal(k3, (c,), jnp.float32)
    var = 1.0 + 0.1 * jnp.abs(jax.random.normal(k4, (c,), jnp.float32))
    return _fold_bn(gamma, beta, mean, var)


def _make_conv_layer(key, c_in, c_out, ksize):
    kw, kbn = jax.random.split(key)
    w_pt = 0.1 * jax.random.normal(kw, (c_in, c_out, ksize, ksize), jnp.float32)
    scale, shift = _make_bn(kbn, c_out)
    return {"w": _convT_same_to_matrix(w_pt), "scale": scale, "shift": shift}


def make_encoder_params(key, num_blocks, block_sizes, hidden_sizes,
                        kernel_sizes, use_scales):
    blocks = []
    for b in range(num_blocks):
        c_in, c_out, ksize = hidden_sizes[b], hidden_sizes[b + 1], kernel_sizes[b]
        key, k0, k1, k2, k3 = jax.random.split(key, 5)
        bp = {
            "k": ksize, "c_in": c_in, "c_out": c_out, "n_layers": block_sizes[b],
            "layer0": _make_conv_layer(k0, c_in, c_out, ksize),
            # NOTE: layers 1..n-1 of blocks_go_up are the SAME module in the
            # PyTorch code, i.e. shared weights.
            "shared": _make_conv_layer(k1, c_out, c_out, ksize)
                      if block_sizes[b] > 1 else None,
            "skip": None,
            "pool": None,
        }
        if c_in != c_out:
            kw, kb = jax.random.split(k2)
            w1 = 0.1 * jax.random.normal(kw, (c_out, c_in), jnp.float32)  # torch layout
            bp["skip"] = {
                "w": jnp.transpose(w1, (1, 0)).astype(jnp.bfloat16),      # (c_in, c_out)
                "b": 0.05 * jax.random.normal(kb, (1, c_out), jnp.float32),
            }
        if use_scales[b]:
            kw, kb = jax.random.split(k3)
            wp = 0.1 * jax.random.normal(kw, (c_out, c_out, 2, 2), jnp.float32)
            bias = 0.05 * jax.random.normal(kb, (c_out,), jnp.float32)
            bp["pool"] = {
                # (c, 4*c_out), columns ordered [(dy*2+dx), c_out] -> one fused matmul
                "w": jnp.transpose(wp, (0, 2, 3, 1)).reshape(c_out, 4 * c_out)
                        .astype(jnp.bfloat16),
                "b": jnp.tile(bias, 4)[None, :],                          # (1, 4*c_out)
            }
        blocks.append(bp)

    key, kw, kb = jax.random.split(key, 3)
    c_last = hidden_sizes[-1]
    fc_w_pt = 0.1 * jax.random.normal(kw, (2, c_last), jnp.float32)       # torch (2, C)
    fc_b = 0.05 * jax.random.normal(kb, (1, 2), jnp.float32)
    return {"blocks": blocks, "fc_w": jnp.transpose(fc_w_pt, (1, 0)), "fc_b": fc_b}


# --------------------------------------------------------------------------
# Encoder forward
# --------------------------------------------------------------------------
def encoder_forward(x_nchw, params):
    x = jnp.transpose(x_nchw, (0, 2, 3, 1)).astype(jnp.float32)  # NCHW -> NHWC
    blocks = params["blocks"]
    for bi, bp in enumerate(blocks):
        last = bi == len(blocks) - 1
        x = residual_block_forward(
            x, bp,
            fc_w=params["fc_w"] if last else None,
            fc_b=params["fc_b"] if last else None,
        )
    return x.reshape(x.shape[0], 2)     # fused GAP+Linear head: (N,1,2) -> (N,2)


# --------------------------------------------------------------------------
if __name__ == "__main__":
    # Encoder config (small, but exercises scaling / skip-projection / sharing).
    NUM_BLOCKS = 2
    BLOCK_SIZES = [2, 2]
    HIDDEN_SIZES = [4, 8, 8]
    KERNEL_SIZES = [3, 3]
    USE_SCALES = [True, False]

    key = jax.random.PRNGKey(0)
    key, kx, kp = jax.random.split(key, 3)
    x = jax.random.normal(kx, (2, 4, 16, 16), jnp.float32)  # NCHW input

    params = make_encoder_params(
        kp, NUM_BLOCKS, BLOCK_SIZES, HIDDEN_SIZES, KERNEL_SIZES, USE_SCALES
    )

    out = encoder_forward(x, params)
    out = jax.block_until_ready(out)

    assert out.shape == (2, 2), out.shape
    assert bool(jnp.all(jnp.isfinite(out)))
    print("KERNEL_OK")
</pallas_src>

<mosaic_0001>
module attributes {stable_mosaic.version = 11 : i64} {
  func.func @kernel(%arg0: i32, %arg1: memref<1x16x16x4xf32, #tpu.memory_space<vmem>>, %arg2: memref<36x8xbf16, #tpu.memory_space<vmem>>, %arg3: memref<1x8xf32, #tpu.memory_space<vmem>>, %arg4: memref<1x8xf32, #tpu.memory_space<vmem>>, %arg5: memref<72x8xbf16, #tpu.memory_space<vmem>>, %arg6: memref<1x8xf32, #tpu.memory_space<vmem>>, %arg7: memref<1x8xf32, #tpu.memory_space<vmem>>, %arg8: memref<4x8xbf16, #tpu.memory_space<vmem>>, %arg9: memref<1x8xf32, #tpu.memory_space<vmem>>, %arg10: memref<8x32xbf16, #tpu.memory_space<vmem>>, %arg11: memref<1x32xf32, #tpu.memory_space<vmem>>, %arg12: memref<1x16x16x32xf32, #tpu.memory_space<vmem>>, %arg13: memref<18x18x8xf32, #tpu.memory_space<vmem>>) attributes {dimension_semantics = [#tpu.dimension_semantics<parallel>], iteration_bounds = array<i64: 2>, scalar_prefetch = 0 : i64, scratch_operands = 1 : i64, tpu.core_type = #tpu.core_type<tc>, window_params = [{transform_indices = @transform_0, window_bounds = array<i64: 1, 16, 16, 4>}, {pipeline_mode = #tpu.pipeline_mode<synchronous>, transform_indices = @transform_1, window_bounds = array<i64: 36, 8>}, {pipeline_mode = #tpu.pipeline_mode<synchronous>, transform_indices = @transform_2, window_bounds = array<i64: 1, 8>}, {pipeline_mode = #tpu.pipeline_mode<synchronous>, transform_indices = @transform_3, window_bounds = array<i64: 1, 8>}, {pipeline_mode = #tpu.pipeline_mode<synchronous>, transform_indices = @transform_4, window_bounds = array<i64: 72, 8>}, {pipeline_mode = #tpu.pipeline_mode<synchronous>, transform_indices = @transform_5, window_bounds = array<i64: 1, 8>}, {pipeline_mode = #tpu.pipeline_mode<synchronous>, transform_indices = @transform_6, window_bounds = array<i64: 1, 8>}, {pipeline_mode = #tpu.pipeline_mode<synchronous>, transform_indices = @transform_7, window_bounds = array<i64: 4, 8>}, {pipeline_mode = #tpu.pipeline_mode<synchronous>, transform_indices = @transform_8, window_bounds = array<i64: 1, 8>}, {pipeline_mode = #tpu.pipeline_mode<synchronous>, transform_indices = @transform_9, window_bounds = array<i64: 8, 32>}, {pipeline_mode = #tpu.pipeline_mode<synchronous>, transform_indices = @transform_10, window_bounds = array<i64: 1, 32>}, {transform_indices = @transform_11, window_bounds = array<i64: 1, 16, 16, 32>}]} {
    %cst = arith.constant 0.000000e+00 : f32
    %0 = vector.broadcast %cst : f32 to vector<18x18x8xf32>
    %c0 = arith.constant 0 : index
    %c0_0 = arith.constant 0 : index
    %c0_1 = arith.constant 0 : index
    %1 = vector.load %arg13[%c0, %c0_0, %c0_1] : memref<18x18x8xf32, #tpu.memory_space<vmem>>, vector<18x18x8xf32>
    tpu.vector_store %arg13[%c0, %c0_0, %c0_1], %0 {strides = array<i32>} : memref<18x18x8xf32, #tpu.memory_space<vmem>>, vector<18x18x8xf32>,
    %c0_2 = arith.constant 0 : index
    %c0_3 = arith.constant 0 : index
    %c0_4 = arith.constant 0 : index
    %c0_5 = arith.constant 0 : index
    %2 = vector.load %arg1[%c0_2, %c0_3, %c0_4, %c0_5] : memref<1x16x16x4xf32, #tpu.memory_space<vmem>>, vector<1x16x16x4xf32>
    %3 = vector.shape_cast %2 : vector<1x16x16x4xf32> to vector<16x16x4xf32>
    %c1 = arith.constant 1 : index
    %c1_6 = arith.constant 1 : index
    %c0_7 = arith.constant 0 : index
    %4 = vector.load %arg13[%c1, %c1_6, %c0_7] : memref<18x18x8xf32, #tpu.memory_space<vmem>>, vector<16x16x4xf32>
    tpu.vector_store %arg13[%c1, %c1_6, %c0_7], %3 {strides = array<i32>} : memref<18x18x8xf32, #tpu.memory_space<vmem>>, vector<16x16x4xf32>,
    %c0_8 = arith.constant 0 : index
    %c0_9 = arith.constant 0 : index
    %5 = vector.load %arg2[%c0_8, %c0_9] : memref<36x8xbf16, #tpu.memory_space<vmem>>, vector<36x8xbf16>
    %c0_10 = arith.constant 0 : index
    %c0_11 = arith.constant 0 : index
    %c0_12 = arith.constant 0 : index
    %6 = vector.load %arg13[%c0_10, %c0_11, %c0_12] : memref<18x18x8xf32, #tpu.memory_space<vmem>>, vector<16x16x4xf32>
    %7 = vector.shape_cast %6 : vector<16x16x4xf32> to vector<256x4xf32>
    %c0_13 = arith.constant 0 : index
    %c1_14 = arith.constant 1 : index
    %c0_15 = arith.constant 0 : index
    %8 = vector.load %arg13[%c0_13, %c1_14, %c0_15] : memref<18x18x8xf32, #tpu.memory_space<vmem>>, vector<16x16x4xf32>
    %9 = vector.shape_cast %8 : vector<16x16x4xf32> to vector<256x4xf32>
    %c0_16 = arith.constant 0 : index
    %c2 = arith.constant 2 : index
    %c0_17 = arith.constant 0 : index
    %10 = vector.load %arg13[%c0_16, %c2, %c0_17] : memref<18x18x8xf32, #tpu.memory_space<vmem>>, vector<16x16x4xf32>
    %11 = vector.shape_cast %10 : vector<16x16x4xf32> to vector<256x4xf32>
    %c1_18 = arith.constant 1 : index
    %c0_19 = arith.constant 0 : index
    %c0_20 = arith.constant 0 : index
    %12 = vector.load %arg13[%c1_18, %c0_19, %c0_20] : memref<18x18x8xf32, #tpu.memory_space<vmem>>, vector<16x16x4xf32>
    %13 = vector.shape_cast %12 : vector<16x16x4xf32> to vector<256x4xf32>
    %c1_21 = arith.constant 1 : index
    %c1_22 = arith.constant 1 : index
    %c0_23 = arith.constant 0 : index
    %14 = vector.load %arg13[%c1_21, %c1_22, %c0_23] : memref<18x18x8xf32, #tpu.memory_space<vmem>>, vector<16x16x4xf32>
    %15 = vector.shape_cast %14 : vector<16x16x4xf32> to vector<256x4xf32>
    %c1_24 = arith.constant 1 : index
    %c2_25 = arith.constant 2 : index
    %c0_26 = arith.constant 0 : index
    %16 = vector.load %arg13[%c1_24, %c2_25, %c0_26] : memref<18x18x8xf32, #tpu.memory_space<vmem>>, vector<16x16x4xf32>
    %17 = vector.shape_cast %16 : vector<16x16x4xf32> to vector<256x4xf32>
    %c2_27 = arith.constant 2 : index
    %c0_28 = arith.constant 0 : index
    %c0_29 = arith.constant 0 : index
    %18 = vector.load %arg13[%c2_27, %c0_28, %c0_29] : memref<18x18x8xf32, #tpu.memory_space<vmem>>, vector<16x16x4xf32>
    %19 = vector.shape_cast %18 : vector<16x16x4xf32> to vector<256x4xf32>
    %c2_30 = arith.constant 2 : index
    %c1_31 = arith.constant 1 : index
    %c0_32 = arith.constant 0 : index
    %20 = vector.load %arg13[%c2_30, %c1_31, %c0_32] : memref<18x18x8xf32, #tpu.memory_space<vmem>>, vector<16x16x4xf32>
    %21 = vector.shape_cast %20 : vector<16x16x4xf32> to vector<256x4xf32>
    %c2_33 = arith.constant 2 : index
    %c2_34 = arith.constant 2 : index
    %c0_35 = arith.constant 0 : index
    %22 = vector.load %arg13[%c2_33, %c2_34, %c0_35] : memref<18x18x8xf32, #tpu.memory_space<vmem>>, vector<16x16x4xf32>
    %23 = vector.shape_cast %22 : vector<16x16x4xf32> to vector<256x4xf32>
    %24 = tpu.concatenate %7, %9, %11, %13, %15, %17, %19, %21, %23 in 1 : vector<256x4xf32>, vector<256x4xf32>, vector<256x4xf32>, vector<256x4xf32>, vector<256x4xf32>, vector<256x4xf32>, vector<256x4xf32>, vector<256x4xf32>, vector<256x4xf32> -> vector<256x36xf32>
    %25 = arith.truncf %24 : vector<256x36xf32> to vector<256x36xbf16>
    %cst_36 = arith.constant dense<0.000000e+00> : vector<256x8xf32>
    %26 = tpu.matmul %25, %5, %cst_36 {dimension_numbers = #tpu.dot_dimension_numbers<[1], [0], [0], [1], [0, 0, 1, 1], [], []>} : vector<256x36xbf16>, vector<36x8xbf16>, vector<256x8xf32> -> vector<256x8xf32>
    %c0_37 = arith.constant 0 : index
    %c0_38 = arith.constant 0 : index
    %27 = vector.load %arg3[%c0_37, %c0_38] : memref<1x8xf32, #tpu.memory_space<vmem>>, vector<1x8xf32>
    %28 = vector.broadcast %27 : vector<1x8xf32> to vector<256x8xf32>
    %29 = arith.mulf %26, %28 : vector<256x8xf32>
    %c0_39 = arith.constant 0 : index
    %c0_40 = arith.constant 0 : index
    %30 = vector.load %arg4[%c0_39, %c0_40] : memref<1x8xf32, #tpu.memory_space<vmem>>, vector<1x8xf32>
    %31 = vector.broadcast %30 : vector<1x8xf32> to vector<256x8xf32>
    %32 = arith.addf %29, %31 : vector<256x8xf32>
    %cst_41 = arith.constant 0.000000e+00 : f32
    %33 = vector.broadcast %cst_41 : f32 to vector<256x8xf32>
    %34 = arith.cmpf oge, %32, %33 : vector<256x8xf32>
    %cst_42 = arith.constant 0.00999999977 : f32
    %35 = vector.broadcast %cst_42 : f32 to vector<256x8xf32>
    %36 = arith.mulf %35, %32 : vector<256x8xf32>
    %37 = arith.select %34, %32, %36 : vector<256x8xi1>, vector<256x8xf32>
    %c0_43 = arith.constant 0 : index
    %c0_44 = arith.constant 0 : index
    %38 = vector.load %arg5[%c0_43, %c0_44] : memref<72x8xbf16, #tpu.memory_space<vmem>>, vector<72x8xbf16>
    %39 = vector.shape_cast %37 : vector<256x8xf32> to vector<16x16x8xf32>
    %c1_45 = arith.constant 1 : index
    %c1_46 = arith.constant 1 : index
    %c0_47 = arith.constant 0 : index
    %40 = vector.load %arg13[%c1_45, %c1_46, %c0_47] : memref<18x18x8xf32, #tpu.memory_space<vmem>>, vector<16x16x8xf32>
    tpu.vector_store %arg13[%c1_45, %c1_46, %c0_47], %39 {strides = array<i32>} : memref<18x18x8xf32, #tpu.memory_space<vmem>>, vector<16x16x8xf32>,
    %c0_48 = arith.constant 0 : index
    %c0_49 = arith.constant 0 : index
    %c0_50 = arith.constant 0 : index
    %41 = vector.load %arg13[%c0_48, %c0_49, %c0_50] : memref<18x18x8xf32, #tpu.memory_space<vmem>>, vector<16x16x8xf32>
    %42 = vector.shape_cast %41 : vector<16x16x8xf32> to vector<256x8xf32>
    %c0_51 = arith.constant 0 : index
    %c1_52 = arith.constant 1 : index
    %c0_53 = arith.constant 0 : index
    %43 = vector.load %arg13[%c0_51, %c1_52, %c0_53] : memref<18x18x8xf32, #tpu.memory_space<vmem>>, vector<16x16x8xf32>
    %44 = vector.shape_cast %43 : vector<16x16x8xf32> to vector<256x8xf32>
    %c0_54 = arith.constant 0 : index
    %c2_55 = arith.constant 2 : index
    %c0_56 = arith.constant 0 : index
    %45 = vector.load %arg13[%c0_54, %c2_55, %c0_56] : memref<18x18x8xf32, #tpu.memory_space<vmem>>, vector<16x16x8xf32>
    %46 = vector.shape_cast %45 : vector<16x16x8xf32> to vector<256x8xf32>
    %c1_57 = arith.constant 1 : index
    %c0_58 = arith.constant 0 : index
    %c0_59 = arith.constant 0 : index
    %47 = vector.load %arg13[%c1_57, %c0_58, %c0_59] : memref<18x18x8xf32, #tpu.memory_space<vmem>>, vector<16x16x8xf32>
    %48 = vector.shape_cast %47 : vector<16x16x8xf32> to vector<256x8xf32>
    %c1_60 = arith.constant 1 : index
    %c1_61 = arith.constant 1 : index
    %c0_62 = arith.constant 0 : index
    %49 = vector.load %arg13[%c1_60, %c1_61, %c0_62] : memref<18x18x8xf32, #tpu.memory_space<vmem>>, vector<16x16x8xf32>
    %50 = vector.shape_cast %49 : vector<16x16x8xf32> to vector<256x8xf32>
    %c1_63 = arith.constant 1 : index
    %c2_64 = arith.constant 2 : index
    %c0_65 = arith.constant 0 : index
    %51 = vector.load %arg13[%c1_63, %c2_64, %c0_65] : memref<18x18x8xf32, #tpu.memory_space<vmem>>, vector<16x16x8xf32>
    %52 = vector.shape_cast %51 : vector<16x16x8xf32> to vector<256x8xf32>
    %c2_66 = arith.constant 2 : index
    %c0_67 = arith.constant 0 : index
    %c0_68 = arith.constant 0 : index
    %53 = vector.load %arg13[%c2_66, %c0_67, %c0_68] : memref<18x18x8xf32, #tpu.memory_space<vmem>>, vector<16x16x8xf32>
    %54 = vector.shape_cast %53 : vector<16x16x8xf32> to vector<256x8xf32>
    %c2_69 = arith.constant 2 : index
    %c1_70 = arith.constant 1 : index
    %c0_71 = arith.constant 0 : index
    %55 = vector.load %arg13[%c2_69, %c1_70, %c0_71] : memref<18x18x8xf32, #tpu.memory_space<vmem>>, vector<16x16x8xf32>
    %56 = vector.shape_cast %55 : vector<16x16x8xf32> to vector<256x8xf32>
    %c2_72 = arith.constant 2 : index
    %c2_73 = arith.constant 2 : index
    %c0_74 = arith.constant 0 : index
    %57 = vector.load %arg13[%c2_72, %c2_73, %c0_74] : memref<18x18x8xf32, #tpu.memory_space<vmem>>, vector<16x16x8xf32>
    %58 = vector.shape_cast %57 : vector<16x16x8xf32> to vector<256x8xf32>
    %59 = tpu.concatenate %42, %44, %46, %48, %50, %52, %54, %56, %58 in 1 : vector<256x8xf32>, vector<256x8xf32>, vector<256x8xf32>, vector<256x8xf32>, vector<256x8xf32>, vector<256x8xf32>, vector<256x8xf32>, vector<256x8xf32>, vector<256x8xf32> -> vector<256x72xf32>
    %60 = arith.truncf %59 : vector<256x72xf32> to vector<256x72xbf16>
    %cst_75 = arith.constant dense<0.000000e+00> : vector<256x8xf32>
    %61 = tpu.matmul %60, %38, %cst_75 {dimension_numbers = #tpu.dot_dimension_numbers<[1], [0], [0], [1], [0, 0, 1, 1], [], []>} : vector<256x72xbf16>, vector<72x8xbf16>, vector<256x8xf32> -> vector<256x8xf32>
    %c0_76 = arith.constant 0 : index
    %c0_77 = arith.constant 0 : index
    %62 = vector.load %arg6[%c0_76, %c0_77] : memref<1x8xf32, #tpu.memory_space<vmem>>, vector<1x8xf32>
    %63 = vector.broadcast %62 : vector<1x8xf32> to vector<256x8xf32>
    %64 = arith.mulf %61, %63 : vector<256x8xf32>
    %c0_78 = arith.constant 0 : index
    %c0_79 = arith.constant 0 : index
    %65 = vector.load %arg7[%c0_78, %c0_79] : memref<1x8xf32, #tpu.memory_space<vmem>>, vector<1x8xf32>
    %66 = vector.broadcast %65 : vector<1x8xf32> to vector<256x8xf32>
    %67 = arith.addf %64, %66 : vector<256x8xf32>
    %cst_80 = arith.constant 0.000000e+00 : f32
    %68 = vector.broadcast %cst_80 : f32 to vector<256x8xf32>
    %69 = arith.cmpf oge, %67, %68 : vector<256x8xf32>
    %cst_81 = arith.constant 0.00999999977 : f32
    %70 = vector.broadcast %cst_81 : f32 to vector<256x8xf32>
    %71 = arith.mulf %70, %67 : vector<256x8xf32>
    %72 = arith.select %69, %67, %71 : vector<256x8xi1>, vector<256x8xf32>
    %c0_82 = arith.constant 0 : index
    %c0_83 = arith.constant 0 : index
    %c0_84 = arith.constant 0 : index
    %c0_85 = arith.constant 0 : index
    %73 = vector.load %arg1[%c0_82, %c0_83, %c0_84, %c0_85] : memref<1x16x16x4xf32, #tpu.memory_space<vmem>>, vector<1x16x16x4xf32>
    %74 = vector.shape_cast %73 : vector<1x16x16x4xf32> to vector<16x16x4xf32>
    %75 = vector.shape_cast %74 : vector<16x16x4xf32> to vector<256x4xf32>
    %76 = arith.truncf %75 : vector<256x4xf32> to vector<256x4xbf16>
    %c0_86 = arith.constant 0 : index
    %c0_87 = arith.constant 0 : index
    %77 = vector.load %arg8[%c0_86, %c0_87] : memref<4x8xbf16, #tpu.memory_space<vmem>>, vector<4x8xbf16>
    %cst_88 = arith.constant dense<0.000000e+00> : vector<256x8xf32>
    %78 = tpu.matmul %76, %77, %cst_88 {dimension_numbers = #tpu.dot_dimension_numbers<[1], [0], [0], [1], [0, 0, 1, 1], [], []>} : vector<256x4xbf16>, vector<4x8xbf16>, vector<256x8xf32> -> vector<256x8xf32>
    %c0_89 = arith.constant 0 : index
    %c0_90 = arith.constant 0 : index
    %79 = vector.load %arg9[%c0_89, %c0_90] : memref<1x8xf32, #tpu.memory_space<vmem>>, vector<1x8xf32>
    %80 = vector.broadcast %79 : vector<1x8xf32> to vector<256x8xf32>
    %81 = arith.addf %78, %80 : vector<256x8xf32>
    %82 = arith.addf %81, %72 : vector<256x8xf32>
    %83 = arith.truncf %82 : vector<256x8xf32> to vector<256x8xbf16>
    %c0_91 = arith.constant 0 : index
    %c0_92 = arith.constant 0 : index
    %84 = vector.load %arg10[%c0_91, %c0_92] : memref<8x32xbf16, #tpu.memory_space<vmem>>, vector<8x32xbf16>
    %cst_93 = arith.constant dense<0.000000e+00> : vector<256x32xf32>
    %85 = tpu.matmul %83, %84, %cst_93 {dimension_numbers = #tpu.dot_dimension_numbers<[1], [0], [0], [1], [0, 0, 1, 1], [], []>} : vector<256x8xbf16>, vector<8x32xbf16>, vector<256x32xf32> -> vector<256x32xf32>
    %c0_94 = arith.constant 0 : index
    %c0_95 = arith.constant 0 : index
    %86 = vector.load %arg11[%c0_94, %c0_95] : memref<1x32xf32, #tpu.memory_space<vmem>>, vector<1x32xf32>
    %87 = vector.broadcast %86 : vector<1x32xf32> to vector<256x32xf32>
    %88 = arith.addf %85, %87 : vector<256x32xf32>
    %89 = vector.shape_cast %88 : vector<256x32xf32> to vector<1x16x16x32xf32>
    %c0_96 = arith.constant 0 : index
    %c0_97 = arith.constant 0 : index
    %c0_98 = arith.constant 0 : index
    %c0_99 = arith.constant 0 : index
    %90 = vector.load %arg12[%c0_96, %c0_97, %c0_98, %c0_99] : memref<1x16x16x32xf32, #tpu.memory_space<vmem>>, vector<1x16x16x32xf32>
    tpu.vector_store %arg12[%c0_96, %c0_97, %c0_98, %c0_99], %89 {strides = array<i32>} : memref<1x16x16x32xf32, #tpu.memory_space<vmem>>, vector<1x16x16x32xf32>,
    return
  }
  func.func @transform_0(%arg0: i32) -> (i32, i32, i32, i32) {
    %c0_i32 = arith.constant 0 : i32
    %c0_i32_0 = arith.constant 0 : i32
    %c0_i32_1 = arith.constant 0 : i32
    %c0_i32_2 = arith.constant 0 : i32
    return %arg0, %c0_i32, %c0_i32_0, %c0_i32_1 : i32, i32, i32, i32
  }
  func.func @transform_1(%arg0: i32) -> (i32, i32) {
    %c0_i32 = arith.constant 0 : i32
    %c0_i32_0 = arith.constant 0 : i32
    %c0_i32_1 = arith.constant 0 : i32
    return %c0_i32, %c0_i32_0 : i32, i32
  }
  func.func @transform_2(%arg0: i32) -> (i32, i32) {
    %c0_i32 = arith.constant 0 : i32
    %c0_i32_0 = arith.constant 0 : i32
    %c0_i32_1 = arith.constant 0 : i32
    return %c0_i32, %c0_i32_0 : i32, i32
  }
  func.func @transform_3(%arg0: i32) -> (i32, i32) {
    %c0_i32 = arith.constant 0 : i32
    %c0_i32_0 = arith.constant 0 : i32
    %c0_i32_1 = arith.constant 0 : i32
    return %c0_i32, %c0_i32_0 : i32, i32
  }
  func.func @transform_4(%arg0: i32) -> (i32, i32) {
    %c0_i32 = arith.constant 0 : i32
    %c0_i32_0 = arith.constant 0 : i32
    %c0_i32_1 = arith.constant 0 : i32
    return %c0_i32, %c0_i32_0 : i32, i32
  }
  func.func @transform_5(%arg0: i32) -> (i32, i32) {
    %c0_i32 = arith.constant 0 : i32
    %c0_i32_0 = arith.constant 0 : i32
    %c0_i32_1 = arith.constant 0 : i32
    return %c0_i32, %c0_i32_0 : i32, i32
  }
  func.func @transform_6(%arg0: i32) -> (i32, i32) {
    %c0_i32 = arith.constant 0 : i32
    %c0_i32_0 = arith.constant 0 : i32
    %c0_i32_1 = arith.constant 0 : i32
    return %c0_i32, %c0_i32_0 : i32, i32
  }
  func.func @transform_7(%arg0: i32) -> (i32, i32) {
    %c0_i32 = arith.constant 0 : i32
    %c0_i32_0 = arith.constant 0 : i32
    %c0_i32_1 = arith.constant 0 : i32
    return %c0_i32, %c0_i32_0 : i32, i32
  }
  func.func @transform_8(%arg0: i32) -> (i32, i32) {
    %c0_i32 = arith.constant 0 : i32
    %c0_i32_0 = arith.constant 0 : i32
    %c0_i32_1 = arith.constant 0 : i32
    return %c0_i32, %c0_i32_0 : i32, i32
  }
  func.func @transform_9(%arg0: i32) -> (i32, i32) {
    %c0_i32 = arith.constant 0 : i32
    %c0_i32_0 = arith.constant 0 : i32
    %c0_i32_1 = arith.constant 0 : i32
    return %c0_i32, %c0_i32_0 : i32, i32
  }
  func.func @transform_10(%arg0: i32) -> (i32, i32) {
    %c0_i32 = arith.constant 0 : i32
    %c0_i32_0 = arith.constant 0 : i32
    %c0_i32_1 = arith.constant 0 : i32
    return %c0_i32, %c0_i32_0 : i32, i32
  }
  func.func @transform_11(%arg0: i32) -> (i32, i32, i32, i32) {
    %c0_i32 = arith.constant 0 : i32
    %c0_i32_0 = arith.constant 0 : i32
    %c0_i32_1 = arith.constant 0 : i32
    %c0_i32_2 = arith.constant 0 : i32
    return %arg0, %c0_i32, %c0_i32_0, %c0_i32_1 : i32, i32, i32, i32
  }
}

</mosaic_0001>

<llo_original>
// kernel: tpu_custom_call.1
$region0: #{tpu_custom_call.1}
  #allocation0 [shape = 'u32[]', space=smem, size = 0x4, offset = 0x4, fixed_abs, tag = 'smem constant byte address 0x4 - core index']
  #allocation1 [shape = 'u32[144,128]{1,0:T(1,128)}', space=vmem, size = 0x12000, scoped, tag = 'internal scratch']
  #allocation2 [shape = 'f32[18,18,8]{2,1,0:T(8,128)}', space=vmem, size = 0x36000, scoped, tag = 'scratch operand']
  %s0 = inlined_call_operand.vmem [shape: f32[2,16,16,4], index: 0, kind: input, shape index: {}]
  %s1 = inlined_call_operand.vmem [shape: bf16[36,8], index: 1, kind: input, shape index: {}]
  %s2 = inlined_call_operand.vmem [shape: f32[1,8], index: 2, kind: input, shape index: {}]
  %s3 = inlined_call_operand.vmem [shape: f32[1,8], index: 3, kind: input, shape index: {}]
  %s4 = inlined_call_operand.vmem [shape: bf16[72,8], index: 4, kind: input, shape index: {}]
  %s5 = inlined_call_operand.vmem [shape: f32[1,8], index: 5, kind: input, shape index: {}]
  %s6 = inlined_call_operand.vmem [shape: f32[1,8], index: 6, kind: input, shape index: {}]
  %s7 = inlined_call_operand.vmem [shape: bf16[4,8], index: 7, kind: input, shape index: {}]
  %s8 = inlined_call_operand.vmem [shape: f32[1,8], index: 8, kind: input, shape index: {}]
  %s9 = inlined_call_operand.vmem [shape: bf16[8,32], index: 9, kind: input, shape index: {}]
  %s10 = inlined_call_operand.vmem [shape: f32[1,32], index: 10, kind: input, shape index: {}]
  %s11 = inlined_call_operand.hbm [shape: f32[2,16,16,32], index: 11, kind: output, shape index: {}]
  %s12 = sld [smem:[#allocation0]]
  $region77: #{tpu_custom_call.1} parent=0
    _
  %s14 = ssub.s32 1, %s12
  %s15 = scalar_select 0, %s14, %s12
  $region1: #{tpu_custom_call.1} parent=0
    #allocation3 [shape = 'u8[262144]{0}', space=vmem, size = 0x40000, scoped, tag = 'output window, operand 0']
    #allocation4 [shape = 's32[2]{0}', space=sflag, size = 0x8, scoped, tag = 'scoped memory for tpu_custom_call.1']
    %16 = vsyncpa [#allocation4], 0
    %s17 = scalar_lea.sflag [#allocation4], 1
    %18 = vsyncpa %s17, 0
    loop: start=0, step=1, limit=4
    $region2: #{tpu_custom_call.1} parent=1 // loop_pre_header
      _
    $region3: #{tpu_custom_call.1} parent=1 // loop_header
      %s20 = sphi 0, %s24
      %p21 = scmp.ge.s32.totalorder %s20, 4
      %s30 = sphi 0, %s32
      %s33 = sphi 0, %s30
      %s34 = sphi 0, %s33
      %s50 = sphi 0, %s34
      %s54 = sphi 0, %s54
      %s56 = sphi 0, %s54
      %s57 = sphi 0, %s56
      %s71 = sphi 0, %s57
      %s75 = sphi 0, %s75
      %s77 = sphi 0, %s75
      %s78 = sphi 0, %s77
      %s92 = sphi 0, %s78
      %s96 = sphi 0, %s96
      %s98 = sphi 0, %s96
      %s99 = sphi 0, %s98
      %s113 = sphi 0, %s99
      %s117 = sphi 0, %s117
      %s119 = sphi 0, %s117
      %s120 = sphi 0, %s119
      %s134 = sphi 0, %s120
      %s138 = sphi 0, %s138
      %s140 = sphi 0, %s138
      %s141 = sphi 0, %s140
      %s155 = sphi 0, %s141
      %s159 = sphi 0, %s159
      %s161 = sphi 0, %s159
      %s162 = sphi 0, %s161
      %s176 = sphi 0, %s162
      %s180 = sphi 0, %s180
      %s182 = sphi 0, %s180
      %s183 = sphi 0, %s182
      %s197 = sphi 0, %s183
      %s201 = sphi 0, %s201
      %s203 = sphi 0, %s201
      %s204 = sphi 0, %s203
      %s218 = sphi 0, %s204
      %s222 = sphi 0, %s222
      %s224 = sphi 0, %s222
      %s225 = sphi 0, %s224
      %s239 = sphi 0, %s225
      %s243 = sphi 0, %s243
      %s245 = sphi 0, %s243
      %s246 = sphi 0, %s245
      %s260 = sphi 0, %s246
      %s266 = sphi 0, %s268
      %s269 = sphi 0, %s266
      %s270 = sphi 0, %s269
      %s286 = sphi 0, %s270
    $region4: #{tpu_custom_call.1} parent=1 // loop_header_branch
      %23 = sbr.rel (%p21) target = $region8
    $region5: #{tpu_custom_call.1} parent=1 // loop_body
      %s25 = ssub.s32 %s20, 1
      %s26 = ssub.s32 %s20, 2
      %s27 = sadd.s32 %s20, 1
      %s28 = ssub.s32 %s20, %s27
      %p29 = scmp.eq.s32.totalorder %s28, 0
      %s31 = sadd.s32 %s30, 1
      %s32 = scalar_select %p29, %s30, %s31
      %p35 = pneg %p29
      %p36 = scmp.eq.s32.totalorder %s20, 1
      %p37 = por %p35, %p36
      %p38 = scmp.ne.s32.totalorder %s30, %s33
      %p39 = scmp.eq.s32.totalorder %s20, 0
      %p40 = por %p38, %p39
      %p41 = scmp.ne.s32.totalorder %s30, %s33
      %p42 = scmp.eq.s32.totalorder %s25, 1
      %p43 = por %p41, %p42
      %p44 = scmp.ne.s32.totalorder %s33, %s34
      %p45 = scmp.eq.s32.totalorder %s25, 0
      %p46 = por %p44, %p45
      %p47 = scmp.ne.s32.totalorder %s33, %s34
      %p48 = scmp.eq.s32.totalorder %s26, 1
      %p49 = por %p47, %p48
      %p51 = scmp.ne.s32.totalorder %s34, %s50
      %p52 = scmp.eq.s32.totalorder %s26, 0
      %p53 = por %p51, %p52
      %s55 = sadd.s32 %s54, 1
      %p58 = scmp.eq.s32.totalorder %s20, 1
      %p59 = scmp.ne.s32.totalorder %s54, %s56
      %p60 = scmp.eq.s32.totalorder %s20, 0
      %p61 = por %p59, %p60
      %p62 = scmp.ne.s32.totalorder %s54, %s56
      %p63 = scmp.eq.s32.totalorder %s25, 1
      %p64 = por %p62, %p63
      %p65 = scmp.ne.s32.totalorder %s56, %s57
      %p66 = scmp.eq.s32.totalorder %s25, 0
      %p67 = por %p65, %p66
      %p68 = scmp.ne.s32.totalorder %s56, %s57
      %p69 = scmp.eq.s32.totalorder %s26, 1
      %p70 = por %p68, %p69
      %p72 = scmp.ne.s32.totalorder %s57, %s71
      %p73 = scmp.eq.s32.totalorder %s26, 0
      %p74 = por %p72, %p73
      %s76 = sadd.s32 %s75, 1
      %p79 = scmp.eq.s32.totalorder %s20, 1
      %p80 = scmp.ne.s32.totalorder %s75, %s77
      %p81 = scmp.eq.s32.totalorder %s20, 0
      %p82 = por %p80, %p81
      %p83 = scmp.ne.s32.totalorder %s75, %s77
      %p84 = scmp.eq.s32.totalorder %s25, 1
      %p85 = por %p83, %p84
      %p86 = scmp.ne.s32.totalorder %s77, %s78
      %p87 = scmp.eq.s32.totalorder %s25, 0
      %p88 = por %p86, %p87
      %p89 = scmp.ne.s32.totalorder %s77, %s78
      %p90 = scmp.eq.s32.totalorder %s26, 1
      %p91 = por %p89, %p90
      %p93 = scmp.ne.s32.totalorder %s78, %s92
      %p94 = scmp.eq.s32.totalorder %s26, 0
      %p95 = por %p93, %p94
      %s97 = sadd.s32 %s96, 1
      %p100 = scmp.eq.s32.totalorder %s20, 1
      %p101 = scmp.ne.s32.totalorder %s96, %s98
      %p102 = scmp.eq.s32.totalorder %s20, 0
      %p103 = por %p101, %p102
      %p104 = scmp.ne.s32.totalorder %s96, %s98
      %p105 = scmp.eq.s32.totalorder %s25, 1
      %p106 = por %p104, %p105
      %p107 = scmp.ne.s32.totalorder %s98, %s99
      %p108 = scmp.eq.s32.totalorder %s25, 0
      %p109 = por %p107, %p108
      %p110 = scmp.ne.s32.totalorder %s98, %s99
      %p111 = scmp.eq.s32.totalorder %s26, 1
      %p112 = por %p110, %p111
      %p114 = scmp.ne.s32.totalorder %s99, %s113
      %p115 = scmp.eq.s32.totalorder %s26, 0
      %p116 = por %p114, %p115
      %s118 = sadd.s32 %s117, 1
      %p121 = scmp.eq.s32.totalorder %s20, 1
      %p122 = scmp.ne.s32.totalorder %s117, %s119
      %p123 = scmp.eq.s32.totalorder %s20, 0
      %p124 = por %p122, %p123
      %p125 = scmp.ne.s32.totalorder %s117, %s119
      %p126 = scmp.eq.s32.totalorder %s25, 1
      %p127 = por %p125, %p126
      %p128 = scmp.ne.s32.totalorder %s119, %s120
      %p129 = scmp.eq.s32.totalorder %s25, 0
      %p130 = por %p128, %p129
      %p131 = scmp.ne.s32.totalorder %s119, %s120
      %p132 = scmp.eq.s32.totalorder %s26, 1
      %p133 = por %p131, %p132
      %p135 = scmp.ne.s32.totalorder %s120, %s134
      %p136 = scmp.eq.s32.totalorder %s26, 0
      %p137 = por %p135, %p136
      %s139 = sadd.s32 %s138, 1
      %p142 = scmp.eq.s32.totalorder %s20, 1
      %p143 = scmp.ne.s32.totalorder %s138, %s140
      %p144 = scmp.eq.s32.totalorder %s20, 0
      %p145 = por %p143, %p144
      %p146 = scmp.ne.s32.totalorder %s138, %s140
      %p147 = scmp.eq.s32.totalorder %s25, 1
      %p148 = por %p146, %p147
      %p149 = scmp.ne.s32.totalorder %s140, %s141
      %p150 = scmp.eq.s32.totalorder %s25, 0
      %p151 = por %p149, %p150
      %p152 = scmp.ne.s32.totalorder %s140, %s141
      %p153 = scmp.eq.s32.totalorder %s26, 1
      %p154 = por %p152, %p153
      %p156 = scmp.ne.s32.totalorder %s141, %s155
      %p157 = scmp.eq.s32.totalorder %s26, 0
      %p158 = por %p156, %p157
      %s160 = sadd.s32 %s159, 1
      %p163 = scmp.eq.s32.totalorder %s20, 1
      %p164 = scmp.ne.s32.totalorder %s159, %s161
      %p165 = scmp.eq.s32.totalorder %s20, 0
      %p166 = por %p164, %p165
      %p167 = scmp.ne.s32.totalorder %s159, %s161
      %p168 = scmp.eq.s32.totalorder %s25, 1
      %p169 = por %p167, %p168
      %p170 = scmp.ne.s32.totalorder %s161, %s162
      %p171 = scmp.eq.s32.totalorder %s25, 0
      %p172 = por %p170, %p171
      %p173 = scmp.ne.s32.totalorder %s161, %s162
      %p174 = scmp.eq.s32.totalorder %s26, 1
      %p175 = por %p173, %p174
      %p177 = scmp.ne.s32.totalorder %s162, %s176
      %p178 = scmp.eq.s32.totalorder %s26, 0
      %p179 = por %p177, %p178
      %s181 = sadd.s32 %s180, 1
      %p184 = scmp.eq.s32.totalorder %s20, 1
      %p185 = scmp.ne.s32.totalorder %s180, %s182
      %p186 = scmp.eq.s32.totalorder %s20, 0
      %p187 = por %p185, %p186
      %p188 = scmp.ne.s32.totalorder %s180, %s182
      %p189 = scmp.eq.s32.totalorder %s25, 1
      %p190 = por %p188, %p189
      %p191 = scmp.ne.s32.totalorder %s182, %s183
      %p192 = scmp.eq.s32.totalorder %s25, 0
      %p193 = por %p191, %p192
      %p194 = scmp.ne.s32.totalorder %s182, %s183
      %p195 = scmp.eq.s32.totalorder %s26, 1
      %p196 = por %p194, %p195
      %p198 = scmp.ne.s32.totalorder %s183, %s197
      %p199 = scmp.eq.s32.totalorder %s26, 0
      %p200 = por %p198, %p199
      %s202 = sadd.s32 %s201, 1
      %p205 = scmp.eq.s32.totalorder %s20, 1
      %p206 = scmp.ne.s32.totalorder %s201, %s203
      %p207 = scmp.eq.s32.totalorder %s20, 0
      %p208 = por %p206, %p207
      %p209 = scmp.ne.s32.totalorder %s201, %s203
      %p210 = scmp.eq.s32.totalorder %s25, 1
      %p211 = por %p209, %p210
      %p212 = scmp.ne.s32.totalorder %s203, %s204
      %p213 = scmp.eq.s32.totalorder %s25, 0
      %p214 = por %p212, %p213
      %p215 = scmp.ne.s32.totalorder %s203, %s204
      %p216 = scmp.eq.s32.totalorder %s26, 1
      %p217 = por %p215, %p216
      %p219 = scmp.ne.s32.totalorder %s204, %s218
      %p220 = scmp.eq.s32.totalorder %s26, 0
      %p221 = por %p219, %p220
      %s223 = sadd.s32 %s222, 1
      %p226 = scmp.eq.s32.totalorder %s20, 1
      %p227 = scmp.ne.s32.totalorder %s222, %s224
      %p228 = scmp.eq.s32.totalorder %s20, 0
      %p229 = por %p227, %p228
      %p230 = scmp.ne.s32.totalorder %s222, %s224
      %p231 = scmp.eq.s32.totalorder %s25, 1
      %p232 = por %p230, %p231
      %p233 = scmp.ne.s32.totalorder %s224, %s225
      %p234 = scmp.eq.s32.totalorder %s25, 0
      %p235 = por %p233, %p234
      %p236 = scmp.ne.s32.totalorder %s224, %s225
      %p237 = scmp.eq.s32.totalorder %s26, 1
      %p238 = por %p236, %p237
      %p240 = scmp.ne.s32.totalorder %s225, %s239
      %p241 = scmp.eq.s32.totalorder %s26, 0
      %p242 = por %p240, %p241
      %s244 = sadd.s32 %s243, 1
      %p247 = scmp.eq.s32.totalorder %s20, 1
      %p248 = scmp.ne.s32.totalorder %s243, %s245
      %p249 = scmp.eq.s32.totalorder %s20, 0
      %p250 = por %p248, %p249
      %p251 = scmp.ne.s32.totalorder %s243, %s245
      %p252 = scmp.eq.s32.totalorder %s25, 1
      %p253 = por %p251, %p252
      %p254 = scmp.ne.s32.totalorder %s245, %s246
      %p255 = scmp.eq.s32.totalorder %s25, 0
      %p256 = por %p254, %p255
      %p257 = scmp.ne.s32.totalorder %s245, %s246
      %p258 = scmp.eq.s32.totalorder %s26, 1
      %p259 = por %p257, %p258
      %p261 = scmp.ne.s32.totalorder %s246, %s260
      %p262 = scmp.eq.s32.totalorder %s26, 0
      %p263 = por %p261, %p262
      %s264 = ssub.s32 %s20, %s27
      %p265 = scmp.eq.s32.totalorder %s264, 0
      %s267 = sadd.s32 %s266, 1
      %s268 = scalar_select %p265, %s266, %s267
      %p271 = pneg %p265
      %p272 = scmp.eq.s32.totalorder %s20, 1
      %p273 = por %p271, %p272
      %p274 = scmp.ne.s32.totalorder %s266, %s269
      %p275 = scmp.eq.s32.totalorder %s20, 0
      %p276 = por %p274, %p275
      %p277 = scmp.ne.s32.totalorder %s266, %s269
      %p278 = scmp.eq.s32.totalorder %s25, 1
      %p279 = por %p277, %p278
      %p280 = scmp.ne.s32.totalorder %s269, %s270
      %p281 = scmp.eq.s32.totalorder %s25, 0
      %p282 = por %p280, %p281
      %p283 = scmp.ne.s32.totalorder %s269, %s270
      %p284 = scmp.eq.s32.totalorder %s26, 1
      %p285 = por %p283, %p284
      %p287 = scmp.ne.s32.totalorder %s270, %s286
      %p288 = scmp.eq.s32.totalorder %s26, 0
      %p289 = por %p287, %p288
      %p290 = scmp.le.s32.totalorder 1, %s20
      %p291 = scmp.lt.s32.totalorder %s20, 3
      %p292 = pnand %p290, %p291
      %p293 = pneg %p292
      // Predicated region
      $region9: #{tpu_custom_call.1} parent=5 // pred_check
        _
      $region10: #{tpu_custom_call.1} parent=5 // pred_check_branch
        %295 = sbr.rel (%p292) target = $region12
      $region11: #{tpu_custom_call.1} parent=5 // pred_region
        %s296 = ssub.s32 %s20, 1
        // Predicated region
        $region13: #{tpu_custom_call.1} parent=11 // pred_check
          %p297 = pneg %p67
        $region14: #{tpu_custom_call.1} parent=11 // pred_check_branch
          %299 = sbr.rel (%p297) target = $region16
        $region15: #{tpu_custom_call.1} parent=11 // pred_region
          _
        $region16: #{tpu_custom_call.1} parent=11 // pred_fallthru
          _
        // Predicated region
        $region17: #{tpu_custom_call.1} parent=11 // pred_check
          %p300 = pneg %p88
        $region18: #{tpu_custom_call.1} parent=11 // pred_check_branch
          %302 = sbr.rel (%p300) target = $region20
        $region19: #{tpu_custom_call.1} parent=11 // pred_region
          _
        $region20: #{tpu_custom_call.1} parent=11 // pred_fallthru
          _
        // Predicated region
        $region21: #{tpu_custom_call.1} parent=11 // pred_check
          %p303 = pneg %p109
        $region22: #{tpu_custom_call.1} parent=11 // pred_check_branch
          %305 = sbr.rel (%p303) target = $region24
        $region23: #{tpu_custom_call.1} parent=11 // pred_region
          _
        $region24: #{tpu_custom_call.1} parent=11 // pred_fallthru
          _
        // Predicated region
        $region25: #{tpu_custom_call.1} parent=11 // pred_check
          %p306 = pneg %p130
        $region26: #{tpu_custom_call.1} parent=11 // pred_check_branch
          %308 = sbr.rel (%p306) target = $region28
        $region27: #{tpu_custom_call.1} parent=11 // pred_region
          _
        $region28: #{tpu_custom_call.1} parent=11 // pred_fallthru
          _
        // Predicated region
        $region29: #{tpu_custom_call.1} parent=11 // pred_check
          %p309 = pneg %p151
        $region30: #{tpu_custom_call.1} parent=11 // pred_check_branch
          %311 = sbr.rel (%p309) target = $region32
        $region31: #{tpu_custom_call.1} parent=11 // pred_region
          _
        $region32: #{tpu_custom_call.1} parent=11 // pred_fallthru
          _
        // Predicated region
        $region33: #{tpu_custom_call.1} parent=11 // pred_check
          %p312 = pneg %p172
        $region34: #{tpu_custom_call.1} parent=11 // pred_check_branch
          %314 = sbr.rel (%p312) target = $region36
        $region35: #{tpu_custom_call.1} parent=11 // pred_region
          _
        $region36: #{tpu_custom_call.1} parent=11 // pred_fallthru
          _
        // Predicated region
        $region37: #{tpu_custom_call.1} parent=11 // pred_check
          %p315 = pneg %p193
        $region38: #{tpu_custom_call.1} parent=11 // pred_check_branch
          %317 = sbr.rel (%p315) target = $region40
        $region39: #{tpu_custom_call.1} parent=11 // pred_region
          _
        $region40: #{tpu_custom_call.1} parent=11 // pred_fallthru
          _
        // Predicated region
        $region41: #{tpu_custom_call.1} parent=11 // pred_check
          %p318 = pneg %p214
        $region42: #{tpu_custom_call.1} parent=11 // pred_check_branch
          %320 = sbr.rel (%p318) target = $region44
        $region43: #{tpu_custom_call.1} parent=11 // pred_region
          _
        $region44: #{tpu_custom_call.1} parent=11 // pred_fallthru
          _
        // Predicated region
        $region45: #{tpu_custom_call.1} parent=11 // pred_check
          %p321 = pneg %p235
        $region46: #{tpu_custom_call.1} parent=11 // pred_check_branch
          %323 = sbr.rel (%p321) target = $region48
        $region47: #{tpu_custom_call.1} parent=11 // pred_region
          _
        $region48: #{tpu_custom_call.1} parent=11 // pred_fallthru
          _
        // Predicated region
        $region49: #{tpu_custom_call.1} parent=11 // pred_check
          %p324 = pneg %p256
        $region50: #{tpu_custom_call.1} parent=11 // pred_check_branch
          %326 = sbr.rel (%p324) target = $region52
        $region51: #{tpu_custom_call.1} parent=11 // pred_region
          _
        $region52: #{tpu_custom_call.1} parent=11 // pred_fallthru
          _
      $region12: #{tpu_custom_call.1} parent=5 // pred_fallthru
        _
      %p327 = scmp.lt.s32.totalorder %s20, 2
      // Predicated region
      $region53: #{tpu_custom_call.1} parent=5 // pred_check
        %p328 = pneg %p327
      $region54: #{tpu_custom_call.1} parent=5 // pred_check_branch
        %330 = sbr.rel (%p328) target = $region56
      $region55: #{tpu_custom_call.1} parent=5 // pred_region
        // Predicated region
        $region57: #{tpu_custom_call.1} parent=55 // pred_check
          %p331 = pneg %p40
        $region58: #{tpu_custom_call.1} parent=55 // pred_check_branch
          %333 = sbr.rel (%p331) target = $region60
        $region59: #{tpu_custom_call.1} parent=55 // pred_region
          %p334 = scmp.lt.s32.totalorder %s20, 1
          %s335 = scalar_select %p334, %s20, 1
          %s336 = smul.addr %s335, 32
          %s337 = smul.addr %s336, 8
          %s338 = scalar_lea.vmem %s0, %s337
        $region60: #{tpu_custom_call.1} parent=55 // pred_fallthru
          _
      $region56: #{tpu_custom_call.1} parent=5 // pred_fallthru
        _
      %p339 = scmp.le.s32.totalorder 1, %s20
      %p340 = scmp.lt.s32.totalorder %s20, 3
      %p341 = pnand %p339, %p340
      %p342 = pneg %p341
      // Predicated region
      $region61: #{tpu_custom_call.1} parent=5 // pred_check
        _
      $region62: #{tpu_custom_call.1} parent=5 // pred_check_branch
        %344 = sbr.rel (%p341) target = $region64
      $region63: #{tpu_custom_call.1} parent=5 // pred_region
        %s345 = ssub.s32 %s20, 1
        %p346 = scmp.lt.s32.totalorder %s25, 1
        %s347 = scalar_select %p346, %s25, 1
        %s348 = smul.addr %s347, 32
        %s349 = smul.addr %s348, 8
        %s350 = scalar_lea.vmem %s0, %s349
        %p351 = pneg %p46
        %p352 = pneg %p43
        %p353 = pneg %p67
        %p354 = pneg %p64
        %p355 = pneg %p88
        %p356 = pneg %p85
        %p357 = pneg %p109
        %p358 = pneg %p106
        %p359 = pneg %p130
        %p360 = pneg %p127
        %p361 = pneg %p151
        %p362 = pneg %p148
        %p363 = pneg %p172
        %p364 = pneg %p169
        %p365 = pneg %p193
        %p366 = pneg %p190
        %p367 = pneg %p214
        %p368 = pneg %p211
        %p369 = pneg %p235
        %p370 = pneg %p232
        %p371 = pneg %p256
        %p372 = pneg %p253
        %p373 = pneg %p282
        %p374 = pneg %p279
        %s375 = sand.u32 %s269, 1
        %s376 = scalar_lea.sflag [#allocation4], %s375
        %s377 = sand.u32 %s269, 1
        %s378 = smul.addr %s377, 256
        %s379 = scalar_lea.vmem [#allocation3], %s378
        %p380 = scmp.lt.s32.totalorder %s25, 1
        %s381 = scalar_select %p380, %s25, 1
        %s382 = smul.addr %s381, 32
        %s383 = smul.addr %s382, 8
        %s384 = scalar_lea.vmem %s0, %s383
        %vm386 = vcmask 64512
        %387 = vst.msk [vmem:[#allocation2] sm:$0xff] %vm386, 0.0
        %388 = vst.msk [vmem:[#allocation2 + $0x8] sm:$0xff] %vm386, 0.0
        %vm389 = vcmask 58368
        %390 = vst.msk [vmem:[#allocation2 + $0x10] sm:$0x3] %vm389, 0.0
        %391 = vst.msk [vmem:[#allocation2 + $0x18] sm:$0xff] %vm386, 0.0
        %392 = vst.msk [vmem:[#allocation2 + $0x20] sm:$0xff] %vm386, 0.0
        %393 = vst.msk [vmem:[#allocation2 + $0x28] sm:$0x3] %vm389, 0.0
        %394 = vst.msk [vmem:[#allocation2 + $0x30] sm:$0xff] %vm386, 0.0
        %395 = vst.msk [vmem:[#allocation2 + $0x38] sm:$0xff] %vm386, 0.0
        %396 = vst.msk [vmem:[#allocation2 + $0x40] sm:$0x3] %vm389, 0.0
        %397 = vst.msk [vmem:[#allocation2 + $0x48] sm:$0xff] %vm386, 0.0
        %398 = vst.msk [vmem:[#allocation2 + $0x50] sm:$0xff] %vm386, 0.0
        %399 = vst.msk [vmem:[#allocation2 + $0x58] sm:$0x3] %vm389, 0.0
        %400 = vst.msk [vmem:[#allocation2 + $0x60] sm:$0xff] %vm386, 0.0
        %401 = vst.msk [vmem:[#allocation2 + $0x68] sm:$0xff] %vm386, 0.0
        %402 = vst.msk [vmem:[#allocation2 + $0x70] sm:$0x3] %vm389, 0.0
        %403 = vst.msk [vmem:[#allocation2 + $0x78] sm:$0xff] %vm386, 0.0
        %404 = vst.msk [vmem:[#allocation2 + $0x80] sm:$0xff] %vm386, 0.0
        %405 = vst.msk [vmem:[#allocation2 + $0x88] sm:$0x3] %vm389, 0.0
        %406 = vst.msk [vmem:[#allocation2 + $0x90] sm:$0xff] %vm386, 0.0
        %407 = vst.msk [vmem:[#allocation2 + $0x98] sm:$0xff] %vm386, 0.0
        %408 = vst.msk [vmem:[#allocation2 + $0xa0] sm:$0x3] %vm389, 0.0
        %409 = vst.msk [vmem:[#allocation2 + $0xa8] sm:$0xff] %vm386, 0.0
        %410 = vst.msk [vmem:[#allocation2 + $0xb0] sm:$0xff] %vm386, 0.0
        %411 = vst.msk [vmem:[#allocation2 + $0xb8] sm:$0x3] %vm389, 0.0
        %412 = vst.msk [vmem:[#allocation2 + $0xc0] sm:$0xff] %vm386, 0.0
        %413 = vst.msk [vmem:[#allocation2 + $0xc8] sm:$0xff] %vm386, 0.0
        %414 = vst.msk [vmem:[#allocation2 + $0xd0] sm:$0x3] %vm389, 0.0
        %415 = vst.msk [vmem:[#allocation2 + $0xd8] sm:$0xff] %vm386, 0.0
        %416 = vst.msk [vmem:[#allocation2 + $0xe0] sm:$0xff] %vm386, 0.0
        %417 = vst.msk [vmem:[#allocation2 + $0xe8] sm:$0x3] %vm389, 0.0
        %418 = vst.msk [vmem:[#allocation2 + $0xf0] sm:$0xff] %vm386, 0.0
        %419 = vst.msk [vmem:[#allocation2 + $0xf8] sm:$0xff] %vm386, 0.0
        %420 = vst.msk [vmem:[#allocation2 + $0x100] sm:$0x3] %vm389, 0.0
        %421 = vst.msk [vmem:[#allocation2 + $0x108] sm:$0xff] %vm386, 0.0
        %422 = vst.msk [vmem:[#allocation2 + $0x110] sm:$0xff] %vm386, 0.0
        %423 = vst.msk [vmem:[#allocation2 + $0x118] sm:$0x3] %vm389, 0.0
        %424 = vst.msk [vmem:[#allocation2 + $0x120] sm:$0xff] %vm386, 0.0
        %425 = vst.msk [vmem:[#allocation2 + $0x128] sm:$0xff] %vm386, 0.0
        %426 = vst.msk [vmem:[#allocation2 + $0x130] sm:$0x3] %vm389, 0.0
        %427 = vst.msk [vmem:[#allocation2 + $0x138] sm:$0xff] %vm386, 0.0
        %428 = vst.msk [vmem:[#allocation2 + $0x140] sm:$0xff] %vm386, 0.0
        %429 = vst.msk [vmem:[#allocation2 + $0x148] sm:$0x3] %vm389, 0.0
        %430 = vst.msk [vmem:[#allocation2 + $0x150] sm:$0xff] %vm386, 0.0
        %431 = vst.msk [vmem:[#allocation2 + $0x158] sm:$0xff] %vm386, 0.0
        %432 = vst.msk [vmem:[#allocation2 + $0x160] sm:$0x3] %vm389, 0.0
        %433 = vst.msk [vmem:[#allocation2 + $0x168] sm:$0xff] %vm386, 0.0
        %434 = vst.msk [vmem:[#allocation2 + $0x170] sm:$0xff] %vm386, 0.0
        %435 = vst.msk [vmem:[#allocation2 + $0x178] sm:$0x3] %vm389, 0.0
        %436 = vst.msk [vmem:[#allocation2 + $0x180] sm:$0xff] %vm386, 0.0
        %437 = vst.msk [vmem:[#allocation2 + $0x188] sm:$0xff] %vm386, 0.0
        %438 = vst.msk [vmem:[#allocation2 + $0x190] sm:$0x3] %vm389, 0.0
        %439 = vst.msk [vmem:[#allocation2 + $0x198] sm:$0xff] %vm386, 0.0
        %440 = vst.msk [vmem:[#allocation2 + $0x1a0] sm:$0xff] %vm386, 0.0
        %441 = vst.msk [vmem:[#allocation2 + $0x1a8] sm:$0x3] %vm389, 0.0
        %v442 = vld [vmem:[%s384] sm:$0xff]
        %v443 = vld [vmem:[%s384 + $0x8] sm:$0xff]
        %v444 = vld [vmem:[%s384 + $0x10] sm:$0xff]
        %v445 = vld [vmem:[%s384 + $0x18] sm:$0xff]
        %v446 = vld [vmem:[%s384 + $0x20] sm:$0xff]
        %v447 = vld [vmem:[%s384 + $0x28] sm:$0xff]
        %v448 = vld [vmem:[%s384 + $0x30] sm:$0xff]
        %v449 = vld [vmem:[%s384 + $0x38] sm:$0xff]
        %v450 = vld [vmem:[%s384 + $0x40] sm:$0xff]
        %v451 = vld [vmem:[%s384 + $0x48] sm:$0xff]
        %v452 = vld [vmem:[%s384 + $0x50] sm:$0xff]
        %v453 = vld [vmem:[%s384 + $0x58] sm:$0xff]
        %v454 = vld [vmem:[%s384 + $0x60] sm:$0xff]
        %v455 = vld [vmem:[%s384 + $0x68] sm:$0xff]
        %v456 = vld [vmem:[%s384 + $0x70] sm:$0xff]
        %v457 = vld [vmem:[%s384 + $0x78] sm:$0xff]
        %v458 = vld [vmem:[%s384 + $0x80] sm:$0xff]
        %v459 = vld [vmem:[%s384 + $0x88] sm:$0xff]
        %v460 = vld [vmem:[%s384 + $0x90] sm:$0xff]
        %v461 = vld [vmem:[%s384 + $0x98] sm:$0xff]
        %v462 = vld [vmem:[%s384 + $0xa0] sm:$0xff]
        %v463 = vld [vmem:[%s384 + $0xa8] sm:$0xff]
        %v464 = vld [vmem:[%s384 + $0xb0] sm:$0xff]
        %v465 = vld [vmem:[%s384 + $0xb8] sm:$0xff]
        %v466 = vld [vmem:[%s384 + $0xc0] sm:$0xff]
        %v467 = vld [vmem:[%s384 + $0xc8] sm:$0xff]
        %v468 = vld [vmem:[%s384 + $0xd0] sm:$0xff]
        %v469 = vld [vmem:[%s384 + $0xd8] sm:$0xff]
        %v470 = vld [vmem:[%s384 + $0xe0] sm:$0xff]
        %v471 = vld [vmem:[%s384 + $0xe8] sm:$0xff]
        %v472 = vld [vmem:[%s384 + $0xf0] sm:$0xff]
        %v473 = vld [vmem:[%s384 + $0xf8] sm:$0xff]
        %s474 = scalar_lea.vmem [#allocation2], 24
        %vm475 = vcmask 31744
        %476 = vst.msk [vmem:[%s474 + $0x1] sm:$0xff] %vm475, %v442
        %477 = vst.msk [vmem:[%s474 + $0x9] sm:$0xff] %vm475, %v443
        %478 = vst.msk [vmem:[%s474 + $0x19] sm:$0xff] %vm475, %v444
        %479 = vst.msk [vmem:[%s474 + $0x21] sm:$0xff] %vm475, %v445
        %480 = vst.msk [vmem:[%s474 + $0x31] sm:$0xff] %vm475, %v446
        %481 = vst.msk [vmem:[%s474 + $0x39] sm:$0xff] %vm475, %v447
        %482 = vst.msk [vmem:[%s474 + $0x49] sm:$0xff] %vm475, %v448
        %483 = vst.msk [vmem:[%s474 + $0x51] sm:$0xff] %vm475, %v449
        %484 = vst.msk [vmem:[%s474 + $0x61] sm:$0xff] %vm475, %v450
        %485 = vst.msk [vmem:[%s474 + $0x69] sm:$0xff] %vm475, %v451
        %486 = vst.msk [vmem:[%s474 + $0x79] sm:$0xff] %vm475, %v452
        %487 = vst.msk [vmem:[%s474 + $0x81] sm:$0xff] %vm475, %v453
        %488 = vst.msk [vmem:[%s474 + $0x91] sm:$0xff] %vm475, %v454
        %489 = vst.msk [vmem:[%s474 + $0x99] sm:$0xff] %vm475, %v455
        %490 = vst.msk [vmem:[%s474 + $0xa9] sm:$0xff] %vm475, %v456
        %491 = vst.msk [vmem:[%s474 + $0xb1] sm:$0xff] %vm475, %v457
        %492 = vst.msk [vmem:[%s474 + $0xc1] sm:$0xff] %vm475, %v458
        %493 = vst.msk [vmem:[%s474 + $0xc9] sm:$0xff] %vm475, %v459
        %494 = vst.msk [vmem:[%s474 + $0xd9] sm:$0xff] %vm475, %v460
        %495 = vst.msk [vmem:[%s474 + $0xe1] sm:$0xff] %vm475, %v461
        %496 = vst.msk [vmem:[%s474 + $0xf1] sm:$0xff] %vm475, %v462
        %497 = vst.msk [vmem:[%s474 + $0xf9] sm:$0xff] %vm475, %v463
        %498 = vst.msk [vmem:[%s474 + $0x109] sm:$0xff] %vm475, %v464
        %499 = vst.msk [vmem:[%s474 + $0x111] sm:$0xff] %vm475, %v465
        %500 = vst.msk [vmem:[%s474 + $0x121] sm:$0xff] %vm475, %v466
        %501 = vst.msk [vmem:[%s474 + $0x129] sm:$0xff] %vm475, %v467
        %502 = vst.msk [vmem:[%s474 + $0x139] sm:$0xff] %vm475, %v468
        %503 = vst.msk [vmem:[%s474 + $0x141] sm:$0xff] %vm475, %v469
        %504 = vst.msk [vmem:[%s474 + $0x151] sm:$0xff] %vm475, %v470
        %505 = vst.msk [vmem:[%s474 + $0x159] sm:$0xff] %vm475, %v471
        %506 = vst.msk [vmem:[%s474 + $0x169] sm:$0xff] %vm475, %v472
        %507 = vst.msk [vmem:[%s474 + $0x171] sm:$0xff] %vm475, %v473
        %v508 = vld [vmem:[%s1] sm:$0xf]
        %v509 = vld [vmem:[%s1 + $0x4] sm:$0xf]
        %v510 = vld [vmem:[%s1 + $0x8] sm:$0xf]
        %v511 = vld [vmem:[%s1 + $0xc] sm:$0xf]
        %v512 = vld [vmem:[%s1 + $0x10] sm:$0x3]
        %v513 = vld [vmem:[#allocation2] sm:$0xff]
        %v514 = vld [vmem:[#allocation2 + $0x8] sm:$0xff]
        %v515 = vld [vmem:[#allocation2 + $0x18] sm:$0xff]
        %v516 = vld [vmem:[#allocation2 + $0x20] sm:$0xff]
        %v517 = vld [vmem:[#allocation2 + $0x30] sm:$0xff]
        %v518 = vld [vmem:[#allocation2 + $0x38] sm:$0xff]
        %v519 = vld [vmem:[#allocation2 + $0x48] sm:$0xff]
        %v520 = vld [vmem:[#allocation2 + $0x50] sm:$0xff]
        %v521 = vld [vmem:[#allocation2 + $0x60] sm:$0xff]
        %v522 = vld [vmem:[#allocation2 + $0x68] sm:$0xff]
        %v523 = vld [vmem:[#allocation2 + $0x78] sm:$0xff]
        %v524 = vld [vmem:[#allocation2 + $0x80] sm:$0xff]
        %v525 = vld [vmem:[#allocation2 + $0x90] sm:$0xff]
        %v526 = vld [vmem:[#allocation2 + $0x98] sm:$0xff]
        %v527 = vld [vmem:[#allocation2 + $0xa8] sm:$0xff]
        %v528 = vld [vmem:[#allocation2 + $0xb0] sm:$0xff]
        %v529 = vld [vmem:[#allocation2 + $0xc0] sm:$0xff]
        %v530 = vld [vmem:[#allocation2 + $0xc8] sm:$0xff]
        %v531 = vld [vmem:[#allocation2 + $0xd8] sm:$0xff]
        %v532 = vld [vmem:[#allocation2 + $0xe0] sm:$0xff]
        %v533 = vld [vmem:[#allocation2 + $0xf0] sm:$0xff]
        %v534 = vld [vmem:[#allocation2 + $0xf8] sm:$0xff]
        %v535 = vld [vmem:[#allocation2 + $0x108] sm:$0xff]
        %v536 = vld [vmem:[#allocation2 + $0x110] sm:$0xff]
        %v537 = vld [vmem:[#allocation2 + $0x120] sm:$0xff]
        %v538 = vld [vmem:[#allocation2 + $0x128] sm:$0xff]
        %v539 = vld [vmem:[#allocation2 + $0x138] sm:$0xff]
        %v540 = vld [vmem:[#allocation2 + $0x140] sm:$0xff]
        %v541 = vld [vmem:[#allocation2 + $0x150] sm:$0xff]
        %v542 = vld [vmem:[#allocation2 + $0x158] sm:$0xff]
        %v543 = vld [vmem:[#allocation2 + $0x168] sm:$0xff]
        %v544 = vld [vmem:[#allocation2 + $0x170] sm:$0xff]
        %v545 = vld [vmem:[#allocation2 + $0x1] sm:$0xff]
        %v546 = vld [vmem:[#allocation2 + $0x9] sm:$0xff]
        %v547 = vld [vmem:[#allocation2 + $0x19] sm:$0xff]
        %v548 = vld [vmem:[#allocation2 + $0x21] sm:$0xff]
        %v549 = vld [vmem:[#allocation2 + $0x31] sm:$0xff]
        %v550 = vld [vmem:[#allocation2 + $0x39] sm:$0xff]
        %v551 = vld [vmem:[#allocation2 + $0x49] sm:$0xff]
        %v552 = vld [vmem:[#allocation2 + $0x51] sm:$0xff]
        %v553 = vld [vmem:[#allocation2 + $0x61] sm:$0xff]
        %v554 = vld [vmem:[#allocation2 + $0x69] sm:$0xff]
        %v555 = vld [vmem:[#allocation2 + $0x79] sm:$0xff]
        %v556 = vld [vmem:[#allocation2 + $0x81] sm:$0xff]
        %v557 = vld [vmem:[#allocation2 + $0x91] sm:$0xff]
        %v558 = vld [vmem:[#allocation2 + $0x99] sm:$0xff]
        %v559 = vld [vmem:[#allocation2 + $0xa9] sm:$0xff]
        %v560 = vld [vmem:[#allocation2 + $0xb1] sm:$0xff]
        %v561 = vld [vmem:[#allocation2 + $0xc1] sm:$0xff]
        %v562 = vld [vmem:[#allocation2 + $0xc9] sm:$0xff]
        %v563 = vld [vmem:[#allocation2 + $0xd9] sm:$0xff]
        %v564 = vld [vmem:[#allocation2 + $0xe1] sm:$0xff]
        %v565 = vld [vmem:[#allocation2 + $0xf1] sm:$0xff]
        %v566 = vld [vmem:[#allocation2 + $0xf9] sm:$0xff]
        %v567 = vld [vmem:[#allocation2 + $0x109] sm:$0xff]
        %v568 = vld [vmem:[#allocation2 + $0x111] sm:$0xff]
        %v569 = vld [vmem:[#allocation2 + $0x121] sm:$0xff]
        %v570 = vld [vmem:[#allocation2 + $0x129] sm:$0xff]
        %v571 = vld [vmem:[#allocation2 + $0x139] sm:$0xff]
        %v572 = vld [vmem:[#allocation2 + $0x141] sm:$0xff]
        %v573 = vld [vmem:[#allocation2 + $0x151] sm:$0xff]
        %v574 = vld [vmem:[#allocation2 + $0x159] sm:$0xff]
        %v575 = vld [vmem:[#allocation2 + $0x169] sm:$0xff]
        %v576 = vld [vmem:[#allocation2 + $0x171] sm:$0xff]
        %v577 = vld [vmem:[#allocation2 + $0x2] sm:$0xff]
        %v578 = vld [vmem:[#allocation2 + $0xa] sm:$0xff]
        %v579 = vld [vmem:[#allocation2 + $0x1a] sm:$0xff]
        %v580 = vld [vmem:[#allocation2 + $0x22] sm:$0xff]
        %v581 = vld [vmem:[#allocation2 + $0x32] sm:$0xff]
        %v582 = vld [vmem:[#allocation2 + $0x3a] sm:$0xff]
        %v583 = vld [vmem:[#allocation2 + $0x4a] sm:$0xff]
        %v584 = vld [vmem:[#allocation2 + $0x52] sm:$0xff]
        %v585 = vld [vmem:[#allocation2 + $0x62] sm:$0xff]
        %v586 = vld [vmem:[#allocation2 + $0x6a] sm:$0xff]
        %v587 = vld [vmem:[#allocation2 + $0x7a] sm:$0xff]
        %v588 = vld [vmem:[#allocation2 + $0x82] sm:$0xff]
        %v589 = vld [vmem:[#allocation2 + $0x92] sm:$0xff]
        %v590 = vld [vmem:[#allocation2 + $0x9a] sm:$0xff]
        %v591 = vld [vmem:[#allocation2 + $0xaa] sm:$0xff]
        %v592 = vld [vmem:[#allocation2 + $0xb2] sm:$0xff]
        %v593 = vld [vmem:[#allocation2 + $0xc2] sm:$0xff]
        %v594 = vld [vmem:[#allocation2 + $0xca] sm:$0xff]
        %v595 = vld [vmem:[#allocation2 + $0xda] sm:$0xff]
        %v596 = vld [vmem:[#allocation2 + $0xe2] sm:$0xff]
        %v597 = vld [vmem:[#allocation2 + $0xf2] sm:$0xff]
        %v598 = vld [vmem:[#allocation2 + $0xfa] sm:$0xff]
        %v599 = vld [vmem:[#allocation2 + $0x10a] sm:$0xff]
        %v600 = vld [vmem:[#allocation2 + $0x112] sm:$0xff]
        %v601 = vld [vmem:[#allocation2 + $0x122] sm:$0xff]
        %v602 = vld [vmem:[#allocation2 + $0x12a] sm:$0xff]
        %v603 = vld [vmem:[#allocation2 + $0x13a] sm:$0xff]
        %v604 = vld [vmem:[#allocation2 + $0x142] sm:$0xff]
        %v605 = vld [vmem:[#allocation2 + $0x152] sm:$0xff]
        %v606 = vld [vmem:[#allocation2 + $0x15a] sm:$0xff]
        %v607 = vld [vmem:[#allocation2 + $0x16a] sm:$0xff]
        %v608 = vld [vmem:[#allocation2 + $0x172] sm:$0xff]
        %v609 = vld [vmem:[%s474] sm:$0xff]
        %v610 = vld [vmem:[%s474 + $0x8] sm:$0xff]
        %v611 = vld [vmem:[%s474 + $0x18] sm:$0xff]
        %v612 = vld [vmem:[%s474 + $0x20] sm:$0xff]
        %v613 = vld [vmem:[%s474 + $0x30] sm:$0xff]
        %v614 = vld [vmem:[%s474 + $0x38] sm:$0xff]
        %v615 = vld [vmem:[%s474 + $0x48] sm:$0xff]
        %v616 = vld [vmem:[%s474 + $0x50] sm:$0xff]
        %v617 = vld [vmem:[%s474 + $0x60] sm:$0xff]
        %v618 = vld [vmem:[%s474 + $0x68] sm:$0xff]
        %v619 = vld [vmem:[%s474 + $0x78] sm:$0xff]
        %v620 = vld [vmem:[%s474 + $0x80] sm:$0xff]
        %v621 = vld [vmem:[%s474 + $0x90] sm:$0xff]
        %v622 = vld [vmem:[%s474 + $0x98] sm:$0xff]
        %v623 = vld [vmem:[%s474 + $0xa8] sm:$0xff]
        %v624 = vld [vmem:[%s474 + $0xb0] sm:$0xff]
        %v625 = vld [vmem:[%s474 + $0xc0] sm:$0xff]
        %v626 = vld [vmem:[%s474 + $0xc8] sm:$0xff]
        %v627 = vld [vmem:[%s474 + $0xd8] sm:$0xff]
        %v628 = vld [vmem:[%s474 + $0xe0] sm:$0xff]
        %v629 = vld [vmem:[%s474 + $0xf0] sm:$0xff]
        %v630 = vld [vmem:[%s474 + $0xf8] sm:$0xff]
        %v631 = vld [vmem:[%s474 + $0x108] sm:$0xff]
        %v632 = vld [vmem:[%s474 + $0x110] sm:$0xff]
        %v633 = vld [vmem:[%s474 + $0x120] sm:$0xff]
        %v634 = vld [vmem:[%s474 + $0x128] sm:$0xff]
        %v635 = vld [vmem:[%s474 + $0x138] sm:$0xff]
        %v636 = vld [vmem:[%s474 + $0x140] sm:$0xff]
        %v637 = vld [vmem:[%s474 + $0x150] sm:$0xff]
        %v638 = vld [vmem:[%s474 + $0x158] sm:$0xff]
        %v639 = vld [vmem:[%s474 + $0x168] sm:$0xff]
        %v640 = vld [vmem:[%s474 + $0x170] sm:$0xff]
        %v641 = vld [vmem:[%s474 + $0x1] sm:$0xff]
        %v642 = vld [vmem:[%s474 + $0x9] sm:$0xff]
        %v643 = vld [vmem:[%s474 + $0x19] sm:$0xff]
        %v644 = vld [vmem:[%s474 + $0x21] sm:$0xff]
        %v645 = vld [vmem:[%s474 + $0x31] sm:$0xff]
        %v646 = vld [vmem:[%s474 + $0x39] sm:$0xff]
        %v647 = vld [vmem:[%s474 + $0x49] sm:$0xff]
        %v648 = vld [vmem:[%s474 + $0x51] sm:$0xff]
        %v649 = vld [vmem:[%s474 + $0x61] sm:$0xff]
        %v650 = vld [vmem:[%s474 + $0x69] sm:$0xff]
        %v651 = vld [vmem:[%s474 + $0x79] sm:$0xff]
        %v652 = vld [vmem:[%s474 + $0x81] sm:$0xff]
        %v653 = vld [vmem:[%s474 + $0x91] sm:$0xff]
        %v654 = vld [vmem:[%s474 + $0x99] sm:$0xff]
        %v655 = vld [vmem:[%s474 + $0xa9] sm:$0xff]
        %v656 = vld [vmem:[%s474 + $0xb1] sm:$0xff]
        %v657 = vld [vmem:[%s474 + $0xc1] sm:$0xff]
        %v658 = vld [vmem:[%s474 + $0xc9] sm:$0xff]
        %v659 = vld [vmem:[%s474 + $0xd9] sm:$0xff]
        %v660 = vld [vmem:[%s474 + $0xe1] sm:$0xff]
        %v661 = vld [vmem:[%s474 + $0xf1] sm:$0xff]
        %v662 = vld [vmem:[%s474 + $0xf9] sm:$0xff]
        %v663 = vld [vmem:[%s474 + $0x109] sm:$0xff]
        %v664 = vld [vmem:[%s474 + $0x111] sm:$0xff]
        %v665 = vld [vmem:[%s474 + $0x121] sm:$0xff]
        %v666 = vld [vmem:[%s474 + $0x129] sm:$0xff]
        %v667 = vld [vmem:[%s474 + $0x139] sm:$0xff]
        %v668 = vld [vmem:[%s474 + $0x141] sm:$0xff]
        %v669 = vld [vmem:[%s474 + $0x151] sm:$0xff]
        %v670 = vld [vmem:[%s474 + $0x159] sm:$0xff]
        %v671 = vld [vmem:[%s474 + $0x169] sm:$0xff]
        %v672 = vld [vmem:[%s474 + $0x171] sm:$0xff]
        %v673 = vld [vmem:[%s474 + $0x2] sm:$0xff]
        %v674 = vld [vmem:[%s474 + $0xa] sm:$0xff]
        %v675 = vld [vmem:[%s474 + $0x1a] sm:$0xff]
        %v676 = vld [vmem:[%s474 + $0x22] sm:$0xff]
        %v677 = vld [vmem:[%s474 + $0x32] sm:$0xff]
        %v678 = vld [vmem:[%s474 + $0x3a] sm:$0xff]
        %v679 = vld [vmem:[%s474 + $0x4a] sm:$0xff]
        %v680 = vld [vmem:[%s474 + $0x52] sm:$0xff]
        %v681 = vld [vmem:[%s474 + $0x62] sm:$0xff]
        %v682 = vld [vmem:[%s474 + $0x6a] sm:$0xff]
        %v683 = vld [vmem:[%s474 + $0x7a] sm:$0xff]
        %v684 = vld [vmem:[%s474 + $0x82] sm:$0xff]
        %v685 = vld [vmem:[%s474 + $0x92] sm:$0xff]
        %v686 = vld [vmem:[%s474 + $0x9a] sm:$0xff]
        %v687 = vld [vmem:[%s474 + $0xaa] sm:$0xff]
        %v688 = vld [vmem:[%s474 + $0xb2] sm:$0xff]
        %v689 = vld [vmem:[%s474 + $0xc2] sm:$0xff]
        %v690 = vld [vmem:[%s474 + $0xca] sm:$0xff]
        %v691 = vld [vmem:[%s474 + $0xda] sm:$0xff]
        %v692 = vld [vmem:[%s474 + $0xe2] sm:$0xff]
        %v693 = vld [vmem:[%s474 + $0xf2] sm:$0xff]
        %v694 = vld [vmem:[%s474 + $0xfa] sm:$0xff]
        %v695 = vld [vmem:[%s474 + $0x10a] sm:$0xff]
        %v696 = vld [vmem:[%s474 + $0x112] sm:$0xff]
        %v697 = vld [vmem:[%s474 + $0x122] sm:$0xff]
        %v698 = vld [vmem:[%s474 + $0x12a] sm:$0xff]
        %v699 = vld [vmem:[%s474 + $0x13a] sm:$0xff]
        %v700 = vld [vmem:[%s474 + $0x142] sm:$0xff]
        %v701 = vld [vmem:[%s474 + $0x152] sm:$0xff]
        %v702 = vld [vmem:[%s474 + $0x15a] sm:$0xff]
        %v703 = vld [vmem:[%s474 + $0x16a] sm:$0xff]
        %v704 = vld [vmem:[%s474 + $0x172] sm:$0xff]
        %s705 = scalar_lea.vmem [#allocation2], 48
        %v706 = vld [vmem:[%s705] sm:$0xff]
        %v707 = vld [vmem:[%s705 + $0x8] sm:$0xff]
        %v708 = vld [vmem:[%s705 + $0x18] sm:$0xff]
        %v709 = vld [vmem:[%s705 + $0x20] sm:$0xff]
        %v710 = vld [vmem:[%s705 + $0x30] sm:$0xff]
        %v711 = vld [vmem:[%s705 + $0x38] sm:$0xff]
        %v712 = vld [vmem:[%s705 + $0x48] sm:$0xff]
        %v713 = vld [vmem:[%s705 + $0x50] sm:$0xff]
        %v714 = vld [vmem:[%s705 + $0x60] sm:$0xff]
        %v715 = vld [vmem:[%s705 + $0x68] sm:$0xff]
        %v716 = vld [vmem:[%s705 + $0x78] sm:$0xff]
        %v717 = vld [vmem:[%s705 + $0x80] sm:$0xff]
        %v718 = vld [vmem:[%s705 + $0x90] sm:$0xff]
        %v719 = vld [vmem:[%s705 + $0x98] sm:$0xff]
        %v720 = vld [vmem:[%s705 + $0xa8] sm:$0xff]
        %v721 = vld [vmem:[%s705 + $0xb0] sm:$0xff]
        %v722 = vld [vmem:[%s705 + $0xc0] sm:$0xff]
        %v723 = vld [vmem:[%s705 + $0xc8] sm:$0xff]
        %v724 = vld [vmem:[%s705 + $0xd8] sm:$0xff]
        %v725 = vld [vmem:[%s705 + $0xe0] sm:$0xff]
        %v726 = vld [vmem:[%s705 + $0xf0] sm:$0xff]
        %v727 = vld [vmem:[%s705 + $0xf8] sm:$0xff]
        %v728 = vld [vmem:[%s705 + $0x108] sm:$0xff]
        %v729 = vld [vmem:[%s705 + $0x110] sm:$0xff]
        %v730 = vld [vmem:[%s705 + $0x120] sm:$0xff]
        %v731 = vld [vmem:[%s705 + $0x128] sm:$0xff]
        %v732 = vld [vmem:[%s705 + $0x138] sm:$0xff]
        %v733 = vld [vmem:[%s705 + $0x140] sm:$0xff]
        %v734 = vld [vmem:[%s705 + $0x150] sm:$0xff]
        %v735 = vld [vmem:[%s705 + $0x158] sm:$0xff]
        %v736 = vld [vmem:[%s705 + $0x168] sm:$0xff]
        %v737 = vld [vmem:[%s705 + $0x170] sm:$0xff]
        %v738 = vld [vmem:[%s705 + $0x1] sm:$0xff]
        %v739 = vld [vmem:[%s705 + $0x9] sm:$0xff]
        %v740 = vld [vmem:[%s705 + $0x19] sm:$0xff]
        %v741 = vld [vmem:[%s705 + $0x21] sm:$0xff]
        %v742 = vld [vmem:[%s705 + $0x31] sm:$0xff]
        %v743 = vld [vmem:[%s705 + $0x39] sm:$0xff]
        %v744 = vld [vmem:[%s705 + $0x49] sm:$0xff]
        %v745 = vld [vmem:[%s705 + $0x51] sm:$0xff]
        %v746 = vld [vmem:[%s705 + $0x61] sm:$0xff]
        %v747 = vld [vmem:[%s705 + $0x69] sm:$0xff]
        %v748 = vld [vmem:[%s705 + $0x79] sm:$0xff]
        %v749 = vld [vmem:[%s705 + $0x81] sm:$0xff]
        %v750 = vld [vmem:[%s705 + $0x91] sm:$0xff]
        %v751 = vld [vmem:[%s705 + $0x99] sm:$0xff]
        %v752 = vld [vmem:[%s705 + $0xa9] sm:$0xff]
        %v753 = vld [vmem:[%s705 + $0xb1] sm:$0xff]
        %v754 = vld [vmem:[%s705 + $0xc1] sm:$0xff]
        %v755 = vld [vmem:[%s705 + $0xc9] sm:$0xff]
        %v756 = vld [vmem:[%s705 + $0xd9] sm:$0xff]
        %v757 = vld [vmem:[%s705 + $0xe1] sm:$0xff]
        %v758 = vld [vmem:[%s705 + $0xf1] sm:$0xff]
        %v759 = vld [vmem:[%s705 + $0xf9] sm:$0xff]
        %v760 = vld [vmem:[%s705 + $0x109] sm:$0xff]
        %v761 = vld [vmem:[%s705 + $0x111] sm:$0xff]
        %v762 = vld [vmem:[%s705 + $0x121] sm:$0xff]
        %v763 = vld [vmem:[%s705 + $0x129] sm:$0xff]
        %v764 = vld [vmem:[%s705 + $0x139] sm:$0xff]
        %v765 = vld [vmem:[%s705 + $0x141] sm:$0xff]
        %v766 = vld [vmem:[%s705 + $0x151] sm:$0xff]
        %v767 = vld [vmem:[%s705 + $0x159] sm:$0xff]
        %v768 = vld [vmem:[%s705 + $0x169] sm:$0xff]
        %v769 = vld [vmem:[%s705 + $0x171] sm:$0xff]
        %v770 = vld [vmem:[%s705 + $0x2] sm:$0xff]
        %v771 = vld [vmem:[%s705 + $0xa] sm:$0xff]
        %v772 = vld [vmem:[%s705 + $0x1a] sm:$0xff]
        %v773 = vld [vmem:[%s705 + $0x22] sm:$0xff]
        %v774 = vld [vmem:[%s705 + $0x32] sm:$0xff]
        %v775 = vld [vmem:[%s705 + $0x3a] sm:$0xff]
        %v776 = vld [vmem:[%s705 + $0x4a] sm:$0xff]
        %v777 = vld [vmem:[%s705 + $0x52] sm:$0xff]
        %v778 = vld [vmem:[%s705 + $0x62] sm:$0xff]
        %v779 = vld [vmem:[%s705 + $0x6a] sm:$0xff]
        %v780 = vld [vmem:[%s705 + $0x7a] sm:$0xff]
        %v781 = vld [vmem:[%s705 + $0x82] sm:$0xff]
        %v782 = vld [vmem:[%s705 + $0x92] sm:$0xff]
        %v783 = vld [vmem:[%s705 + $0x9a] sm:$0xff]
        %v784 = vld [vmem:[%s705 + $0xaa] sm:$0xff]
        %v785 = vld [vmem:[%s705 + $0xb2] sm:$0xff]
        %v786 = vld [vmem:[%s705 + $0xc2] sm:$0xff]
        %v787 = vld [vmem:[%s705 + $0xca] sm:$0xff]
        %v788 = vld [vmem:[%s705 + $0xda] sm:$0xff]
        %v789 = vld [vmem:[%s705 + $0xe2] sm:$0xff]
        %v790 = vld [vmem:[%s705 + $0xf2] sm:$0xff]
        %v791 = vld [vmem:[%s705 + $0xfa] sm:$0xff]
        %v792 = vld [vmem:[%s705 + $0x10a] sm:$0xff]
        %v793 = vld [vmem:[%s705 + $0x112] sm:$0xff]
        %v794 = vld [vmem:[%s705 + $0x122] sm:$0xff]
        %v795 = vld [vmem:[%s705 + $0x12a] sm:$0xff]
        %v796 = vld [vmem:[%s705 + $0x13a] sm:$0xff]
        %v797 = vld [vmem:[%s705 + $0x142] sm:$0xff]
        %v798 = vld [vmem:[%s705 + $0x152] sm:$0xff]
        %v799 = vld [vmem:[%s705 + $0x15a] sm:$0xff]
        %v800 = vld [vmem:[%s705 + $0x16a] sm:$0xff]
        %v801 = vld [vmem:[%s705 + $0x172] sm:$0xff]
        %834 = vrot.lane.b32.xlu0 %v545, 4
        %v835 = vpop.permute.xlu0 %834
        %836 = vrot.lane.b32.xlu0 %v546, 4
        %v837 = vpop.permute.xlu0 %836
        %838 = vrot.lane.b32.xlu0 %v547, 4
        %v839 = vpop.permute.xlu0 %838
        %840 = vrot.lane.b32.xlu0 %v548, 4
        %v841 = vpop.permute.xlu0 %840
        %842 = vrot.lane.b32.xlu0 %v549, 4
        %v843 = vpop.permute.xlu0 %842
        %844 = vrot.lane.b32.xlu0 %v550, 4
        %v845 = vpop.permute.xlu0 %844
        %846 = vrot.lane.b32.xlu0 %v551, 4
        %v847 = vpop.permute.xlu0 %846
        %848 = vrot.lane.b32.xlu0 %v552, 4
        %v849 = vpop.permute.xlu0 %848
        %850 = vrot.lane.b32.xlu0 %v553, 4
        %v851 = vpop.permute.xlu0 %850
        %852 = vrot.lane.b32.xlu0 %v554, 4
        %v853 = vpop.permute.xlu0 %852
        %854 = vrot.lane.b32.xlu0 %v555, 4
        %v855 = vpop.permute.xlu0 %854
        %856 = vrot.lane.b32.xlu0 %v556, 4
        %v857 = vpop.permute.xlu0 %856
        %858 = vrot.lane.b32.xlu0 %v557, 4
        %v859 = vpop.permute.xlu0 %858
        %860 = vrot.lane.b32.xlu0 %v558, 4
        %v861 = vpop.permute.xlu0 %860
        %862 = vrot.lane.b32.xlu0 %v559, 4
        %v863 = vpop.permute.xlu0 %862
        %864 = vrot.lane.b32.xlu0 %v560, 4
        %v865 = vpop.permute.xlu0 %864
        %866 = vrot.lane.b32.xlu0 %v561, 4
        %v867 = vpop.permute.xlu0 %866
        %868 = vrot.lane.b32.xlu0 %v562, 4
        %v869 = vpop.permute.xlu0 %868
        %870 = vrot.lane.b32.xlu0 %v563, 4
        %v871 = vpop.permute.xlu0 %870
        %872 = vrot.lane.b32.xlu0 %v564, 4
        %v873 = vpop.permute.xlu0 %872
        %874 = vrot.lane.b32.xlu0 %v565, 4
        %v875 = vpop.permute.xlu0 %874
        %876 = vrot.lane.b32.xlu0 %v566, 4
        %v877 = vpop.permute.xlu0 %876
        %878 = vrot.lane.b32.xlu0 %v567, 4
        %v879 = vpop.permute.xlu0 %878
        %880 = vrot.lane.b32.xlu0 %v568, 4
        %v881 = vpop.permute.xlu0 %880
        %882 = vrot.lane.b32.xlu0 %v569, 4
        %v883 = vpop.permute.xlu0 %882
        %884 = vrot.lane.b32.xlu0 %v570, 4
        %v885 = vpop.permute.xlu0 %884
        %886 = vrot.lane.b32.xlu0 %v571, 4
        %v887 = vpop.permute.xlu0 %886
        %888 = vrot.lane.b32.xlu0 %v572, 4
        %v889 = vpop.permute.xlu0 %888
        %890 = vrot.lane.b32.xlu0 %v573, 4
        %v891 = vpop.permute.xlu0 %890
        %892 = vrot.lane.b32.xlu0 %v574, 4
        %v893 = vpop.permute.xlu0 %892
        %894 = vrot.lane.b32.xlu0 %v575, 4
        %v895 = vpop.permute.xlu0 %894
        %896 = vrot.lane.b32.xlu0 %v576, 4
        %v897 = vpop.permute.xlu0 %896
        %962 = vrot.lane.b32.xlu0 %v577, 8
        %v963 = vpop.permute.xlu0 %962
        %964 = vrot.lane.b32.xlu0 %v578, 8
        %v965 = vpop.permute.xlu0 %964
        %966 = vrot.lane.b32.xlu0 %v579, 8
        %v967 = vpop.permute.xlu0 %966
        %968 = vrot.lane.b32.xlu0 %v580, 8
        %v969 = vpop.permute.xlu0 %968
        %970 = vrot.lane.b32.xlu0 %v581, 8
        %v971 = vpop.permute.xlu0 %970
        %972 = vrot.lane.b32.xlu0 %v582, 8
        %v973 = vpop.permute.xlu0 %972
        %974 = vrot.lane.b32.xlu0 %v583, 8
        %v975 = vpop.permute.xlu0 %974
        %976 = vrot.lane.b32.xlu0 %v584, 8
        %v977 = vpop.permute.xlu0 %976
        %978 = vrot.lane.b32.xlu0 %v585, 8
        %v979 = vpop.permute.xlu0 %978
        %980 = vrot.lane.b32.xlu0 %v586, 8
        %v981 = vpop.permute.xlu0 %980
        %982 = vrot.lane.b32.xlu0 %v587, 8
        %v983 = vpop.permute.xlu0 %982
        %984 = vrot.lane.b32.xlu0 %v588, 8
        %v985 = vpop.permute.xlu0 %984
        %986 = vrot.lane.b32.xlu0 %v589, 8
        %v987 = vpop.permute.xlu0 %986
        %988 = vrot.lane.b32.xlu0 %v590, 8
        %v989 = vpop.permute.xlu0 %988
        %990 = vrot.lane.b32.xlu0 %v591, 8
        %v991 = vpop.permute.xlu0 %990
        %992 = vrot.lane.b32.xlu0 %v592, 8
        %v993 = vpop.permute.xlu0 %992
        %994 = vrot.lane.b32.xlu0 %v593, 8
        %v995 = vpop.permute.xlu0 %994
        %996 = vrot.lane.b32.xlu0 %v594, 8
        %v997 = vpop.permute.xlu0 %996
        %998 = vrot.lane.b32.xlu0 %v595, 8
        %v999 = vpop.permute.xlu0 %998
        %1000 = vrot.lane.b32.xlu0 %v596, 8
        %v1001 = vpop.permute.xlu0 %1000
        %1002 = vrot.lane.b32.xlu0 %v597, 8
        %v1003 = vpop.permute.xlu0 %1002
        %1004 = vrot.lane.b32.xlu0 %v598, 8
        %v1005 = vpop.permute.xlu0 %1004
        %1006 = vrot.lane.b32.xlu0 %v599, 8
        %v1007 = vpop.permute.xlu0 %1006
        %1008 = vrot.lane.b32.xlu0 %v600, 8
        %v1009 = vpop.permute.xlu0 %1008
        %1010 = vrot.lane.b32.xlu0 %v601, 8
        %v1011 = vpop.permute.xlu0 %1010
        %1012 = vrot.lane.b32.xlu0 %v602, 8
        %v1013 = vpop.permute.xlu0 %1012
        %1014 = vrot.lane.b32.xlu0 %v603, 8
        %v1015 = vpop.permute.xlu0 %1014
        %1016 = vrot.lane.b32.xlu0 %v604, 8
        %v1017 = vpop.permute.xlu0 %1016
        %1018 = vrot.lane.b32.xlu0 %v605, 8
        %v1019 = vpop.permute.xlu0 %1018
        %1020 = vrot.lane.b32.xlu0 %v606, 8
        %v1021 = vpop.permute.xlu0 %1020
        %1022 = vrot.lane.b32.xlu0 %v607, 8
        %v1023 = vpop.permute.xlu0 %1022
        %1024 = vrot.lane.b32.xlu0 %v608, 8
        %v1025 = vpop.permute.xlu0 %1024
        %1090 = vrot.lane.b32.xlu0 %v609, 12
        %v1091 = vpop.permute.xlu0 %1090
        %1092 = vrot.lane.b32.xlu0 %v610, 12
        %v1093 = vpop.permute.xlu0 %1092
        %1094 = vrot.lane.b32.xlu0 %v611, 12
        %v1095 = vpop.permute.xlu0 %1094
        %1096 = vrot.lane.b32.xlu0 %v612, 12
        %v1097 = vpop.permute.xlu0 %1096
        %1098 = vrot.lane.b32.xlu0 %v613, 12
        %v1099 = vpop.permute.xlu0 %1098
        %1100 = vrot.lane.b32.xlu0 %v614, 12
        %v1101 = vpop.permute.xlu0 %1100
        %1102 = vrot.lane.b32.xlu0 %v615, 12
        %v1103 = vpop.permute.xlu0 %1102
        %1104 = vrot.lane.b32.xlu0 %v616, 12
        %v1105 = vpop.permute.xlu0 %1104
        %1106 = vrot.lane.b32.xlu0 %v617, 12
        %v1107 = vpop.permute.xlu0 %1106
        %1108 = vrot.lane.b32.xlu0 %v618, 12
        %v1109 = vpop.permute.xlu0 %1108
        %1110 = vrot.lane.b32.xlu0 %v619, 12
        %v1111 = vpop.permute.xlu0 %1110
        %1112 = vrot.lane.b32.xlu0 %v620, 12
        %v1113 = vpop.permute.xlu0 %1112
        %1114 = vrot.lane.b32.xlu0 %v621, 12
        %v1115 = vpop.permute.xlu0 %1114
        %1116 = vrot.lane.b32.xlu0 %v622, 12
        %v1117 = vpop.permute.xlu0 %1116
        %1118 = vrot.lane.b32.xlu0 %v623, 12
        %v1119 = vpop.permute.xlu0 %1118
        %1120 = vrot.lane.b32.xlu0 %v624, 12
        %v1121 = vpop.permute.xlu0 %1120
        %1122 = vrot.lane.b32.xlu0 %v625, 12
        %v1123 = vpop.permute.xlu0 %1122
        %1124 = vrot.lane.b32.xlu0 %v626, 12
        %v1125 = vpop.permute.xlu0 %1124
        %1126 = vrot.lane.b32.xlu0 %v627, 12
        %v1127 = vpop.permute.xlu0 %1126
        %1128 = vrot.lane.b32.xlu0 %v628, 12
        %v1129 = vpop.permute.xlu0 %1128
        %1130 = vrot.lane.b32.xlu0 %v629, 12
        %v1131 = vpop.permute.xlu0 %1130
        %1132 = vrot.lane.b32.xlu0 %v630, 12
        %v1133 = vpop.permute.xlu0 %1132
        %1134 = vrot.lane.b32.xlu0 %v631, 12
        %v1135 = vpop.permute.xlu0 %1134
        %1136 = vrot.lane.b32.xlu0 %v632, 12
        %v1137 = vpop.permute.xlu0 %1136
        %1138 = vrot.lane.b32.xlu0 %v633, 12
        %v1139 = vpop.permute.xlu0 %1138
        %1140 = vrot.lane.b32.xlu0 %v634, 12
        %v1141 = vpop.permute.xlu0 %1140
        %1142 = vrot.lane.b32.xlu0 %v635, 12
        %v1143 = vpop.permute.xlu0 %1142
        %1144 = vrot.lane.b32.xlu0 %v636, 12
        %v1145 = vpop.permute.xlu0 %1144
        %1146 = vrot.lane.b32.xlu0 %v637, 12
        %v1147 = vpop.permute.xlu0 %1146
        %1148 = vrot.lane.b32.xlu0 %v638, 12
        %v1149 = vpop.permute.xlu0 %1148
        %1150 = vrot.lane.b32.xlu0 %v639, 12
        %v1151 = vpop.permute.xlu0 %1150
        %1152 = vrot.lane.b32.xlu0 %v640, 12
        %v1153 = vpop.permute.xlu0 %1152
        %1218 = vrot.lane.b32.xlu0 %v641, 16
        %v1219 = vpop.permute.xlu0 %1218
        %1220 = vrot.lane.b32.xlu0 %v642, 16
        %v1221 = vpop.permute.xlu0 %1220
        %1222 = vrot.lane.b32.xlu0 %v643, 16
        %v1223 = vpop.permute.xlu0 %1222
        %1224 = vrot.lane.b32.xlu0 %v644, 16
        %v1225 = vpop.permute.xlu0 %1224
        %1226 = vrot.lane.b32.xlu0 %v645, 16
        %v1227 = vpop.permute.xlu0 %1226
        %1228 = vrot.lane.b32.xlu0 %v646, 16
        %v1229 = vpop.permute.xlu0 %1228
        %1230 = vrot.lane.b32.xlu0 %v647, 16
        %v1231 = vpop.permute.xlu0 %1230
        %1232 = vrot.lane.b32.xlu0 %v648, 16
        %v1233 = vpop.permute.xlu0 %1232
        %1234 = vrot.lane.b32.xlu0 %v649, 16
        %v1235 = vpop.permute.xlu0 %1234
        %1236 = vrot.lane.b32.xlu0 %v650, 16
        %v1237 = vpop.permute.xlu0 %1236
        %1238 = vrot.lane.b32.xlu0 %v651, 16
        %v1239 = vpop.permute.xlu0 %1238
        %1240 = vrot.lane.b32.xlu0 %v652, 16
        %v1241 = vpop.permute.xlu0 %1240
        %1242 = vrot.lane.b32.xlu0 %v653, 16
        %v1243 = vpop.permute.xlu0 %1242
        %1244 = vrot.lane.b32.xlu0 %v654, 16
        %v1245 = vpop.permute.xlu0 %1244
        %1246 = vrot.lane.b32.xlu0 %v655, 16
        %v1247 = vpop.permute.xlu0 %1246
        %1248 = vrot.lane.b32.xlu0 %v656, 16
        %v1249 = vpop.permute.xlu0 %1248
        %1250 = vrot.lane.b32.xlu0 %v657, 16
        %v1251 = vpop.permute.xlu0 %1250
        %1252 = vrot.lane.b32.xlu0 %v658, 16
        %v1253 = vpop.permute.xlu0 %1252
        %1254 = vrot.lane.b32.xlu0 %v659, 16
        %v1255 = vpop.permute.xlu0 %1254
        %1256 = vrot.lane.b32.xlu0 %v660, 16
        %v1257 = vpop.permute.xlu0 %1256
        %1258 = vrot.lane.b32.xlu0 %v661, 16
        %v1259 = vpop.permute.xlu0 %1258
        %1260 = vrot.lane.b32.xlu0 %v662, 16
        %v1261 = vpop.permute.xlu0 %1260
        %1262 = vrot.lane.b32.xlu0 %v663, 16
        %v1263 = vpop.permute.xlu0 %1262
        %1264 = vrot.lane.b32.xlu0 %v664, 16
        %v1265 = vpop.permute.xlu0 %1264
        %1266 = vrot.lane.b32.xlu0 %v665, 16
        %v1267 = vpop.permute.xlu0 %1266
        %1268 = vrot.lane.b32.xlu0 %v666, 16
        %v1269 = vpop.permute.xlu0 %1268
        %1270 = vrot.lane.b32.xlu0 %v667, 16
        %v1271 = vpop.permute.xlu0 %1270
        %1272 = vrot.lane.b32.xlu0 %v668, 16
        %v1273 = vpop.permute.xlu0 %1272
        %1274 = vrot.lane.b32.xlu0 %v669, 16
        %v1275 = vpop.permute.xlu0 %1274
        %1276 = vrot.lane.b32.xlu0 %v670, 16
        %v1277 = vpop.permute.xlu0 %1276
        %1278 = vrot.lane.b32.xlu0 %v671, 16
        %v1279 = vpop.permute.xlu0 %1278
        %1280 = vrot.lane.b32.xlu0 %v672, 16
        %v1281 = vpop.permute.xlu0 %1280
        %1346 = vrot.lane.b32.xlu0 %v673, 20
        %v1347 = vpop.permute.xlu0 %1346
        %1348 = vrot.lane.b32.xlu0 %v674, 20
        %v1349 = vpop.permute.xlu0 %1348
        %1350 = vrot.lane.b32.xlu0 %v675, 20
        %v1351 = vpop.permute.xlu0 %1350
        %1352 = vrot.lane.b32.xlu0 %v676, 20
        %v1353 = vpop.permute.xlu0 %1352
        %1354 = vrot.lane.b32.xlu0 %v677, 20
        %v1355 = vpop.permute.xlu0 %1354
        %1356 = vrot.lane.b32.xlu0 %v678, 20
        %v1357 = vpop.permute.xlu0 %1356
        %1358 = vrot.lane.b32.xlu0 %v679, 20
        %v1359 = vpop.permute.xlu0 %1358
        %1360 = vrot.lane.b32.xlu0 %v680, 20
        %v1361 = vpop.permute.xlu0 %1360
        %1362 = vrot.lane.b32.xlu0 %v681, 20
        %v1363 = vpop.permute.xlu0 %1362
        %1364 = vrot.lane.b32.xlu0 %v682, 20
        %v1365 = vpop.permute.xlu0 %1364
        %1366 = vrot.lane.b32.xlu0 %v683, 20
        %v1367 = vpop.permute.xlu0 %1366
        %1368 = vrot.lane.b32.xlu0 %v684, 20
        %v1369 = vpop.permute.xlu0 %1368
        %1370 = vrot.lane.b32.xlu0 %v685, 20
        %v1371 = vpop.permute.xlu0 %1370
        %1372 = vrot.lane.b32.xlu0 %v686, 20
        %v1373 = vpop.permute.xlu0 %1372
        %1374 = vrot.lane.b32.xlu0 %v687, 20
        %v1375 = vpop.permute.xlu0 %1374
        %1376 = vrot.lane.b32.xlu0 %v688, 20
        %v1377 = vpop.permute.xlu0 %1376
        %1378 = vrot.lane.b32.xlu0 %v689, 20
        %v1379 = vpop.permute.xlu0 %1378
        %1380 = vrot.lane.b32.xlu0 %v690, 20
        %v1381 = vpop.permute.xlu0 %1380
        %1382 = vrot.lane.b32.xlu0 %v691, 20
        %v1383 = vpop.permute.xlu0 %1382
        %1384 = vrot.lane.b32.xlu0 %v692, 20
        %v1385 = vpop.permute.xlu0 %1384
        %1386 = vrot.lane.b32.xlu0 %v693, 20
        %v1387 = vpop.permute.xlu0 %1386
        %1388 = vrot.lane.b32.xlu0 %v694, 20
        %v1389 = vpop.permute.xlu0 %1388
        %1390 = vrot.lane.b32.xlu0 %v695, 20
        %v1391 = vpop.permute.xlu0 %1390
        %1392 = vrot.lane.b32.xlu0 %v696, 20
        %v1393 = vpop.permute.xlu0 %1392
        %1394 = vrot.lane.b32.xlu0 %v697, 20
        %v1395 = vpop.permute.xlu0 %1394
        %1396 = vrot.lane.b32.xlu0 %v698, 20
        %v1397 = vpop.permute.xlu0 %1396
        %1398 = vrot.lane.b32.xlu0 %v699, 20
        %v1399 = vpop.permute.xlu0 %1398
        %1400 = vrot.lane.b32.xlu0 %v700, 20
        %v1401 = vpop.permute.xlu0 %1400
        %1402 = vrot.lane.b32.xlu0 %v701, 20
        %v1403 = vpop.permute.xlu0 %1402
        %1404 = vrot.lane.b32.xlu0 %v702, 20
        %v1405 = vpop.permute.xlu0 %1404
        %1406 = vrot.lane.b32.xlu0 %v703, 20
        %v1407 = vpop.permute.xlu0 %1406
        %1408 = vrot.lane.b32.xlu0 %v704, 20
        %v1409 = vpop.permute.xlu0 %1408
        %1474 = vrot.lane.b32.xlu0 %v706, 24
        %v1475 = vpop.permute.xlu0 %1474
        %1476 = vrot.lane.b32.xlu0 %v707, 24
        %v1477 = vpop.permute.xlu0 %1476
        %1478 = vrot.lane.b32.xlu0 %v708, 24
        %v1479 = vpop.permute.xlu0 %1478
        %1480 = vrot.lane.b32.xlu0 %v709, 24
        %v1481 = vpop.permute.xlu0 %1480
        %1482 = vrot.lane.b32.xlu0 %v710, 24
        %v1483 = vpop.permute.xlu0 %1482
        %1484 = vrot.lane.b32.xlu0 %v711, 24
        %v1485 = vpop.permute.xlu0 %1484
        %1486 = vrot.lane.b32.xlu0 %v712, 24
        %v1487 = vpop.permute.xlu0 %1486
        %1488 = vrot.lane.b32.xlu0 %v713, 24
        %v1489 = vpop.permute.xlu0 %1488
        %1490 = vrot.lane.b32.xlu0 %v714, 24
        %v1491 = vpop.permute.xlu0 %1490
        %1492 = vrot.lane.b32.xlu0 %v715, 24
        %v1493 = vpop.permute.xlu0 %1492
        %1494 = vrot.lane.b32.xlu0 %v716, 24
        %v1495 = vpop.permute.xlu0 %1494
        %1496 = vrot.lane.b32.xlu0 %v717, 24
        %v1497 = vpop.permute.xlu0 %1496
        %1498 = vrot.lane.b32.xlu0 %v718, 24
        %v1499 = vpop.permute.xlu0 %1498
        %1500 = vrot.lane.b32.xlu0 %v719, 24
        %v1501 = vpop.permute.xlu0 %1500
        %1502 = vrot.lane.b32.xlu0 %v720, 24
        %v1503 = vpop.permute.xlu0 %1502
        %1504 = vrot.lane.b32.xlu0 %v721, 24
        %v1505 = vpop.permute.xlu0 %1504
        %1506 = vrot.lane.b32.xlu0 %v722, 24
        %v1507 = vpop.permute.xlu0 %1506
        %1508 = vrot.lane.b32.xlu0 %v723, 24
        %v1509 = vpop.permute.xlu0 %1508
        %1510 = vrot.lane.b32.xlu0 %v724, 24
        %v1511 = vpop.permute.xlu0 %1510
        %1512 = vrot.lane.b32.xlu0 %v725, 24
        %v1513 = vpop.permute.xlu0 %1512
        %1514 = vrot.lane.b32.xlu0 %v726, 24
        %v1515 = vpop.permute.xlu0 %1514
        %1516 = vrot.lane.b32.xlu0 %v727, 24
        %v1517 = vpop.permute.xlu0 %1516
        %1518 = vrot.lane.b32.xlu0 %v728, 24
        %v1519 = vpop.permute.xlu0 %1518
        %1520 = vrot.lane.b32.xlu0 %v729, 24
        %v1521 = vpop.permute.xlu0 %1520
        %1522 = vrot.lane.b32.xlu0 %v730, 24
        %v1523 = vpop.permute.xlu0 %1522
        %1524 = vrot.lane.b32.xlu0 %v731, 24
        %v1525 = vpop.permute.xlu0 %1524
        %1526 = vrot.lane.b32.xlu0 %v732, 24
        %v1527 = vpop.permute.xlu0 %1526
        %1528 = vrot.lane.b32.xlu0 %v733, 24
        %v1529 = vpop.permute.xlu0 %1528
        %1530 = vrot.lane.b32.xlu0 %v734, 24
        %v1531 = vpop.permute.xlu0 %1530
        %1532 = vrot.lane.b32.xlu0 %v735, 24
        %v1533 = vpop.permute.xlu0 %1532
        %1534 = vrot.lane.b32.xlu0 %v736, 24
        %v1535 = vpop.permute.xlu0 %1534
        %1536 = vrot.lane.b32.xlu0 %v737, 24
        %v1537 = vpop.permute.xlu0 %1536
        %1602 = vrot.lane.b32.xlu0 %v738, 28
        %v1603 = vpop.permute.xlu0 %1602
        %1604 = vrot.lane.b32.xlu0 %v739, 28
        %v1605 = vpop.permute.xlu0 %1604
        %1606 = vrot.lane.b32.xlu0 %v740, 28
        %v1607 = vpop.permute.xlu0 %1606
        %1608 = vrot.lane.b32.xlu0 %v741, 28
        %v1609 = vpop.permute.xlu0 %1608
        %1610 = vrot.lane.b32.xlu0 %v742, 28
        %v1611 = vpop.permute.xlu0 %1610
        %1612 = vrot.lane.b32.xlu0 %v743, 28
        %v1613 = vpop.permute.xlu0 %1612
        %1614 = vrot.lane.b32.xlu0 %v744, 28
        %v1615 = vpop.permute.xlu0 %1614
        %1616 = vrot.lane.b32.xlu0 %v745, 28
        %v1617 = vpop.permute.xlu0 %1616
        %1618 = vrot.lane.b32.xlu0 %v746, 28
        %v1619 = vpop.permute.xlu0 %1618
        %1620 = vrot.lane.b32.xlu0 %v747, 28
        %v1621 = vpop.permute.xlu0 %1620
        %1622 = vrot.lane.b32.xlu0 %v748, 28
        %v1623 = vpop.permute.xlu0 %1622
        %1624 = vrot.lane.b32.xlu0 %v749, 28
        %v1625 = vpop.permute.xlu0 %1624
        %1626 = vrot.lane.b32.xlu0 %v750, 28
        %v1627 = vpop.permute.xlu0 %1626
        %1628 = vrot.lane.b32.xlu0 %v751, 28
        %v1629 = vpop.permute.xlu0 %1628
        %1630 = vrot.lane.b32.xlu0 %v752, 28
        %v1631 = vpop.permute.xlu0 %1630
        %1632 = vrot.lane.b32.xlu0 %v753, 28
        %v1633 = vpop.permute.xlu0 %1632
        %1634 = vrot.lane.b32.xlu0 %v754, 28
        %v1635 = vpop.permute.xlu0 %1634
        %1636 = vrot.lane.b32.xlu0 %v755, 28
        %v1637 = vpop.permute.xlu0 %1636
        %1638 = vrot.lane.b32.xlu0 %v756, 28
        %v1639 = vpop.permute.xlu0 %1638
        %1640 = vrot.lane.b32.xlu0 %v757, 28
        %v1641 = vpop.permute.xlu0 %1640
        %1642 = vrot.lane.b32.xlu0 %v758, 28
        %v1643 = vpop.permute.xlu0 %1642
        %1644 = vrot.lane.b32.xlu0 %v759, 28
        %v1645 = vpop.permute.xlu0 %1644
        %1646 = vrot.lane.b32.xlu0 %v760, 28
        %v1647 = vpop.permute.xlu0 %1646
        %1648 = vrot.lane.b32.xlu0 %v761, 28
        %v1649 = vpop.permute.xlu0 %1648
        %1650 = vrot.lane.b32.xlu0 %v762, 28
        %v1651 = vpop.permute.xlu0 %1650
        %1652 = vrot.lane.b32.xlu0 %v763, 28
        %v1653 = vpop.permute.xlu0 %1652
        %1654 = vrot.lane.b32.xlu0 %v764, 28
        %v1655 = vpop.permute.xlu0 %1654
        %1656 = vrot.lane.b32.xlu0 %v765, 28
        %v1657 = vpop.permute.xlu0 %1656
        %1658 = vrot.lane.b32.xlu0 %v766, 28
        %v1659 = vpop.permute.xlu0 %1658
        %1660 = vrot.lane.b32.xlu0 %v767, 28
        %v1661 = vpop.permute.xlu0 %1660
        %1662 = vrot.lane.b32.xlu0 %v768, 28
        %v1663 = vpop.permute.xlu0 %1662
        %1664 = vrot.lane.b32.xlu0 %v769, 28
        %v1665 = vpop.permute.xlu0 %1664
        %1730 = vrot.lane.b32.xlu0 %v770, 32
        %v1731 = vpop.permute.xlu0 %1730
        %1732 = vrot.lane.b32.xlu0 %v771, 32
        %v1733 = vpop.permute.xlu0 %1732
        %1734 = vrot.lane.b32.xlu0 %v772, 32
        %v1735 = vpop.permute.xlu0 %1734
        %1736 = vrot.lane.b32.xlu0 %v773, 32
        %v1737 = vpop.permute.xlu0 %1736
        %1738 = vrot.lane.b32.xlu0 %v774, 32
        %v1739 = vpop.permute.xlu0 %1738
        %1740 = vrot.lane.b32.xlu0 %v775, 32
        %v1741 = vpop.permute.xlu0 %1740
        %1742 = vrot.lane.b32.xlu0 %v776, 32
        %v1743 = vpop.permute.xlu0 %1742
        %1744 = vrot.lane.b32.xlu0 %v777, 32
        %v1745 = vpop.permute.xlu0 %1744
        %1746 = vrot.lane.b32.xlu0 %v778, 32
        %v1747 = vpop.permute.xlu0 %1746
        %1748 = vrot.lane.b32.xlu0 %v779, 32
        %v1749 = vpop.permute.xlu0 %1748
        %1750 = vrot.lane.b32.xlu0 %v780, 32
        %v1751 = vpop.permute.xlu0 %1750
        %1752 = vrot.lane.b32.xlu0 %v781, 32
        %v1753 = vpop.permute.xlu0 %1752
        %1754 = vrot.lane.b32.xlu0 %v782, 32
        %v1755 = vpop.permute.xlu0 %1754
        %1756 = vrot.lane.b32.xlu0 %v783, 32
        %v1757 = vpop.permute.xlu0 %1756
        %1758 = vrot.lane.b32.xlu0 %v784, 32
        %v1759 = vpop.permute.xlu0 %1758
        %1760 = vrot.lane.b32.xlu0 %v785, 32
        %v1761 = vpop.permute.xlu0 %1760
        %1762 = vrot.lane.b32.xlu0 %v786, 32
        %v1763 = vpop.permute.xlu0 %1762
        %1764 = vrot.lane.b32.xlu0 %v787, 32
        %v1765 = vpop.permute.xlu0 %1764
        %1766 = vrot.lane.b32.xlu0 %v788, 32
        %v1767 = vpop.permute.xlu0 %1766
        %1768 = vrot.lane.b32.xlu0 %v789, 32
        %v1769 = vpop.permute.xlu0 %1768
        %1770 = vrot.lane.b32.xlu0 %v790, 32
        %v1771 = vpop.permute.xlu0 %1770
        %1772 = vrot.lane.b32.xlu0 %v791, 32
        %v1773 = vpop.permute.xlu0 %1772
        %1774 = vrot.lane.b32.xlu0 %v792, 32
        %v1775 = vpop.permute.xlu0 %1774
        %1776 = vrot.lane.b32.xlu0 %v793, 32
        %v1777 = vpop.permute.xlu0 %1776
        %1778 = vrot.lane.b32.xlu0 %v794, 32
        %v1779 = vpop.permute.xlu0 %1778
        %1780 = vrot.lane.b32.xlu0 %v795, 32
        %v1781 = vpop.permute.xlu0 %1780
        %1782 = vrot.lane.b32.xlu0 %v796, 32
        %v1783 = vpop.permute.xlu0 %1782
        %1784 = vrot.lane.b32.xlu0 %v797, 32
        %v1785 = vpop.permute.xlu0 %1784
        %1786 = vrot.lane.b32.xlu0 %v798, 32
        %v1787 = vpop.permute.xlu0 %1786
        %1788 = vrot.lane.b32.xlu0 %v799, 32
        %v1789 = vpop.permute.xlu0 %1788
        %1790 = vrot.lane.b32.xlu0 %v800, 32
        %v1791 = vpop.permute.xlu0 %1790
        %1792 = vrot.lane.b32.xlu0 %v801, 32
        %v1793 = vpop.permute.xlu0 %1792
        %v1826 = vsel %vm475, %v513, %v835
        %v1827 = vsel %vm475, %v514, %v837
        %v1828 = vsel %vm475, %v515, %v839
        %v1829 = vsel %vm475, %v516, %v841
        %v1830 = vsel %vm475, %v517, %v843
        %v1831 = vsel %vm475, %v518, %v845
        %v1832 = vsel %vm475, %v519, %v847
        %v1833 = vsel %vm475, %v520, %v849
        %v1834 = vsel %vm475, %v521, %v851
        %v1835 = vsel %vm475, %v522, %v853
        %v1836 = vsel %vm475, %v523, %v855
        %v1837 = vsel %vm475, %v524, %v857
        %v1838 = vsel %vm475, %v525, %v859
        %v1839 = vsel %vm475, %v526, %v861
        %v1840 = vsel %vm475, %v527, %v863
        %v1841 = vsel %vm475, %v528, %v865
        %v1842 = vsel %vm475, %v529, %v867
        %v1843 = vsel %vm475, %v530, %v869
        %v1844 = vsel %vm475, %v531, %v871
        %v1845 = vsel %vm475, %v532, %v873
        %v1846 = vsel %vm475, %v533, %v875
        %v1847 = vsel %vm475, %v534, %v877
        %v1848 = vsel %vm475, %v535, %v879
        %v1849 = vsel %vm475, %v536, %v881
        %v1850 = vsel %vm475, %v537, %v883
        %v1851 = vsel %vm475, %v538, %v885
        %v1852 = vsel %vm475, %v539, %v887
        %v1853 = vsel %vm475, %v540, %v889
        %v1854 = vsel %vm475, %v541, %v891
        %v1855 = vsel %vm475, %v542, %v893
        %v1856 = vsel %vm475, %v543, %v895
        %v1857 = vsel %vm475, %v544, %v897
        %v1858 = vsel %vm386, %v1826, %v963
        %v1859 = vsel %vm386, %v1827, %v965
        %v1860 = vsel %vm386, %v1828, %v967
        %v1861 = vsel %vm386, %v1829, %v969
        %v1862 = vsel %vm386, %v1830, %v971
        %v1863 = vsel %vm386, %v1831, %v973
        %v1864 = vsel %vm386, %v1832, %v975
        %v1865 = vsel %vm386, %v1833, %v977
        %v1866 = vsel %vm386, %v1834, %v979
        %v1867 = vsel %vm386, %v1835, %v981
        %v1868 = vsel %vm386, %v1836, %v983
        %v1869 = vsel %vm386, %v1837, %v985
        %v1870 = vsel %vm386, %v1838, %v987
        %v1871 = vsel %vm386, %v1839, %v989
        %v1872 = vsel %vm386, %v1840, %v991
        %v1873 = vsel %vm386, %v1841, %v993
        %v1874 = vsel %vm386, %v1842, %v995
        %v1875 = vsel %vm386, %v1843, %v997
        %v1876 = vsel %vm386, %v1844, %v999
        %v1877 = vsel %vm386, %v1845, %v1001
        %v1878 = vsel %vm386, %v1846, %v1003
        %v1879 = vsel %vm386, %v1847, %v1005
        %v1880 = vsel %vm386, %v1848, %v1007
        %v1881 = vsel %vm386, %v1849, %v1009
        %v1882 = vsel %vm386, %v1850, %v1011
        %v1883 = vsel %vm386, %v1851, %v1013
        %v1884 = vsel %vm386, %v1852, %v1015
        %v1885 = vsel %vm386, %v1853, %v1017
        %v1886 = vsel %vm386, %v1854, %v1019
        %v1887 = vsel %vm386, %v1855, %v1021
        %v1888 = vsel %vm386, %v1856, %v1023
        %v1889 = vsel %vm386, %v1857, %v1025
        %vm1890 = vcmask 97280
        %v1891 = vsel %vm1890, %v1858, %v1091
        %v1892 = vsel %vm1890, %v1859, %v1093
        %v1893 = vsel %vm1890, %v1860, %v1095
        %v1894 = vsel %vm1890, %v1861, %v1097
        %v1895 = vsel %vm1890, %v1862, %v1099
        %v1896 = vsel %vm1890, %v1863, %v1101
        %v1897 = vsel %vm1890, %v1864, %v1103
        %v1898 = vsel %vm1890, %v1865, %v1105
        %v1899 = vsel %vm1890, %v1866, %v1107
        %v1900 = vsel %vm1890, %v1867, %v1109
        %v1901 = vsel %vm1890, %v1868, %v1111
        %v1902 = vsel %vm1890, %v1869, %v1113
        %v1903 = vsel %vm1890, %v1870, %v1115
        %v1904 = vsel %vm1890, %v1871, %v1117
        %v1905 = vsel %vm1890, %v1872, %v1119
        %v1906 = vsel %vm1890, %v1873, %v1121
        %v1907 = vsel %vm1890, %v1874, %v1123
        %v1908 = vsel %vm1890, %v1875, %v1125
        %v1909 = vsel %vm1890, %v1876, %v1127
        %v1910 = vsel %vm1890, %v1877, %v1129
        %v1911 = vsel %vm1890, %v1878, %v1131
        %v1912 = vsel %vm1890, %v1879, %v1133
        %v1913 = vsel %vm1890, %v1880, %v1135
        %v1914 = vsel %vm1890, %v1881, %v1137
        %v1915 = vsel %vm1890, %v1882, %v1139
        %v1916 = vsel %vm1890, %v1883, %v1141
        %v1917 = vsel %vm1890, %v1884, %v1143
        %v1918 = vsel %vm1890, %v1885, %v1145
        %v1919 = vsel %vm1890, %v1886, %v1147
        %v1920 = vsel %vm1890, %v1887, %v1149
        %v1921 = vsel %vm1890, %v1888, %v1151
        %v1922 = vsel %vm1890, %v1889, %v1153
        %vm1923 = vcmask 130048
        %v1924 = vsel %vm1923, %v1891, %v1219
        %v1925 = vsel %vm1923, %v1892, %v1221
        %v1926 = vsel %vm1923, %v1893, %v1223
        %v1927 = vsel %vm1923, %v1894, %v1225
        %v1928 = vsel %vm1923, %v1895, %v1227
        %v1929 = vsel %vm1923, %v1896, %v1229
        %v1930 = vsel %vm1923, %v1897, %v1231
        %v1931 = vsel %vm1923, %v1898, %v1233
        %v1932 = vsel %vm1923, %v1899, %v1235
        %v1933 = vsel %vm1923, %v1900, %v1237
        %v1934 = vsel %vm1923, %v1901, %v1239
        %v1935 = vsel %vm1923, %v1902, %v1241
        %v1936 = vsel %vm1923, %v1903, %v1243
        %v1937 = vsel %vm1923, %v1904, %v1245
        %v1938 = vsel %vm1923, %v1905, %v1247
        %v1939 = vsel %vm1923, %v1906, %v1249
        %v1940 = vsel %vm1923, %v1907, %v1251
        %v1941 = vsel %vm1923, %v1908, %v1253
        %v1942 = vsel %vm1923, %v1909, %v1255
        %v1943 = vsel %vm1923, %v1910, %v1257
        %v1944 = vsel %vm1923, %v1911, %v1259
        %v1945 = vsel %vm1923, %v1912, %v1261
        %v1946 = vsel %vm1923, %v1913, %v1263
        %v1947 = vsel %vm1923, %v1914, %v1265
        %v1948 = vsel %vm1923, %v1915, %v1267
        %v1949 = vsel %vm1923, %v1916, %v1269
        %v1950 = vsel %vm1923, %v1917, %v1271
        %v1951 = vsel %vm1923, %v1918, %v1273
        %v1952 = vsel %vm1923, %v1919, %v1275
        %v1953 = vsel %vm1923, %v1920, %v1277
        %v1954 = vsel %vm1923, %v1921, %v1279
        %v1955 = vsel %vm1923, %v1922, %v1281
        %vm1956 = vcmask 162816
        %v1957 = vsel %vm1956, %v1924, %v1347
        %v1958 = vsel %vm1956, %v1925, %v1349
        %v1959 = vsel %vm1956, %v1926, %v1351
        %v1960 = vsel %vm1956, %v1927, %v1353
        %v1961 = vsel %vm1956, %v1928, %v1355
        %v1962 = vsel %vm1956, %v1929, %v1357
        %v1963 = vsel %vm1956, %v1930, %v1359
        %v1964 = vsel %vm1956, %v1931, %v1361
        %v1965 = vsel %vm1956, %v1932, %v1363
        %v1966 = vsel %vm1956, %v1933, %v1365
        %v1967 = vsel %vm1956, %v1934, %v1367
        %v1968 = vsel %vm1956, %v1935, %v1369
        %v1969 = vsel %vm1956, %v1936, %v1371
        %v1970 = vsel %vm1956, %v1937, %v1373
        %v1971 = vsel %vm1956, %v1938, %v1375
        %v1972 = vsel %vm1956, %v1939, %v1377
        %v1973 = vsel %vm1956, %v1940, %v1379
        %v1974 = vsel %vm1956, %v1941, %v1381
        %v1975 = vsel %vm1956, %v1942, %v1383
        %v1976 = vsel %vm1956, %v1943, %v1385
        %v1977 = vsel %vm1956, %v1944, %v1387
        %v1978 = vsel %vm1956, %v1945, %v1389
        %v1979 = vsel %vm1956, %v1946, %v1391
        %v1980 = vsel %vm1956, %v1947, %v1393
        %v1981 = vsel %vm1956, %v1948, %v1395
        %v1982 = vsel %vm1956, %v1949, %v1397
        %v1983 = vsel %vm1956, %v1950, %v1399
        %v1984 = vsel %vm1956, %v1951, %v1401
        %v1985 = vsel %vm1956, %v1952, %v1403
        %v1986 = vsel %vm1956, %v1953, %v1405
        %v1987 = vsel %vm1956, %v1954, %v1407
        %v1988 = vsel %vm1956, %v1955, %v1409
        %vm1989 = vcmask 195584
        %v1990 = vsel %vm1989, %v1957, %v1475
        %v1991 = vsel %vm1989, %v1958, %v1477
        %v1992 = vsel %vm1989, %v1959, %v1479
        %v1993 = vsel %vm1989, %v1960, %v1481
        %v1994 = vsel %vm1989, %v1961, %v1483
        %v1995 = vsel %vm1989, %v1962, %v1485
        %v1996 = vsel %vm1989, %v1963, %v1487
        %v1997 = vsel %vm1989, %v1964, %v1489
        %v1998 = vsel %vm1989, %v1965, %v1491
        %v1999 = vsel %vm1989, %v1966, %v1493
        %v2000 = vsel %vm1989, %v1967, %v1495
        %v2001 = vsel %vm1989, %v1968, %v1497
        %v2002 = vsel %vm1989, %v1969, %v1499
        %v2003 = vsel %vm1989, %v1970, %v1501
        %v2004 = vsel %vm1989, %v1971, %v1503
        %v2005 = vsel %vm1989, %v1972, %v1505
        %v2006 = vsel %vm1989, %v1973, %v1507
        %v2007 = vsel %vm1989, %v1974, %v1509
        %v2008 = vsel %vm1989, %v1975, %v1511
        %v2009 = vsel %vm1989, %v1976, %v1513
        %v2010 = vsel %vm1989, %v1977, %v1515
        %v2011 = vsel %vm1989, %v1978, %v1517
        %v2012 = vsel %vm1989, %v1979, %v1519
        %v2013 = vsel %vm1989, %v1980, %v1521
        %v2014 = vsel %vm1989, %v1981, %v1523
        %v2015 = vsel %vm1989, %v1982, %v1525
        %v2016 = vsel %vm1989, %v1983, %v1527
        %v2017 = vsel %vm1989, %v1984, %v1529
        %v2018 = vsel %vm1989, %v1985, %v1531
        %v2019 = vsel %vm1989, %v1986, %v1533
        %v2020 = vsel %vm1989, %v1987, %v1535
        %v2021 = vsel %vm1989, %v1988, %v1537
        %vm2022 = vcmask 228352
        %v2023 = vsel %vm2022, %v1990, %v1603
        %v2024 = vsel %vm2022, %v1991, %v1605
        %v2025 = vsel %vm2022, %v1992, %v1607
        %v2026 = vsel %vm2022, %v1993, %v1609
        %v2027 = vsel %vm2022, %v1994, %v1611
        %v2028 = vsel %vm2022, %v1995, %v1613
        %v2029 = vsel %vm2022, %v1996, %v1615
        %v2030 = vsel %vm2022, %v1997, %v1617
        %v2031 = vsel %vm2022, %v1998, %v1619
        %v2032 = vsel %vm2022, %v1999, %v1621
        %v2033 = vsel %vm2022, %v2000, %v1623
        %v2034 = vsel %vm2022, %v2001, %v1625
        %v2035 = vsel %vm2022, %v2002, %v1627
        %v2036 = vsel %vm2022, %v2003, %v1629
        %v2037 = vsel %vm2022, %v2004, %v1631
        %v2038 = vsel %vm2022, %v2005, %v1633
        %v2039 = vsel %vm2022, %v2006, %v1635
        %v2040 = vsel %vm2022, %v2007, %v1637
        %v2041 = vsel %vm2022, %v2008, %v1639
        %v2042 = vsel %vm2022, %v2009, %v1641
        %v2043 = vsel %vm2022, %v2010, %v1643
        %v2044 = vsel %vm2022, %v2011, %v1645
        %v2045 = vsel %vm2022, %v2012, %v1647
        %v2046 = vsel %vm2022, %v2013, %v1649
        %v2047 = vsel %vm2022, %v2014, %v1651
        %v2048 = vsel %vm2022, %v2015, %v1653
        %v2049 = vsel %vm2022, %v2016, %v1655
        %v2050 = vsel %vm2022, %v2017, %v1657
        %v2051 = vsel %vm2022, %v2018, %v1659
        %v2052 = vsel %vm2022, %v2019, %v1661
        %v2053 = vsel %vm2022, %v2020, %v1663
        %v2054 = vsel %vm2022, %v2021, %v1665
        %vm2055 = vcmask 261120
        %v2056 = vsel %vm2055, %v2023, %v1731
        %v2057 = vsel %vm2055, %v2024, %v1733
        %v2058 = vsel %vm2055, %v2025, %v1735
        %v2059 = vsel %vm2055, %v2026, %v1737
        %v2060 = vsel %vm2055, %v2027, %v1739
        %v2061 = vsel %vm2055, %v2028, %v1741
        %v2062 = vsel %vm2055, %v2029, %v1743
        %v2063 = vsel %vm2055, %v2030, %v1745
        %v2064 = vsel %vm2055, %v2031, %v1747
        %v2065 = vsel %vm2055, %v2032, %v1749
        %v2066 = vsel %vm2055, %v2033, %v1751
        %v2067 = vsel %vm2055, %v2034, %v1753
        %v2068 = vsel %vm2055, %v2035, %v1755
        %v2069 = vsel %vm2055, %v2036, %v1757
        %v2070 = vsel %vm2055, %v2037, %v1759
        %v2071 = vsel %vm2055, %v2038, %v1761
        %v2072 = vsel %vm2055, %v2039, %v1763
        %v2073 = vsel %vm2055, %v2040, %v1765
        %v2074 = vsel %vm2055, %v2041, %v1767
        %v2075 = vsel %vm2055, %v2042, %v1769
        %v2076 = vsel %vm2055, %v2043, %v1771
        %v2077 = vsel %vm2055, %v2044, %v1773
        %v2078 = vsel %vm2055, %v2045, %v1775
        %v2079 = vsel %vm2055, %v2046, %v1777
        %v2080 = vsel %vm2055, %v2047, %v1779
        %v2081 = vsel %vm2055, %v2048, %v1781
        %v2082 = vsel %vm2055, %v2049, %v1783
        %v2083 = vsel %vm2055, %v2050, %v1785
        %v2084 = vsel %vm2055, %v2051, %v1787
        %v2085 = vsel %vm2055, %v2052, %v1789
        %v2086 = vsel %vm2055, %v2053, %v1791
        %v2087 = vsel %vm2055, %v2054, %v1793
        %v2088 = vpack.c.bf16 %v2057, %v2056
        %v2089 = vpack.c.bf16 %v2059, %v2058
        %v2090 = vpack.c.bf16 %v2061, %v2060
        %v2091 = vpack.c.bf16 %v2063, %v2062
        %v2092 = vpack.c.bf16 %v2065, %v2064
        %v2093 = vpack.c.bf16 %v2067, %v2066
        %v2094 = vpack.c.bf16 %v2069, %v2068
        %v2095 = vpack.c.bf16 %v2071, %v2070
        %v2096 = vpack.c.bf16 %v2073, %v2072
        %v2097 = vpack.c.bf16 %v2075, %v2074
        %v2098 = vpack.c.bf16 %v2077, %v2076
        %v2099 = vpack.c.bf16 %v2079, %v2078
        %v2100 = vpack.c.bf16 %v2081, %v2080
        %v2101 = vpack.c.bf16 %v2083, %v2082
        %v2102 = vpack.c.bf16 %v2085, %v2084
        %v2103 = vpack.c.bf16 %v2087, %v2086
        %v2109 = vunpack.c.l.b16 %v508
        %v2110 = vunpack.c.l.b16 %v509
        %v2111 = vunpack.c.l.b16 %v510
        %v2112 = vunpack.c.l.b16 %v511
        %v2113 = vunpack.c.l.b16 %v512
        %v2114 = vpack.c.b16 %v2110, %v2109
        %v2115 = vpack.c.b16 %v2112, %v2111
        %v2116 = vpack.c.b16 %v2113, %v2113
        %vm2119 = vcmask 293888
        %v2121 = vsel %vm2119, %v2088, 0
        %v2124 = vsel %vm2119, %v2089, 0
        %v2127 = vsel %vm2119, %v2090, 0
        %v2130 = vsel %vm2119, %v2091, 0
        %v2133 = vsel %vm2119, %v2092, 0
        %v2136 = vsel %vm2119, %v2093, 0
        %v2139 = vsel %vm2119, %v2094, 0
        %v2142 = vsel %vm2119, %v2095, 0
        %v2145 = vsel %vm2119, %v2096, 0
        %v2148 = vsel %vm2119, %v2097, 0
        %v2151 = vsel %vm2119, %v2098, 0
        %v2154 = vsel %vm2119, %v2099, 0
        %v2157 = vsel %vm2119, %v2100, 0
        %v2160 = vsel %vm2119, %v2101, 0
        %v2163 = vsel %vm2119, %v2102, 0
        %v2166 = vsel %vm2119, %v2103, 0
        %vm2168 = vcmask 1041408
        %v2170 = vsel %vm2168, %v2116, 0
        %2172 = vmatprep.subr.bf16.mxu0 0
        %2173 = vmatpush1.bf16.msra.mxu0 0
        %2174 = vmatprep.subr.bf16.mxu0 0
        %2175 = vmatpush1.bf16.msra.mxu0 0
        %2176 = vmatprep.subr.bf16.mxu0 0
        %2177 = vmatpush1.bf16.msra.mxu0 0
        %2178 = vmatprep.subr.bf16.mxu0 0
        %2179 = vmatpush1.bf16.msra.mxu0 0
        %2180 = vmatprep.subr.bf16.mxu0 0
        %2181 = vmatpush1.bf16.msra.mxu0 0
        %2182 = vmatprep.subr.bf16.mxu0 0
        %2183 = vmatpush1.bf16.msra.mxu0 %v2170
        %2184 = vmatprep.subr.bf16.mxu0 0
        %2185 = vmatpush1.bf16.msra.mxu0 %v2115
        %2186 = vmatprep.subr.bf16.mxu0 0
        %2187 = vmatpush1.bf16.msra.mxu0 %v2114
        %2188 = vmatprep.subr.bf16.mxu0 0
        %2189 = vmatpush2.bf16.msra.mxu0 0
        %2190 = vmatprep.subr.bf16.mxu0 0
        %2191 = vmatpush2.bf16.msra.mxu0 0
        %2192 = vmatprep.subr.bf16.mxu0 0
        %2193 = vmatpush2.bf16.msra.mxu0 0
        %2194 = vmatprep.subr.bf16.mxu0 0
        %2195 = vmatpush2.bf16.msra.mxu0 0
        %2196 = vmatprep.subr.bf16.mxu0 0
        %2197 = vmatpush2.bf16.msra.mxu0 0
        %2198 = vmatprep.subr.bf16.mxu0 0
        %2199 = vmatpush2.bf16.msra.mxu0 0
        %2200 = vmatprep.subr.bf16.mxu0 0
        %2201 = vmatpush2.bf16.msra.mxu0 0
        %2202 = vmatprep.subr.bf16.mxu0 0
        %2203 = vmatpush2.bf16.msra.mxu0 0
        %2204 = vmatprep.mubr.bf16.mxu0 0
        %2205 = vmatmul.mubr.bf16.gmra.mxu0 %v2121
        %v2206 = vpop.f32.mrf.mxu0
        %v2207 = vadd.f32 0.0, %v2206
        %v2208 = vpop.f32.mrf.mxu0
        %v2209 = vpop.f32.mrf.mxu0
        %v2210 = vadd.f32 0.0, %v2209
        %v2211 = vpop.f32.mrf.mxu0
        %2212 = vmatprep.mubr.bf16.mxu0 0
        %2213 = vmatmul.mubr.bf16.gmra.mxu0 %v2124
        %v2214 = vpop.f32.mrf.mxu0
        %v2215 = vadd.f32 0.0, %v2214
        %v2216 = vpop.f32.mrf.mxu0
        %v2217 = vpop.f32.mrf.mxu0
        %v2218 = vadd.f32 0.0, %v2217
        %v2219 = vpop.f32.mrf.mxu0
        %2220 = vmatprep.mubr.bf16.mxu0 0
        %2221 = vmatmul.mubr.bf16.gmra.mxu0 %v2127
        %v2222 = vpop.f32.mrf.mxu0
        %v2223 = vadd.f32 0.0, %v2222
        %v2224 = vpop.f32.mrf.mxu0
        %v2225 = vpop.f32.mrf.mxu0
        %v2226 = vadd.f32 0.0, %v2225
        %v2227 = vpop.f32.mrf.mxu0
        %2228 = vmatprep.mubr.bf16.mxu0 0
        %2229 = vmatmul.mubr.bf16.gmra.mxu0 %v2130
        %v2230 = vpop.f32.mrf.mxu0
        %v2231 = vadd.f32 0.0, %v2230
        %v2232 = vpop.f32.mrf.mxu0
        %v2233 = vpop.f32.mrf.mxu0
        %v2234 = vadd.f32 0.0, %v2233
        %v2235 = vpop.f32.mrf.mxu0
        %2236 = vmatprep.mubr.bf16.mxu0 0
        %2237 = vmatmul.mubr.bf16.gmra.mxu0 %v2133
        %v2238 = vpop.f32.mrf.mxu0
        %v2239 = vadd.f32 0.0, %v2238
        %v2240 = vpop.f32.mrf.mxu0
        %v2241 = vpop.f32.mrf.mxu0
        %v2242 = vadd.f32 0.0, %v2241
        %v2243 = vpop.f32.mrf.mxu0
        %2244 = vmatprep.mubr.bf16.mxu0 0
        %2245 = vmatmul.mubr.bf16.gmra.mxu0 %v2136
        %v2246 = vpop.f32.mrf.mxu0
        %v2247 = vadd.f32 0.0, %v2246
        %v2248 = vpop.f32.mrf.mxu0
        %v2249 = vpop.f32.mrf.mxu0
        %v2250 = vadd.f32 0.0, %v2249
        %v2251 = vpop.f32.mrf.mxu0
        %2252 = vmatprep.mubr.bf16.mxu0 0
        %2253 = vmatmul.mubr.bf16.gmra.mxu0 %v2139
        %v2254 = vpop.f32.mrf.mxu0
        %v2255 = vadd.f32 0.0, %v2254
        %v2256 = vpop.f32.mrf.mxu0
        %v2257 = vpop.f32.mrf.mxu0
        %v2258 = vadd.f32 0.0, %v2257
        %v2259 = vpop.f32.mrf.mxu0
        %2260 = vmatprep.mubr.bf16.mxu0 0
        %2261 = vmatmul.mubr.bf16.gmra.mxu0 %v2142
        %v2262 = vpop.f32.mrf.mxu0
        %v2263 = vadd.f32 0.0, %v2262
        %v2264 = vpop.f32.mrf.mxu0
        %v2265 = vpop.f32.mrf.mxu0
        %v2266 = vadd.f32 0.0, %v2265
        %v2267 = vpop.f32.mrf.mxu0
        %2268 = vmatprep.mubr.bf16.mxu0 0
        %2269 = vmatmul.mubr.bf16.gmra.mxu0 %v2145
        %v2270 = vpop.f32.mrf.mxu0
        %v2271 = vadd.f32 0.0, %v2270
        %v2272 = vpop.f32.mrf.mxu0
        %v2273 = vpop.f32.mrf.mxu0
        %v2274 = vadd.f32 0.0, %v2273
        %v2275 = vpop.f32.mrf.mxu0
        %2276 = vmatprep.mubr.bf16.mxu0 0
        %2277 = vmatmul.mubr.bf16.gmra.mxu0 %v2148
        %v2278 = vpop.f32.mrf.mxu0
        %v2279 = vadd.f32 0.0, %v2278
        %v2280 = vpop.f32.mrf.mxu0
        %v2281 = vpop.f32.mrf.mxu0
        %v2282 = vadd.f32 0.0, %v2281
        %v2283 = vpop.f32.mrf.mxu0
        %2284 = vmatprep.mubr.bf16.mxu0 0
        %2285 = vmatmul.mubr.bf16.gmra.mxu0 %v2151
        %v2286 = vpop.f32.mrf.mxu0
        %v2287 = vadd.f32 0.0, %v2286
        %v2288 = vpop.f32.mrf.mxu0
        %v2289 = vpop.f32.mrf.mxu0
        %v2290 = vadd.f32 0.0, %v2289
        %v2291 = vpop.f32.mrf.mxu0
        %2292 = vmatprep.mubr.bf16.mxu0 0
        %2293 = vmatmul.mubr.bf16.gmra.mxu0 %v2154
        %v2294 = vpop.f32.mrf.mxu0
        %v2295 = vadd.f32 0.0, %v2294
        %v2296 = vpop.f32.mrf.mxu0
        %v2297 = vpop.f32.mrf.mxu0
        %v2298 = vadd.f32 0.0, %v2297
        %v2299 = vpop.f32.mrf.mxu0
        %2300 = vmatprep.mubr.bf16.mxu0 0
        %2301 = vmatmul.mubr.bf16.gmra.mxu0 %v2157
        %v2302 = vpop.f32.mrf.mxu0
        %v2303 = vadd.f32 0.0, %v2302
        %v2304 = vpop.f32.mrf.mxu0
        %v2305 = vpop.f32.mrf.mxu0
        %v2306 = vadd.f32 0.0, %v2305
        %v2307 = vpop.f32.mrf.mxu0
        %2308 = vmatprep.mubr.bf16.mxu0 0
        %2309 = vmatmul.mubr.bf16.gmra.mxu0 %v2160
        %v2310 = vpop.f32.mrf.mxu0
        %v2311 = vadd.f32 0.0, %v2310
        %v2312 = vpop.f32.mrf.mxu0
        %v2313 = vpop.f32.mrf.mxu0
        %v2314 = vadd.f32 0.0, %v2313
        %v2315 = vpop.f32.mrf.mxu0
        %2316 = vmatprep.mubr.bf16.mxu0 0
        %2317 = vmatmul.mubr.bf16.gmra.mxu0 %v2163
        %v2318 = vpop.f32.mrf.mxu0
        %v2319 = vadd.f32 0.0, %v2318
        %v2320 = vpop.f32.mrf.mxu0
        %v2321 = vpop.f32.mrf.mxu0
        %v2322 = vadd.f32 0.0, %v2321
        %v2323 = vpop.f32.mrf.mxu0
        %2324 = vmatprep.mubr.bf16.mxu0 0
        %2325 = vmatmul.mubr.bf16.gmra.mxu0 %v2166
        %v2326 = vpop.f32.mrf.mxu0
        %v2327 = vadd.f32 0.0, %v2326
        %v2328 = vpop.f32.mrf.mxu0
        %v2329 = vpop.f32.mrf.mxu0
        %v2330 = vadd.f32 0.0, %v2329
        %v2331 = vpop.f32.mrf.mxu0
        %2332 = vdwg.mxu0
        %v2333 = vld [vmem:[%s2] sm:$0x1]
        %v2335 = vlaneseq
        %v2336 = vshrl.u32 %v2335, 7
        %v2337 = vsub.s32 0, %v2336
        %v2338 = vrot.slane %v2333, %v2337
        %v2340 = vmul.f32 %v2207, %v2338
        %v2341 = vmul.f32 %v2210, %v2338
        %v2342 = vmul.f32 %v2215, %v2338
        %v2343 = vmul.f32 %v2218, %v2338
        %v2344 = vmul.f32 %v2223, %v2338
        %v2345 = vmul.f32 %v2226, %v2338
        %v2346 = vmul.f32 %v2231, %v2338
        %v2347 = vmul.f32 %v2234, %v2338
        %v2348 = vmul.f32 %v2239, %v2338
        %v2349 = vmul.f32 %v2242, %v2338
        %v2350 = vmul.f32 %v2247, %v2338
        %v2351 = vmul.f32 %v2250, %v2338
        %v2352 = vmul.f32 %v2255, %v2338
        %v2353 = vmul.f32 %v2258, %v2338
        %v2354 = vmul.f32 %v2263, %v2338
        %v2355 = vmul.f32 %v2266, %v2338
        %v2356 = vmul.f32 %v2271, %v2338
        %v2357 = vmul.f32 %v2274, %v2338
        %v2358 = vmul.f32 %v2279, %v2338
        %v2359 = vmul.f32 %v2282, %v2338
        %v2360 = vmul.f32 %v2287, %v2338
        %v2361 = vmul.f32 %v2290, %v2338
        %v2362 = vmul.f32 %v2295, %v2338
        %v2363 = vmul.f32 %v2298, %v2338
        %v2364 = vmul.f32 %v2303, %v2338
        %v2365 = vmul.f32 %v2306, %v2338
        %v2366 = vmul.f32 %v2311, %v2338
        %v2367 = vmul.f32 %v2314, %v2338
        %v2368 = vmul.f32 %v2319, %v2338
        %v2369 = vmul.f32 %v2322, %v2338
        %v2370 = vmul.f32 %v2327, %v2338
        %v2371 = vmul.f32 %v2330, %v2338
        %v2372 = vld [vmem:[%s3] sm:$0x1]
        %v2374 = vlaneseq
        %v2375 = vshrl.u32 %v2374, 7
        %v2376 = vsub.s32 0, %v2375
        %v2377 = vrot.slane %v2372, %v2376
        %v2379 = vadd.f32 %v2340, %v2377
        %v2380 = vadd.f32 %v2341, %v2377
        %v2381 = vadd.f32 %v2342, %v2377
        %v2382 = vadd.f32 %v2343, %v2377
        %v2383 = vadd.f32 %v2344, %v2377
        %v2384 = vadd.f32 %v2345, %v2377
        %v2385 = vadd.f32 %v2346, %v2377
        %v2386 = vadd.f32 %v2347, %v2377
        %v2387 = vadd.f32 %v2348, %v2377
        %v2388 = vadd.f32 %v2349, %v2377
        %v2389 = vadd.f32 %v2350, %v2377
        %v2390 = vadd.f32 %v2351, %v2377
        %v2391 = vadd.f32 %v2352, %v2377
        %v2392 = vadd.f32 %v2353, %v2377
        %v2393 = vadd.f32 %v2354, %v2377
        %v2394 = vadd.f32 %v2355, %v2377
        %v2395 = vadd.f32 %v2356, %v2377
        %v2396 = vadd.f32 %v2357, %v2377
        %v2397 = vadd.f32 %v2358, %v2377
        %v2398 = vadd.f32 %v2359, %v2377
        %v2399 = vadd.f32 %v2360, %v2377
        %v2400 = vadd.f32 %v2361, %v2377
        %v2401 = vadd.f32 %v2362, %v2377
        %v2402 = vadd.f32 %v2363, %v2377
        %v2403 = vadd.f32 %v2364, %v2377
        %v2404 = vadd.f32 %v2365, %v2377
        %v2405 = vadd.f32 %v2366, %v2377
        %v2406 = vadd.f32 %v2367, %v2377
        %v2407 = vadd.f32 %v2368, %v2377
        %v2408 = vadd.f32 %v2369, %v2377
        %v2409 = vadd.f32 %v2370, %v2377
        %v2410 = vadd.f32 %v2371, %v2377
        %vm2411 = vcmp.ge.f32.partialorder %v2379, 0.0
        %vm2412 = vcmp.ge.f32.partialorder %v2380, 0.0
        %vm2413 = vcmp.ge.f32.partialorder %v2381, 0.0
        %vm2414 = vcmp.ge.f32.partialorder %v2382, 0.0
        %vm2415 = vcmp.ge.f32.partialorder %v2383, 0.0
        %vm2416 = vcmp.ge.f32.partialorder %v2384, 0.0
        %vm2417 = vcmp.ge.f32.partialorder %v2385, 0.0
        %vm2418 = vcmp.ge.f32.partialorder %v2386, 0.0
        %vm2419 = vcmp.ge.f32.partialorder %v2387, 0.0
        %vm2420 = vcmp.ge.f32.partialorder %v2388, 0.0
        %vm2421 = vcmp.ge.f32.partialorder %v2389, 0.0
        %vm2422 = vcmp.ge.f32.partialorder %v2390, 0.0
        %vm2423 = vcmp.ge.f32.partialorder %v2391, 0.0
        %vm2424 = vcmp.ge.f32.partialorder %v2392, 0.0
        %vm2425 = vcmp.ge.f32.partialorder %v2393, 0.0
        %vm2426 = vcmp.ge.f32.partialorder %v2394, 0.0
        %vm2427 = vcmp.ge.f32.partialorder %v2395, 0.0
        %vm2428 = vcmp.ge.f32.partialorder %v2396, 0.0
        %vm2429 = vcmp.ge.f32.partialorder %v2397, 0.0
        %vm2430 = vcmp.ge.f32.partialorder %v2398, 0.0
        %vm2431 = vcmp.ge.f32.partialorder %v2399, 0.0
        %vm2432 = vcmp.ge.f32.partialorder %v2400, 0.0
        %vm2433 = vcmp.ge.f32.partialorder %v2401, 0.0
        %vm2434 = vcmp.ge.f32.partialorder %v2402, 0.0
        %vm2435 = vcmp.ge.f32.partialorder %v2403, 0.0
        %vm2436 = vcmp.ge.f32.partialorder %v2404, 0.0
        %vm2437 = vcmp.ge.f32.partialorder %v2405, 0.0
        %vm2438 = vcmp.ge.f32.partialorder %v2406, 0.0
        %vm2439 = vcmp.ge.f32.partialorder %v2407, 0.0
        %vm2440 = vcmp.ge.f32.partialorder %v2408, 0.0
        %vm2441 = vcmp.ge.f32.partialorder %v2409, 0.0
        %vm2442 = vcmp.ge.f32.partialorder %v2410, 0.0
        %v2443 = vmul.f32 %v2379, 0.01
        %v2444 = vmul.f32 %v2380, 0.01
        %v2445 = vmul.f32 %v2381, 0.01
        %v2446 = vmul.f32 %v2382, 0.01
        %v2447 = vmul.f32 %v2383, 0.01
        %v2448 = vmul.f32 %v2384, 0.01
        %v2449 = vmul.f32 %v2385, 0.01
        %v2450 = vmul.f32 %v2386, 0.01
        %v2451 = vmul.f32 %v2387, 0.01
        %v2452 = vmul.f32 %v2388, 0.01
        %v2453 = vmul.f32 %v2389, 0.01
        %v2454 = vmul.f32 %v2390, 0.01
        %v2455 = vmul.f32 %v2391, 0.01
        %v2456 = vmul.f32 %v2392, 0.01
        %v2457 = vmul.f32 %v2393, 0.01
        %v2458 = vmul.f32 %v2394, 0.01
        %v2459 = vmul.f32 %v2395, 0.01
        %v2460 = vmul.f32 %v2396, 0.01
        %v2461 = vmul.f32 %v2397, 0.01
        %v2462 = vmul.f32 %v2398, 0.01
        %v2463 = vmul.f32 %v2399, 0.01
        %v2464 = vmul.f32 %v2400, 0.01
        %v2465 = vmul.f32 %v2401, 0.01
        %v2466 = vmul.f32 %v2402, 0.01
        %v2467 = vmul.f32 %v2403, 0.01
        %v2468 = vmul.f32 %v2404, 0.01
        %v2469 = vmul.f32 %v2405, 0.01
        %v2470 = vmul.f32 %v2406, 0.01
        %v2471 = vmul.f32 %v2407, 0.01
        %v2472 = vmul.f32 %v2408, 0.01
        %v2473 = vmul.f32 %v2409, 0.01
        %v2474 = vmul.f32 %v2410, 0.01
        %v2475 = vsel %vm2411, %v2379, %v2443
        %v2476 = vsel %vm2412, %v2380, %v2444
        %v2477 = vsel %vm2413, %v2381, %v2445
        %v2478 = vsel %vm2414, %v2382, %v2446
        %v2479 = vsel %vm2415, %v2383, %v2447
        %v2480 = vsel %vm2416, %v2384, %v2448
        %v2481 = vsel %vm2417, %v2385, %v2449
        %v2482 = vsel %vm2418, %v2386, %v2450
        %v2483 = vsel %vm2419, %v2387, %v2451
        %v2484 = vsel %vm2420, %v2388, %v2452
        %v2485 = vsel %vm2421, %v2389, %v2453
        %v2486 = vsel %vm2422, %v2390, %v2454
        %v2487 = vsel %vm2423, %v2391, %v2455
        %v2488 = vsel %vm2424, %v2392, %v2456
        %v2489 = vsel %vm2425, %v2393, %v2457
        %v2490 = vsel %vm2426, %v2394, %v2458
        %v2491 = vsel %vm2427, %v2395, %v2459
        %v2492 = vsel %vm2428, %v2396, %v2460
        %v2493 = vsel %vm2429, %v2397, %v2461
        %v2494 = vsel %vm2430, %v2398, %v2462
        %v2495 = vsel %vm2431, %v2399, %v2463
        %v2496 = vsel %vm2432, %v2400, %v2464
        %v2497 = vsel %vm2433, %v2401, %v2465
        %v2498 = vsel %vm2434, %v2402, %v2466
        %v2499 = vsel %vm2435, %v2403, %v2467
        %v2500 = vsel %vm2436, %v2404, %v2468
        %v2501 = vsel %vm2437, %v2405, %v2469
        %v2502 = vsel %vm2438, %v2406, %v2470
        %v2503 = vsel %vm2439, %v2407, %v2471
        %v2504 = vsel %vm2440, %v2408, %v2472
        %v2505 = vsel %vm2441, %v2409, %v2473
        %v2506 = vsel %vm2442, %v2410, %v2474
        %v2507 = vld [vmem:[%s4] sm:$0xf]
        %v2508 = vld [vmem:[%s4 + $0x4] sm:$0xf]
        %v2509 = vld [vmem:[%s4 + $0x8] sm:$0xf]
        %v2510 = vld [vmem:[%s4 + $0xc] sm:$0xf]
        %v2511 = vld [vmem:[%s4 + $0x10] sm:$0xf]
        %v2512 = vld [vmem:[%s4 + $0x14] sm:$0xf]
        %v2513 = vld [vmem:[%s4 + $0x18] sm:$0xf]
        %v2514 = vld [vmem:[%s4 + $0x1c] sm:$0xf]
        %v2515 = vld [vmem:[%s4 + $0x20] sm:$0xf]
        %2516 = vst.msk [vmem:[%s474 + $0x1] sm:$0xff] %vm386, %v2475
        %2517 = vst.msk [vmem:[%s474 + $0x9] sm:$0xff] %vm386, %v2476
        %2518 = vst.msk [vmem:[%s474 + $0x19] sm:$0xff] %vm386, %v2477
        %2519 = vst.msk [vmem:[%s474 + $0x21] sm:$0xff] %vm386, %v2478
        %2520 = vst.msk [vmem:[%s474 + $0x31] sm:$0xff] %vm386, %v2479
        %2521 = vst.msk [vmem:[%s474 + $0x39] sm:$0xff] %vm386, %v2480
        %2522 = vst.msk [vmem:[%s474 + $0x49] sm:$0xff] %vm386, %v2481
        %2523 = vst.msk [vmem:[%s474 + $0x51] sm:$0xff] %vm386, %v2482
        %2524 = vst.msk [vmem:[%s474 + $0x61] sm:$0xff] %vm386, %v2483
        %2525 = vst.msk [vmem:[%s474 + $0x69] sm:$0xff] %vm386, %v2484
        %2526 = vst.msk [vmem:[%s474 + $0x79] sm:$0xff] %vm386, %v2485
        %2527 = vst.msk [vmem:[%s474 + $0x81] sm:$0xff] %vm386, %v2486
        %2528 = vst.msk [vmem:[%s474 + $0x91] sm:$0xff] %vm386, %v2487
        %2529 = vst.msk [vmem:[%s474 + $0x99] sm:$0xff] %vm386, %v2488
        %2530 = vst.msk [vmem:[%s474 + $0xa9] sm:$0xff] %vm386, %v2489
        %2531 = vst.msk [vmem:[%s474 + $0xb1] sm:$0xff] %vm386, %v2490
        %2532 = vst.msk [vmem:[%s474 + $0xc1] sm:$0xff] %vm386, %v2491
        %2533 = vst.msk [vmem:[%s474 + $0xc9] sm:$0xff] %vm386, %v2492
        %2534 = vst.msk [vmem:[%s474 + $0xd9] sm:$0xff] %vm386, %v2493
        %2535 = vst.msk [vmem:[%s474 + $0xe1] sm:$0xff] %vm386, %v2494
        %2536 = vst.msk [vmem:[%s474 + $0xf1] sm:$0xff] %vm386, %v2495
        %2537 = vst.msk [vmem:[%s474 + $0xf9] sm:$0xff] %vm386, %v2496
        %2538 = vst.msk [vmem:[%s474 + $0x109] sm:$0xff] %vm386, %v2497
        %2539 = vst.msk [vmem:[%s474 + $0x111] sm:$0xff] %vm386, %v2498
        %2540 = vst.msk [vmem:[%s474 + $0x121] sm:$0xff] %vm386, %v2499
        %2541 = vst.msk [vmem:[%s474 + $0x129] sm:$0xff] %vm386, %v2500
        %2542 = vst.msk [vmem:[%s474 + $0x139] sm:$0xff] %vm386, %v2501
        %2543 = vst.msk [vmem:[%s474 + $0x141] sm:$0xff] %vm386, %v2502
        %2544 = vst.msk [vmem:[%s474 + $0x151] sm:$0xff] %vm386, %v2503
        %2545 = vst.msk [vmem:[%s474 + $0x159] sm:$0xff] %vm386, %v2504
        %2546 = vst.msk [vmem:[%s474 + $0x169] sm:$0xff] %vm386, %v2505
        %2547 = vst.msk [vmem:[%s474 + $0x171] sm:$0xff] %vm386, %v2506
        %v2548 = vld [vmem:[#allocation2] sm:$0xff]
        %v2549 = vld [vmem:[#allocation2 + $0x8] sm:$0xff]
        %v2550 = vld [vmem:[#allocation2 + $0x18] sm:$0xff]
        %v2551 = vld [vmem:[#allocation2 + $0x20] sm:$0xff]
        %v2552 = vld [vmem:[#allocation2 + $0x30] sm:$0xff]
        %v2553 = vld [vmem:[#allocation2 + $0x38] sm:$0xff]
        %v2554 = vld [vmem:[#allocation2 + $0x48] sm:$0xff]
        %v2555 = vld [vmem:[#allocation2 + $0x50] sm:$0xff]
        %v2556 = vld [vmem:[#allocation2 + $0x60] sm:$0xff]
        %v2557 = vld [vmem:[#allocation2 + $0x68] sm:$0xff]
        %v2558 = vld [vmem:[#allocation2 + $0x78] sm:$0xff]
        %v2559 = vld [vmem:[#allocation2 + $0x80] sm:$0xff]
        %v2560 = vld [vmem:[#allocation2 + $0x90] sm:$0xff]
        %v2561 = vld [vmem:[#allocation2 + $0x98] sm:$0xff]
        %v2562 = vld [vmem:[#allocation2 + $0xa8] sm:$0xff]
        %v2563 = vld [vmem:[#allocation2 + $0xb0] sm:$0xff]
        %v2564 = vld [vmem:[#allocation2 + $0xc0] sm:$0xff]
        %v2565 = vld [vmem:[#allocation2 + $0xc8] sm:$0xff]
        %v2566 = vld [vmem:[#allocation2 + $0xd8] sm:$0xff]
        %v2567 = vld [vmem:[#allocation2 + $0xe0] sm:$0xff]
        %v2568 = vld [vmem:[#allocation2 + $0xf0] sm:$0xff]
        %v2569 = vld [vmem:[#allocation2 + $0xf8] sm:$0xff]
        %v2570 = vld [vmem:[#allocation2 + $0x108] sm:$0xff]
        %v2571 = vld [vmem:[#allocation2 + $0x110] sm:$0xff]
        %v2572 = vld [vmem:[#allocation2 + $0x120] sm:$0xff]
        %v2573 = vld [vmem:[#allocation2 + $0x128] sm:$0xff]
        %v2574 = vld [vmem:[#allocation2 + $0x138] sm:$0xff]
        %v2575 = vld [vmem:[#allocation2 + $0x140] sm:$0xff]
        %v2576 = vld [vmem:[#allocation2 + $0x150] sm:$0xff]
        %v2577 = vld [vmem:[#allocation2 + $0x158] sm:$0xff]
        %v2578 = vld [vmem:[#allocation2 + $0x168] sm:$0xff]
        %v2579 = vld [vmem:[#allocation2 + $0x170] sm:$0xff]
        %v2580 = vld [vmem:[#allocation2 + $0x1] sm:$0xff]
        %v2581 = vld [vmem:[#allocation2 + $0x9] sm:$0xff]
        %v2582 = vld [vmem:[#allocation2 + $0x19] sm:$0xff]
        %v2583 = vld [vmem:[#allocation2 + $0x21] sm:$0xff]
        %v2584 = vld [vmem:[#allocation2 + $0x31] sm:$0xff]
        %v2585 = vld [vmem:[#allocation2 + $0x39] sm:$0xff]
        %v2586 = vld [vmem:[#allocation2 + $0x49] sm:$0xff]
        %v2587 = vld [vmem:[#allocation2 + $0x51] sm:$0xff]
        %v2588 = vld [vmem:[#allocation2 + $0x61] sm:$0xff]
        %v2589 = vld [vmem:[#allocation2 + $0x69] sm:$0xff]
        %v2590 = vld [vmem:[#allocation2 + $0x79] sm:$0xff]
        %v2591 = vld [vmem:[#allocation2 + $0x81] sm:$0xff]
        %v2592 = vld [vmem:[#allocation2 + $0x91] sm:$0xff]
        %v2593 = vld [vmem:[#allocation2 + $0x99] sm:$0xff]
        %v2594 = vld [vmem:[#allocation2 + $0xa9] sm:$0xff]
        %v2595 = vld [vmem:[#allocation2 + $0xb1] sm:$0xff]
        %v2596 = vld [vmem:[#allocation2 + $0xc1] sm:$0xff]
        %v2597 = vld [vmem:[#allocation2 + $0xc9] sm:$0xff]
        %v2598 = vld [vmem:[#allocation2 + $0xd9] sm:$0xff]
        %v2599 = vld [vmem:[#allocation2 + $0xe1] sm:$0xff]
        %v2600 = vld [vmem:[#allocation2 + $0xf1] sm:$0xff]
        %v2601 = vld [vmem:[#allocation2 + $0xf9] sm:$0xff]
        %v2602 = vld [vmem:[#allocation2 + $0x109] sm:$0xff]
        %v2603 = vld [vmem:[#allocation2 + $0x111] sm:$0xff]
        %v2604 = vld [vmem:[#allocation2 + $0x121] sm:$0xff]
        %v2605 = vld [vmem:[#allocation2 + $0x129] sm:$0xff]
        %v2606 = vld [vmem:[#allocation2 + $0x139] sm:$0xff]
        %v2607 = vld [vmem:[#allocation2 + $0x141] sm:$0xff]
        %v2608 = vld [vmem:[#allocation2 + $0x151] sm:$0xff]
        %v2609 = vld [vmem:[#allocation2 + $0x159] sm:$0xff]
        %v2610 = vld [vmem:[#allocation2 + $0x169] sm:$0xff]
        %v2611 = vld [vmem:[#allocation2 + $0x171] sm:$0xff]
        %v2612 = vld [vmem:[#allocation2 + $0x2] sm:$0xff]
        %v2613 = vld [vmem:[#allocation2 + $0xa] sm:$0xff]
        %v2614 = vld [vmem:[#allocation2 + $0x1a] sm:$0xff]
        %v2615 = vld [vmem:[#allocation2 + $0x22] sm:$0xff]
        %v2616 = vld [vmem:[#allocation2 + $0x32] sm:$0xff]
        %v2617 = vld [vmem:[#allocation2 + $0x3a] sm:$0xff]
        %v2618 = vld [vmem:[#allocation2 + $0x4a] sm:$0xff]
        %v2619 = vld [vmem:[#allocation2 + $0x52] sm:$0xff]
        %v2620 = vld [vmem:[#allocation2 + $0x62] sm:$0xff]
        %v2621 = vld [vmem:[#allocation2 + $0x6a] sm:$0xff]
        %v2622 = vld [vmem:[#allocation2 + $0x7a] sm:$0xff]
        %v2623 = vld [vmem:[#allocation2 + $0x82] sm:$0xff]
        %v2624 = vld [vmem:[#allocation2 + $0x92] sm:$0xff]
        %v2625 = vld [vmem:[#allocation2 + $0x9a] sm:$0xff]
        %v2626 = vld [vmem:[#allocation2 + $0xaa] sm:$0xff]
        %v2627 = vld [vmem:[#allocation2 + $0xb2] sm:$0xff]
        %v2628 = vld [vmem:[#allocation2 + $0xc2] sm:$0xff]
        %v2629 = vld [vmem:[#allocation2 + $0xca] sm:$0xff]
        %v2630 = vld [vmem:[#allocation2 + $0xda] sm:$0xff]
        %v2631 = vld [vmem:[#allocation2 + $0xe2] sm:$0xff]
        %v2632 = vld [vmem:[#allocation2 + $0xf2] sm:$0xff]
        %v2633 = vld [vmem:[#allocation2 + $0xfa] sm:$0xff]
        %v2634 = vld [vmem:[#allocation2 + $0x10a] sm:$0xff]
        %v2635 = vld [vmem:[#allocation2 + $0x112] sm:$0xff]
        %v2636 = vld [vmem:[#allocation2 + $0x122] sm:$0xff]
        %v2637 = vld [vmem:[#allocation2 + $0x12a] sm:$0xff]
        %v2638 = vld [vmem:[#allocation2 + $0x13a] sm:$0xff]
        %v2639 = vld [vmem:[#allocation2 + $0x142] sm:$0xff]
        %v2640 = vld [vmem:[#allocation2 + $0x152] sm:$0xff]
        %v2641 = vld [vmem:[#allocation2 + $0x15a] sm:$0xff]
        %v2642 = vld [vmem:[#allocation2 + $0x16a] sm:$0xff]
        %v2643 = vld [vmem:[#allocation2 + $0x172] sm:$0xff]
        %v2644 = vld [vmem:[%s474] sm:$0xff]
        %v2645 = vld [vmem:[%s474 + $0x8] sm:$0xff]
        %v2646 = vld [vmem:[%s474 + $0x18] sm:$0xff]
        %v2647 = vld [vmem:[%s474 + $0x20] sm:$0xff]
        %v2648 = vld [vmem:[%s474 + $0x30] sm:$0xff]
        %v2649 = vld [vmem:[%s474 + $0x38] sm:$0xff]
        %v2650 = vld [vmem:[%s474 + $0x48] sm:$0xff]
        %v2651 = vld [vmem:[%s474 + $0x50] sm:$0xff]
        %v2652 = vld [vmem:[%s474 + $0x60] sm:$0xff]
        %v2653 = vld [vmem:[%s474 + $0x68] sm:$0xff]
        %v2654 = vld [vmem:[%s474 + $0x78] sm:$0xff]
        %v2655 = vld [vmem:[%s474 + $0x80] sm:$0xff]
        %v2656 = vld [vmem:[%s474 + $0x90] sm:$0xff]
        %v2657 = vld [vmem:[%s474 + $0x98] sm:$0xff]
        %v2658 = vld [vmem:[%s474 + $0xa8] sm:$0xff]
        %v2659 = vld [vmem:[%s474 + $0xb0] sm:$0xff]
        %v2660 = vld [vmem:[%s474 + $0xc0] sm:$0xff]
        %v2661 = vld [vmem:[%s474 + $0xc8] sm:$0xff]
        %v2662 = vld [vmem:[%s474 + $0xd8] sm:$0xff]
        %v2663 = vld [vmem:[%s474 + $0xe0] sm:$0xff]
        %v2664 = vld [vmem:[%s474 + $0xf0] sm:$0xff]
        %v2665 = vld [vmem:[%s474 + $0xf8] sm:$0xff]
        %v2666 = vld [vmem:[%s474 + $0x108] sm:$0xff]
        %v2667 = vld [vmem:[%s474 + $0x110] sm:$0xff]
        %v2668 = vld [vmem:[%s474 + $0x120] sm:$0xff]
        %v2669 = vld [vmem:[%s474 + $0x128] sm:$0xff]
        %v2670 = vld [vmem:[%s474 + $0x138] sm:$0xff]
        %v2671 = vld [vmem:[%s474 + $0x140] sm:$0xff]
        %v2672 = vld [vmem:[%s474 + $0x150] sm:$0xff]
        %v2673 = vld [vmem:[%s474 + $0x158] sm:$0xff]
        %v2674 = vld [vmem:[%s474 + $0x168] sm:$0xff]
        %v2675 = vld [vmem:[%s474 + $0x170] sm:$0xff]
        %v2676 = vld [vmem:[%s474 + $0x1] sm:$0xff]
        %v2677 = vld [vmem:[%s474 + $0x9] sm:$0xff]
        %v2678 = vld [vmem:[%s474 + $0x19] sm:$0xff]
        %v2679 = vld [vmem:[%s474 + $0x21] sm:$0xff]
        %v2680 = vld [vmem:[%s474 + $0x31] sm:$0xff]
        %v2681 = vld [vmem:[%s474 + $0x39] sm:$0xff]
        %v2682 = vld [vmem:[%s474 + $0x49] sm:$0xff]
        %v2683 = vld [vmem:[%s474 + $0x51] sm:$0xff]
        %v2684 = vld [vmem:[%s474 + $0x61] sm:$0xff]
        %v2685 = vld [vmem:[%s474 + $0x69] sm:$0xff]
        %v2686 = vld [vmem:[%s474 + $0x79] sm:$0xff]
        %v2687 = vld [vmem:[%s474 + $0x81] sm:$0xff]
        %v2688 = vld [vmem:[%s474 + $0x91] sm:$0xff]
        %v2689 = vld [vmem:[%s474 + $0x99] sm:$0xff]
        %v2690 = vld [vmem:[%s474 + $0xa9] sm:$0xff]
        %v2691 = vld [vmem:[%s474 + $0xb1] sm:$0xff]
        %v2692 = vld [vmem:[%s474 + $0xc1] sm:$0xff]
        %v2693 = vld [vmem:[%s474 + $0xc9] sm:$0xff]
        %v2694 = vld [vmem:[%s474 + $0xd9] sm:$0xff]
        %v2695 = vld [vmem:[%s474 + $0xe1] sm:$0xff]
        %v2696 = vld [vmem:[%s474 + $0xf1] sm:$0xff]
        %v2697 = vld [vmem:[%s474 + $0xf9] sm:$0xff]
        %v2698 = vld [vmem:[%s474 + $0x109] sm:$0xff]
        %v2699 = vld [vmem:[%s474 + $0x111] sm:$0xff]
        %v2700 = vld [vmem:[%s474 + $0x121] sm:$0xff]
        %v2701 = vld [vmem:[%s474 + $0x129] sm:$0xff]
        %v2702 = vld [vmem:[%s474 + $0x139] sm:$0xff]
        %v2703 = vld [vmem:[%s474 + $0x141] sm:$0xff]
        %v2704 = vld [vmem:[%s474 + $0x151] sm:$0xff]
        %v2705 = vld [vmem:[%s474 + $0x159] sm:$0xff]
        %v2706 = vld [vmem:[%s474 + $0x169] sm:$0xff]
        %v2707 = vld [vmem:[%s474 + $0x171] sm:$0xff]
        %v2708 = vld [vmem:[%s474 + $0x2] sm:$0xff]
        %v2709 = vld [vmem:[%s474 + $0xa] sm:$0xff]
        %v2710 = vld [vmem:[%s474 + $0x1a] sm:$0xff]
        %v2711 = vld [vmem:[%s474 + $0x22] sm:$0xff]
        %v2712 = vld [vmem:[%s474 + $0x32] sm:$0xff]
        %v2713 = vld [vmem:[%s474 + $0x3a] sm:$0xff]
        %v2714 = vld [vmem:[%s474 + $0x4a] sm:$0xff]
        %v2715 = vld [vmem:[%s474 + $0x52] sm:$0xff]
        %v2716 = vld [vmem:[%s474 + $0x62] sm:$0xff]
        %v2717 = vld [vmem:[%s474 + $0x6a] sm:$0xff]
        %v2718 = vld [vmem:[%s474 + $0x7a] sm:$0xff]
        %v2719 = vld [vmem:[%s474 + $0x82] sm:$0xff]
        %v2720 = vld [vmem:[%s474 + $0x92] sm:$0xff]
        %v2721 = vld [vmem:[%s474 + $0x9a] sm:$0xff]
        %v2722 = vld [vmem:[%s474 + $0xaa] sm:$0xff]
        %v2723 = vld [vmem:[%s474 + $0xb2] sm:$0xff]
        %v2724 = vld [vmem:[%s474 + $0xc2] sm:$0xff]
        %v2725 = vld [vmem:[%s474 + $0xca] sm:$0xff]
        %v2726 = vld [vmem:[%s474 + $0xda] sm:$0xff]
        %v2727 = vld [vmem:[%s474 + $0xe2] sm:$0xff]
        %v2728 = vld [vmem:[%s474 + $0xf2] sm:$0xff]
        %v2729 = vld [vmem:[%s474 + $0xfa] sm:$0xff]
        %v2730 = vld [vmem:[%s474 + $0x10a] sm:$0xff]
        %v2731 = vld [vmem:[%s474 + $0x112] sm:$0xff]
        %v2732 = vld [vmem:[%s474 + $0x122] sm:$0xff]
        %v2733 = vld [vmem:[%s474 + $0x12a] sm:$0xff]
        %v2734 = vld [vmem:[%s474 + $0x13a] sm:$0xff]
        %v2735 = vld [vmem:[%s474 + $0x142] sm:$0xff]
        %v2736 = vld [vmem:[%s474 + $0x152] sm:$0xff]
        %v2737 = vld [vmem:[%s474 + $0x15a] sm:$0xff]
        %v2738 = vld [vmem:[%s474 + $0x16a] sm:$0xff]
        %v2739 = vld [vmem:[%s474 + $0x172] sm:$0xff]
        %v2740 = vld [vmem:[%s705] sm:$0xff]
        %v2741 = vld [vmem:[%s705 + $0x8] sm:$0xff]
        %v2742 = vld [vmem:[%s705 + $0x18] sm:$0xff]
        %v2743 = vld [vmem:[%s705 + $0x20] sm:$0xff]
        %v2744 = vld [vmem:[%s705 + $0x30] sm:$0xff]
        %v2745 = vld [vmem:[%s705 + $0x38] sm:$0xff]
        %v2746 = vld [vmem:[%s705 + $0x48] sm:$0xff]
        %v2747 = vld [vmem:[%s705 + $0x50] sm:$0xff]
        %v2748 = vld [vmem:[%s705 + $0x60] sm:$0xff]
        %v2749 = vld [vmem:[%s705 + $0x68] sm:$0xff]
        %v2750 = vld [vmem:[%s705 + $0x78] sm:$0xff]
        %v2751 = vld [vmem:[%s705 + $0x80] sm:$0xff]
        %v2752 = vld [vmem:[%s705 + $0x90] sm:$0xff]
        %v2753 = vld [vmem:[%s705 + $0x98] sm:$0xff]
        %v2754 = vld [vmem:[%s705 + $0xa8] sm:$0xff]
        %v2755 = vld [vmem:[%s705 + $0xb0] sm:$0xff]
        %v2756 = vld [vmem:[%s705 + $0xc0] sm:$0xff]
        %v2757 = vld [vmem:[%s705 + $0xc8] sm:$0xff]
        %v2758 = vld [vmem:[%s705 + $0xd8] sm:$0xff]
        %v2759 = vld [vmem:[%s705 + $0xe0] sm:$0xff]
        %v2760 = vld [vmem:[%s705 + $0xf0] sm:$0xff]
        %v2761 = vld [vmem:[%s705 + $0xf8] sm:$0xff]
        %v2762 = vld [vmem:[%s705 + $0x108] sm:$0xff]
        %v2763 = vld [vmem:[%s705 + $0x110] sm:$0xff]
        %v2764 = vld [vmem:[%s705 + $0x120] sm:$0xff]
        %v2765 = vld [vmem:[%s705 + $0x128] sm:$0xff]
        %v2766 = vld [vmem:[%s705 + $0x138] sm:$0xff]
        %v2767 = vld [vmem:[%s705 + $0x140] sm:$0xff]
        %v2768 = vld [vmem:[%s705 + $0x150] sm:$0xff]
        %v2769 = vld [vmem:[%s705 + $0x158] sm:$0xff]
        %v2770 = vld [vmem:[%s705 + $0x168] sm:$0xff]
        %v2771 = vld [vmem:[%s705 + $0x170] sm:$0xff]
        %v2772 = vld [vmem:[%s705 + $0x1] sm:$0xff]
        %v2773 = vld [vmem:[%s705 + $0x9] sm:$0xff]
        %v2774 = vld [vmem:[%s705 + $0x19] sm:$0xff]
        %v2775 = vld [vmem:[%s705 + $0x21] sm:$0xff]
        %v2776 = vld [vmem:[%s705 + $0x31] sm:$0xff]
        %v2777 = vld [vmem:[%s705 + $0x39] sm:$0xff]
        %v2778 = vld [vmem:[%s705 + $0x49] sm:$0xff]
        %v2779 = vld [vmem:[%s705 + $0x51] sm:$0xff]
        %v2780 = vld [vmem:[%s705 + $0x61] sm:$0xff]
        %v2781 = vld [vmem:[%s705 + $0x69] sm:$0xff]
        %v2782 = vld [vmem:[%s705 + $0x79] sm:$0xff]
        %v2783 = vld [vmem:[%s705 + $0x81] sm:$0xff]
        %v2784 = vld [vmem:[%s705 + $0x91] sm:$0xff]
        %v2785 = vld [vmem:[%s705 + $0x99] sm:$0xff]
        %v2786 = vld [vmem:[%s705 + $0xa9] sm:$0xff]
        %v2787 = vld [vmem:[%s705 + $0xb1] sm:$0xff]
        %v2788 = vld [vmem:[%s705 + $0xc1] sm:$0xff]
        %v2789 = vld [vmem:[%s705 + $0xc9] sm:$0xff]
        %v2790 = vld [vmem:[%s705 + $0xd9] sm:$0xff]
        %v2791 = vld [vmem:[%s705 + $0xe1] sm:$0xff]
        %v2792 = vld [vmem:[%s705 + $0xf1] sm:$0xff]
        %v2793 = vld [vmem:[%s705 + $0xf9] sm:$0xff]
        %v2794 = vld [vmem:[%s705 + $0x109] sm:$0xff]
        %v2795 = vld [vmem:[%s705 + $0x111] sm:$0xff]
        %v2796 = vld [vmem:[%s705 + $0x121] sm:$0xff]
        %v2797 = vld [vmem:[%s705 + $0x129] sm:$0xff]
        %v2798 = vld [vmem:[%s705 + $0x139] sm:$0xff]
        %v2799 = vld [vmem:[%s705 + $0x141] sm:$0xff]
        %v2800 = vld [vmem:[%s705 + $0x151] sm:$0xff]
        %v2801 = vld [vmem:[%s705 + $0x159] sm:$0xff]
        %v2802 = vld [vmem:[%s705 + $0x169] sm:$0xff]
        %v2803 = vld [vmem:[%s705 + $0x171] sm:$0xff]
        %v2804 = vld [vmem:[%s705 + $0x2] sm:$0xff]
        %v2805 = vld [vmem:[%s705 + $0xa] sm:$0xff]
        %v2806 = vld [vmem:[%s705 + $0x1a] sm:$0xff]
        %v2807 = vld [vmem:[%s705 + $0x22] sm:$0xff]
        %v2808 = vld [vmem:[%s705 + $0x32] sm:$0xff]
        %v2809 = vld [vmem:[%s705 + $0x3a] sm:$0xff]
        %v2810 = vld [vmem:[%s705 + $0x4a] sm:$0xff]
        %v2811 = vld [vmem:[%s705 + $0x52] sm:$0xff]
        %v2812 = vld [vmem:[%s705 + $0x62] sm:$0xff]
        %v2813 = vld [vmem:[%s705 + $0x6a] sm:$0xff]
        %v2814 = vld [vmem:[%s705 + $0x7a] sm:$0xff]
        %v2815 = vld [vmem:[%s705 + $0x82] sm:$0xff]
        %v2816 = vld [vmem:[%s705 + $0x92] sm:$0xff]
        %v2817 = vld [vmem:[%s705 + $0x9a] sm:$0xff]
        %v2818 = vld [vmem:[%s705 + $0xaa] sm:$0xff]
        %v2819 = vld [vmem:[%s705 + $0xb2] sm:$0xff]
        %v2820 = vld [vmem:[%s705 + $0xc2] sm:$0xff]
        %v2821 = vld [vmem:[%s705 + $0xca] sm:$0xff]
        %v2822 = vld [vmem:[%s705 + $0xda] sm:$0xff]
        %v2823 = vld [vmem:[%s705 + $0xe2] sm:$0xff]
        %v2824 = vld [vmem:[%s705 + $0xf2] sm:$0xff]
        %v2825 = vld [vmem:[%s705 + $0xfa] sm:$0xff]
        %v2826 = vld [vmem:[%s705 + $0x10a] sm:$0xff]
        %v2827 = vld [vmem:[%s705 + $0x112] sm:$0xff]
        %v2828 = vld [vmem:[%s705 + $0x122] sm:$0xff]
        %v2829 = vld [vmem:[%s705 + $0x12a] sm:$0xff]
        %v2830 = vld [vmem:[%s705 + $0x13a] sm:$0xff]
        %v2831 = vld [vmem:[%s705 + $0x142] sm:$0xff]
        %v2832 = vld [vmem:[%s705 + $0x152] sm:$0xff]
        %v2833 = vld [vmem:[%s705 + $0x15a] sm:$0xff]
        %v2834 = vld [vmem:[%s705 + $0x16a] sm:$0xff]
        %v2835 = vld [vmem:[%s705 + $0x172] sm:$0xff]
        %2868 = vrot.lane.b32.xlu0 %v2580, 8
        %v2869 = vpop.permute.xlu0 %2868
        %2870 = vrot.lane.b32.xlu0 %v2581, 8
        %v2871 = vpop.permute.xlu0 %2870
        %2872 = vrot.lane.b32.xlu0 %v2582, 8
        %v2873 = vpop.permute.xlu0 %2872
        %2874 = vrot.lane.b32.xlu0 %v2583, 8
        %v2875 = vpop.permute.xlu0 %2874
        %2876 = vrot.lane.b32.xlu0 %v2584, 8
        %v2877 = vpop.permute.xlu0 %2876
        %2878 = vrot.lane.b32.xlu0 %v2585, 8
        %v2879 = vpop.permute.xlu0 %2878
        %2880 = vrot.lane.b32.xlu0 %v2586, 8
        %v2881 = vpop.permute.xlu0 %2880
        %2882 = vrot.lane.b32.xlu0 %v2587, 8
        %v2883 = vpop.permute.xlu0 %2882
        %2884 = vrot.lane.b32.xlu0 %v2588, 8
        %v2885 = vpop.permute.xlu0 %2884
        %2886 = vrot.lane.b32.xlu0 %v2589, 8
        %v2887 = vpop.permute.xlu0 %2886
        %2888 = vrot.lane.b32.xlu0 %v2590, 8
        %v2889 = vpop.permute.xlu0 %2888
        %2890 = vrot.lane.b32.xlu0 %v2591, 8
        %v2891 = vpop.permute.xlu0 %2890
        %2892 = vrot.lane.b32.xlu0 %v2592, 8
        %v2893 = vpop.permute.xlu0 %2892
        %2894 = vrot.lane.b32.xlu0 %v2593, 8
        %v2895 = vpop.permute.xlu0 %2894
        %2896 = vrot.lane.b32.xlu0 %v2594, 8
        %v2897 = vpop.permute.xlu0 %2896
        %2898 = vrot.lane.b32.xlu0 %v2595, 8
        %v2899 = vpop.permute.xlu0 %2898
        %2900 = vrot.lane.b32.xlu0 %v2596, 8
        %v2901 = vpop.permute.xlu0 %2900
        %2902 = vrot.lane.b32.xlu0 %v2597, 8
        %v2903 = vpop.permute.xlu0 %2902
        %2904 = vrot.lane.b32.xlu0 %v2598, 8
        %v2905 = vpop.permute.xlu0 %2904
        %2906 = vrot.lane.b32.xlu0 %v2599, 8
        %v2907 = vpop.permute.xlu0 %2906
        %2908 = vrot.lane.b32.xlu0 %v2600, 8
        %v2909 = vpop.permute.xlu0 %2908
        %2910 = vrot.lane.b32.xlu0 %v2601, 8
        %v2911 = vpop.permute.xlu0 %2910
        %2912 = vrot.lane.b32.xlu0 %v2602, 8
        %v2913 = vpop.permute.xlu0 %2912
        %2914 = vrot.lane.b32.xlu0 %v2603, 8
        %v2915 = vpop.permute.xlu0 %2914
        %2916 = vrot.lane.b32.xlu0 %v2604, 8
        %v2917 = vpop.permute.xlu0 %2916
        %2918 = vrot.lane.b32.xlu0 %v2605, 8
        %v2919 = vpop.permute.xlu0 %2918
        %2920 = vrot.lane.b32.xlu0 %v2606, 8
        %v2921 = vpop.permute.xlu0 %2920
        %2922 = vrot.lane.b32.xlu0 %v2607, 8
        %v2923 = vpop.permute.xlu0 %2922
        %2924 = vrot.lane.b32.xlu0 %v2608, 8
        %v2925 = vpop.permute.xlu0 %2924
        %2926 = vrot.lane.b32.xlu0 %v2609, 8
        %v2927 = vpop.permute.xlu0 %2926
        %2928 = vrot.lane.b32.xlu0 %v2610, 8
        %v2929 = vpop.permute.xlu0 %2928
        %2930 = vrot.lane.b32.xlu0 %v2611, 8
        %v2931 = vpop.permute.xlu0 %2930
        %2996 = vrot.lane.b32.xlu0 %v2612, 16
        %v2997 = vpop.permute.xlu0 %2996
        %2998 = vrot.lane.b32.xlu0 %v2613, 16
        %v2999 = vpop.permute.xlu0 %2998
        %3000 = vrot.lane.b32.xlu0 %v2614, 16
        %v3001 = vpop.permute.xlu0 %3000
        %3002 = vrot.lane.b32.xlu0 %v2615, 16
        %v3003 = vpop.permute.xlu0 %3002
        %3004 = vrot.lane.b32.xlu0 %v2616, 16
        %v3005 = vpop.permute.xlu0 %3004
        %3006 = vrot.lane.b32.xlu0 %v2617, 16
        %v3007 = vpop.permute.xlu0 %3006
        %3008 = vrot.lane.b32.xlu0 %v2618, 16
        %v3009 = vpop.permute.xlu0 %3008
        %3010 = vrot.lane.b32.xlu0 %v2619, 16
        %v3011 = vpop.permute.xlu0 %3010
        %3012 = vrot.lane.b32.xlu0 %v2620, 16
        %v3013 = vpop.permute.xlu0 %3012
        %3014 = vrot.lane.b32.xlu0 %v2621, 16
        %v3015 = vpop.permute.xlu0 %3014
        %3016 = vrot.lane.b32.xlu0 %v2622, 16
        %v3017 = vpop.permute.xlu0 %3016
        %3018 = vrot.lane.b32.xlu0 %v2623, 16
        %v3019 = vpop.permute.xlu0 %3018
        %3020 = vrot.lane.b32.xlu0 %v2624, 16
        %v3021 = vpop.permute.xlu0 %3020
        %3022 = vrot.lane.b32.xlu0 %v2625, 16
        %v3023 = vpop.permute.xlu0 %3022
        %3024 = vrot.lane.b32.xlu0 %v2626, 16
        %v3025 = vpop.permute.xlu0 %3024
        %3026 = vrot.lane.b32.xlu0 %v2627, 16
        %v3027 = vpop.permute.xlu0 %3026
        %3028 = vrot.lane.b32.xlu0 %v2628, 16
        %v3029 = vpop.permute.xlu0 %3028
        %3030 = vrot.lane.b32.xlu0 %v2629, 16
        %v3031 = vpop.permute.xlu0 %3030
        %3032 = vrot.lane.b32.xlu0 %v2630, 16
        %v3033 = vpop.permute.xlu0 %3032
        %3034 = vrot.lane.b32.xlu0 %v2631, 16
        %v3035 = vpop.permute.xlu0 %3034
        %3036 = vrot.lane.b32.xlu0 %v2632, 16
        %v3037 = vpop.permute.xlu0 %3036
        %3038 = vrot.lane.b32.xlu0 %v2633, 16
        %v3039 = vpop.permute.xlu0 %3038
        %3040 = vrot.lane.b32.xlu0 %v2634, 16
        %v3041 = vpop.permute.xlu0 %3040
        %3042 = vrot.lane.b32.xlu0 %v2635, 16
        %v3043 = vpop.permute.xlu0 %3042
        %3044 = vrot.lane.b32.xlu0 %v2636, 16
        %v3045 = vpop.permute.xlu0 %3044
        %3046 = vrot.lane.b32.xlu0 %v2637, 16
        %v3047 = vpop.permute.xlu0 %3046
        %3048 = vrot.lane.b32.xlu0 %v2638, 16
        %v3049 = vpop.permute.xlu0 %3048
        %3050 = vrot.lane.b32.xlu0 %v2639, 16
        %v3051 = vpop.permute.xlu0 %3050
        %3052 = vrot.lane.b32.xlu0 %v2640, 16
        %v3053 = vpop.permute.xlu0 %3052
        %3054 = vrot.lane.b32.xlu0 %v2641, 16
        %v3055 = vpop.permute.xlu0 %3054
        %3056 = vrot.lane.b32.xlu0 %v2642, 16
        %v3057 = vpop.permute.xlu0 %3056
        %3058 = vrot.lane.b32.xlu0 %v2643, 16
        %v3059 = vpop.permute.xlu0 %3058
        %3124 = vrot.lane.b32.xlu0 %v2644, 24
        %v3125 = vpop.permute.xlu0 %3124
        %3126 = vrot.lane.b32.xlu0 %v2645, 24
        %v3127 = vpop.permute.xlu0 %3126
        %3128 = vrot.lane.b32.xlu0 %v2646, 24
        %v3129 = vpop.permute.xlu0 %3128
        %3130 = vrot.lane.b32.xlu0 %v2647, 24
        %v3131 = vpop.permute.xlu0 %3130
        %3132 = vrot.lane.b32.xlu0 %v2648, 24
        %v3133 = vpop.permute.xlu0 %3132
        %3134 = vrot.lane.b32.xlu0 %v2649, 24
        %v3135 = vpop.permute.xlu0 %3134
        %3136 = vrot.lane.b32.xlu0 %v2650, 24
        %v3137 = vpop.permute.xlu0 %3136
        %3138 = vrot.lane.b32.xlu0 %v2651, 24
        %v3139 = vpop.permute.xlu0 %3138
        %3140 = vrot.lane.b32.xlu0 %v2652, 24
        %v3141 = vpop.permute.xlu0 %3140
        %3142 = vrot.lane.b32.xlu0 %v2653, 24
        %v3143 = vpop.permute.xlu0 %3142
        %3144 = vrot.lane.b32.xlu0 %v2654, 24
        %v3145 = vpop.permute.xlu0 %3144
        %3146 = vrot.lane.b32.xlu0 %v2655, 24
        %v3147 = vpop.permute.xlu0 %3146
        %3148 = vrot.lane.b32.xlu0 %v2656, 24
        %v3149 = vpop.permute.xlu0 %3148
        %3150 = vrot.lane.b32.xlu0 %v2657, 24
        %v3151 = vpop.permute.xlu0 %3150
        %3152 = vrot.lane.b32.xlu0 %v2658, 24
        %v3153 = vpop.permute.xlu0 %3152
        %3154 = vrot.lane.b32.xlu0 %v2659, 24
        %v3155 = vpop.permute.xlu0 %3154
        %3156 = vrot.lane.b32.xlu0 %v2660, 24
        %v3157 = vpop.permute.xlu0 %3156
        %3158 = vrot.lane.b32.xlu0 %v2661, 24
        %v3159 = vpop.permute.xlu0 %3158
        %3160 = vrot.lane.b32.xlu0 %v2662, 24
        %v3161 = vpop.permute.xlu0 %3160
        %3162 = vrot.lane.b32.xlu0 %v2663, 24
        %v3163 = vpop.permute.xlu0 %3162
        %3164 = vrot.lane.b32.xlu0 %v2664, 24
        %v3165 = vpop.permute.xlu0 %3164
        %3166 = vrot.lane.b32.xlu0 %v2665, 24
        %v3167 = vpop.permute.xlu0 %3166
        %3168 = vrot.lane.b32.xlu0 %v2666, 24
        %v3169 = vpop.permute.xlu0 %3168
        %3170 = vrot.lane.b32.xlu0 %v2667, 24
        %v3171 = vpop.permute.xlu0 %3170
        %3172 = vrot.lane.b32.xlu0 %v2668, 24
        %v3173 = vpop.permute.xlu0 %3172
        %3174 = vrot.lane.b32.xlu0 %v2669, 24
        %v3175 = vpop.permute.xlu0 %3174
        %3176 = vrot.lane.b32.xlu0 %v2670, 24
        %v3177 = vpop.permute.xlu0 %3176
        %3178 = vrot.lane.b32.xlu0 %v2671, 24
        %v3179 = vpop.permute.xlu0 %3178
        %3180 = vrot.lane.b32.xlu0 %v2672, 24
        %v3181 = vpop.permute.xlu0 %3180
        %3182 = vrot.lane.b32.xlu0 %v2673, 24
        %v3183 = vpop.permute.xlu0 %3182
        %3184 = vrot.lane.b32.xlu0 %v2674, 24
        %v3185 = vpop.permute.xlu0 %3184
        %3186 = vrot.lane.b32.xlu0 %v2675, 24
        %v3187 = vpop.permute.xlu0 %3186
        %3252 = vrot.lane.b32.xlu0 %v2676, 32
        %v3253 = vpop.permute.xlu0 %3252
        %3254 = vrot.lane.b32.xlu0 %v2677, 32
        %v3255 = vpop.permute.xlu0 %3254
        %3256 = vrot.lane.b32.xlu0 %v2678, 32
        %v3257 = vpop.permute.xlu0 %3256
        %3258 = vrot.lane.b32.xlu0 %v2679, 32
        %v3259 = vpop.permute.xlu0 %3258
        %3260 = vrot.lane.b32.xlu0 %v2680, 32
        %v3261 = vpop.permute.xlu0 %3260
        %3262 = vrot.lane.b32.xlu0 %v2681, 32
        %v3263 = vpop.permute.xlu0 %3262
        %3264 = vrot.lane.b32.xlu0 %v2682, 32
        %v3265 = vpop.permute.xlu0 %3264
        %3266 = vrot.lane.b32.xlu0 %v2683, 32
        %v3267 = vpop.permute.xlu0 %3266
        %3268 = vrot.lane.b32.xlu0 %v2684, 32
        %v3269 = vpop.permute.xlu0 %3268
        %3270 = vrot.lane.b32.xlu0 %v2685, 32
        %v3271 = vpop.permute.xlu0 %3270
        %3272 = vrot.lane.b32.xlu0 %v2686, 32
        %v3273 = vpop.permute.xlu0 %3272
        %3274 = vrot.lane.b32.xlu0 %v2687, 32
        %v3275 = vpop.permute.xlu0 %3274
        %3276 = vrot.lane.b32.xlu0 %v2688, 32
        %v3277 = vpop.permute.xlu0 %3276
        %3278 = vrot.lane.b32.xlu0 %v2689, 32
        %v3279 = vpop.permute.xlu0 %3278
        %3280 = vrot.lane.b32.xlu0 %v2690, 32
        %v3281 = vpop.permute.xlu0 %3280
        %3282 = vrot.lane.b32.xlu0 %v2691, 32
        %v3283 = vpop.permute.xlu0 %3282
        %3284 = vrot.lane.b32.xlu0 %v2692, 32
        %v3285 = vpop.permute.xlu0 %3284
        %3286 = vrot.lane.b32.xlu0 %v2693, 32
        %v3287 = vpop.permute.xlu0 %3286
        %3288 = vrot.lane.b32.xlu0 %v2694, 32
        %v3289 = vpop.permute.xlu0 %3288
        %3290 = vrot.lane.b32.xlu0 %v2695, 32
        %v3291 = vpop.permute.xlu0 %3290
        %3292 = vrot.lane.b32.xlu0 %v2696, 32
        %v3293 = vpop.permute.xlu0 %3292
        %3294 = vrot.lane.b32.xlu0 %v2697, 32
        %v3295 = vpop.permute.xlu0 %3294
        %3296 = vrot.lane.b32.xlu0 %v2698, 32
        %v3297 = vpop.permute.xlu0 %3296
        %3298 = vrot.lane.b32.xlu0 %v2699, 32
        %v3299 = vpop.permute.xlu0 %3298
        %3300 = vrot.lane.b32.xlu0 %v2700, 32
        %v3301 = vpop.permute.xlu0 %3300
        %3302 = vrot.lane.b32.xlu0 %v2701, 32
        %v3303 = vpop.permute.xlu0 %3302
        %3304 = vrot.lane.b32.xlu0 %v2702, 32
        %v3305 = vpop.permute.xlu0 %3304
        %3306 = vrot.lane.b32.xlu0 %v2703, 32
        %v3307 = vpop.permute.xlu0 %3306
        %3308 = vrot.lane.b32.xlu0 %v2704, 32
        %v3309 = vpop.permute.xlu0 %3308
        %3310 = vrot.lane.b32.xlu0 %v2705, 32
        %v3311 = vpop.permute.xlu0 %3310
        %3312 = vrot.lane.b32.xlu0 %v2706, 32
        %v3313 = vpop.permute.xlu0 %3312
        %3314 = vrot.lane.b32.xlu0 %v2707, 32
        %v3315 = vpop.permute.xlu0 %3314
        %3380 = vrot.lane.b32.xlu0 %v2708, 40
        %v3381 = vpop.permute.xlu0 %3380
        %3382 = vrot.lane.b32.xlu0 %v2709, 40
        %v3383 = vpop.permute.xlu0 %3382
        %3384 = vrot.lane.b32.xlu0 %v2710, 40
        %v3385 = vpop.permute.xlu0 %3384
        %3386 = vrot.lane.b32.xlu0 %v2711, 40
        %v3387 = vpop.permute.xlu0 %3386
        %3388 = vrot.lane.b32.xlu0 %v2712, 40
        %v3389 = vpop.permute.xlu0 %3388
        %3390 = vrot.lane.b32.xlu0 %v2713, 40
        %v3391 = vpop.permute.xlu0 %3390
        %3392 = vrot.lane.b32.xlu0 %v2714, 40
        %v3393 = vpop.permute.xlu0 %3392
        %3394 = vrot.lane.b32.xlu0 %v2715, 40
        %v3395 = vpop.permute.xlu0 %3394
        %3396 = vrot.lane.b32.xlu0 %v2716, 40
        %v3397 = vpop.permute.xlu0 %3396
        %3398 = vrot.lane.b32.xlu0 %v2717, 40
        %v3399 = vpop.permute.xlu0 %3398
        %3400 = vrot.lane.b32.xlu0 %v2718, 40
        %v3401 = vpop.permute.xlu0 %3400
        %3402 = vrot.lane.b32.xlu0 %v2719, 40
        %v3403 = vpop.permute.xlu0 %3402
        %3404 = vrot.lane.b32.xlu0 %v2720, 40
        %v3405 = vpop.permute.xlu0 %3404
        %3406 = vrot.lane.b32.xlu0 %v2721, 40
        %v3407 = vpop.permute.xlu0 %3406
        %3408 = vrot.lane.b32.xlu0 %v2722, 40
        %v3409 = vpop.permute.xlu0 %3408
        %3410 = vrot.lane.b32.xlu0 %v2723, 40
        %v3411 = vpop.permute.xlu0 %3410
        %3412 = vrot.lane.b32.xlu0 %v2724, 40
        %v3413 = vpop.permute.xlu0 %3412
        %3414 = vrot.lane.b32.xlu0 %v2725, 40
        %v3415 = vpop.permute.xlu0 %3414
        %3416 = vrot.lane.b32.xlu0 %v2726, 40
        %v3417 = vpop.permute.xlu0 %3416
        %3418 = vrot.lane.b32.xlu0 %v2727, 40
        %v3419 = vpop.permute.xlu0 %3418
        %3420 = vrot.lane.b32.xlu0 %v2728, 40
        %v3421 = vpop.permute.xlu0 %3420
        %3422 = vrot.lane.b32.xlu0 %v2729, 40
        %v3423 = vpop.permute.xlu0 %3422
        %3424 = vrot.lane.b32.xlu0 %v2730, 40
        %v3425 = vpop.permute.xlu0 %3424
        %3426 = vrot.lane.b32.xlu0 %v2731, 40
        %v3427 = vpop.permute.xlu0 %3426
        %3428 = vrot.lane.b32.xlu0 %v2732, 40
        %v3429 = vpop.permute.xlu0 %3428
        %3430 = vrot.lane.b32.xlu0 %v2733, 40
        %v3431 = vpop.permute.xlu0 %3430
        %3432 = vrot.lane.b32.xlu0 %v2734, 40
        %v3433 = vpop.permute.xlu0 %3432
        %3434 = vrot.lane.b32.xlu0 %v2735, 40
        %v3435 = vpop.permute.xlu0 %3434
        %3436 = vrot.lane.b32.xlu0 %v2736, 40
        %v3437 = vpop.permute.xlu0 %3436
        %3438 = vrot.lane.b32.xlu0 %v2737, 40
        %v3439 = vpop.permute.xlu0 %3438
        %3440 = vrot.lane.b32.xlu0 %v2738, 40
        %v3441 = vpop.permute.xlu0 %3440
        %3442 = vrot.lane.b32.xlu0 %v2739, 40
        %v3443 = vpop.permute.xlu0 %3442
        %3508 = vrot.lane.b32.xlu0 %v2740, 48
        %v3509 = vpop.permute.xlu0 %3508
        %3510 = vrot.lane.b32.xlu0 %v2741, 48
        %v3511 = vpop.permute.xlu0 %3510
        %3512 = vrot.lane.b32.xlu0 %v2742, 48
        %v3513 = vpop.permute.xlu0 %3512
        %3514 = vrot.lane.b32.xlu0 %v2743, 48
        %v3515 = vpop.permute.xlu0 %3514
        %3516 = vrot.lane.b32.xlu0 %v2744, 48
        %v3517 = vpop.permute.xlu0 %3516
        %3518 = vrot.lane.b32.xlu0 %v2745, 48
        %v3519 = vpop.permute.xlu0 %3518
        %3520 = vrot.lane.b32.xlu0 %v2746, 48
        %v3521 = vpop.permute.xlu0 %3520
        %3522 = vrot.lane.b32.xlu0 %v2747, 48
        %v3523 = vpop.permute.xlu0 %3522
        %3524 = vrot.lane.b32.xlu0 %v2748, 48
        %v3525 = vpop.permute.xlu0 %3524
        %3526 = vrot.lane.b32.xlu0 %v2749, 48
        %v3527 = vpop.permute.xlu0 %3526
        %3528 = vrot.lane.b32.xlu0 %v2750, 48
        %v3529 = vpop.permute.xlu0 %3528
        %3530 = vrot.lane.b32.xlu0 %v2751, 48
        %v3531 = vpop.permute.xlu0 %3530
        %3532 = vrot.lane.b32.xlu0 %v2752, 48
        %v3533 = vpop.permute.xlu0 %3532
        %3534 = vrot.lane.b32.xlu0 %v2753, 48
        %v3535 = vpop.permute.xlu0 %3534
        %3536 = vrot.lane.b32.xlu0 %v2754, 48
        %v3537 = vpop.permute.xlu0 %3536
        %3538 = vrot.lane.b32.xlu0 %v2755, 48
        %v3539 = vpop.permute.xlu0 %3538
        %3540 = vrot.lane.b32.xlu0 %v2756, 48
        %v3541 = vpop.permute.xlu0 %3540
        %3542 = vrot.lane.b32.xlu0 %v2757, 48
        %v3543 = vpop.permute.xlu0 %3542
        %3544 = vrot.lane.b32.xlu0 %v2758, 48
        %v3545 = vpop.permute.xlu0 %3544
        %3546 = vrot.lane.b32.xlu0 %v2759, 48
        %v3547 = vpop.permute.xlu0 %3546
        %3548 = vrot.lane.b32.xlu0 %v2760, 48
        %v3549 = vpop.permute.xlu0 %3548
        %3550 = vrot.lane.b32.xlu0 %v2761, 48
        %v3551 = vpop.permute.xlu0 %3550
        %3552 = vrot.lane.b32.xlu0 %v2762, 48
        %v3553 = vpop.permute.xlu0 %3552
        %3554 = vrot.lane.b32.xlu0 %v2763, 48
        %v3555 = vpop.permute.xlu0 %3554
        %3556 = vrot.lane.b32.xlu0 %v2764, 48
        %v3557 = vpop.permute.xlu0 %3556
        %3558 = vrot.lane.b32.xlu0 %v2765, 48
        %v3559 = vpop.permute.xlu0 %3558
        %3560 = vrot.lane.b32.xlu0 %v2766, 48
        %v3561 = vpop.permute.xlu0 %3560
        %3562 = vrot.lane.b32.xlu0 %v2767, 48
        %v3563 = vpop.permute.xlu0 %3562
        %3564 = vrot.lane.b32.xlu0 %v2768, 48
        %v3565 = vpop.permute.xlu0 %3564
        %3566 = vrot.lane.b32.xlu0 %v2769, 48
        %v3567 = vpop.permute.xlu0 %3566
        %3568 = vrot.lane.b32.xlu0 %v2770, 48
        %v3569 = vpop.permute.xlu0 %3568
        %3570 = vrot.lane.b32.xlu0 %v2771, 48
        %v3571 = vpop.permute.xlu0 %3570
        %3636 = vrot.lane.b32.xlu0 %v2772, 56
        %v3637 = vpop.permute.xlu0 %3636
        %3638 = vrot.lane.b32.xlu0 %v2773, 56
        %v3639 = vpop.permute.xlu0 %3638
        %3640 = vrot.lane.b32.xlu0 %v2774, 56
        %v3641 = vpop.permute.xlu0 %3640
        %3642 = vrot.lane.b32.xlu0 %v2775, 56
        %v3643 = vpop.permute.xlu0 %3642
        %3644 = vrot.lane.b32.xlu0 %v2776, 56
        %v3645 = vpop.permute.xlu0 %3644
        %3646 = vrot.lane.b32.xlu0 %v2777, 56
        %v3647 = vpop.permute.xlu0 %3646
        %3648 = vrot.lane.b32.xlu0 %v2778, 56
        %v3649 = vpop.permute.xlu0 %3648
        %3650 = vrot.lane.b32.xlu0 %v2779, 56
        %v3651 = vpop.permute.xlu0 %3650
        %3652 = vrot.lane.b32.xlu0 %v2780, 56
        %v3653 = vpop.permute.xlu0 %3652
        %3654 = vrot.lane.b32.xlu0 %v2781, 56
        %v3655 = vpop.permute.xlu0 %3654
        %3656 = vrot.lane.b32.xlu0 %v2782, 56
        %v3657 = vpop.permute.xlu0 %3656
        %3658 = vrot.lane.b32.xlu0 %v2783, 56
        %v3659 = vpop.permute.xlu0 %3658
        %3660 = vrot.lane.b32.xlu0 %v2784, 56
        %v3661 = vpop.permute.xlu0 %3660
        %3662 = vrot.lane.b32.xlu0 %v2785, 56
        %v3663 = vpop.permute.xlu0 %3662
        %3664 = vrot.lane.b32.xlu0 %v2786, 56
        %v3665 = vpop.permute.xlu0 %3664
        %3666 = vrot.lane.b32.xlu0 %v2787, 56
        %v3667 = vpop.permute.xlu0 %3666
        %3668 = vrot.lane.b32.xlu0 %v2788, 56
        %v3669 = vpop.permute.xlu0 %3668
        %3670 = vrot.lane.b32.xlu0 %v2789, 56
        %v3671 = vpop.permute.xlu0 %3670
        %3672 = vrot.lane.b32.xlu0 %v2790, 56
        %v3673 = vpop.permute.xlu0 %3672
        %3674 = vrot.lane.b32.xlu0 %v2791, 56
        %v3675 = vpop.permute.xlu0 %3674
        %3676 = vrot.lane.b32.xlu0 %v2792, 56
        %v3677 = vpop.permute.xlu0 %3676
        %3678 = vrot.lane.b32.xlu0 %v2793, 56
        %v3679 = vpop.permute.xlu0 %3678
        %3680 = vrot.lane.b32.xlu0 %v2794, 56
        %v3681 = vpop.permute.xlu0 %3680
        %3682 = vrot.lane.b32.xlu0 %v2795, 56
        %v3683 = vpop.permute.xlu0 %3682
        %3684 = vrot.lane.b32.xlu0 %v2796, 56
        %v3685 = vpop.permute.xlu0 %3684
        %3686 = vrot.lane.b32.xlu0 %v2797, 56
        %v3687 = vpop.permute.xlu0 %3686
        %3688 = vrot.lane.b32.xlu0 %v2798, 56
        %v3689 = vpop.permute.xlu0 %3688
        %3690 = vrot.lane.b32.xlu0 %v2799, 56
        %v3691 = vpop.permute.xlu0 %3690
        %3692 = vrot.lane.b32.xlu0 %v2800, 56
        %v3693 = vpop.permute.xlu0 %3692
        %3694 = vrot.lane.b32.xlu0 %v2801, 56
        %v3695 = vpop.permute.xlu0 %3694
        %3696 = vrot.lane.b32.xlu0 %v2802, 56
        %v3697 = vpop.permute.xlu0 %3696
        %3698 = vrot.lane.b32.xlu0 %v2803, 56
        %v3699 = vpop.permute.xlu0 %3698
        %3764 = vrot.lane.b32.xlu0 %v2804, 64
        %v3765 = vpop.permute.xlu0 %3764
        %3766 = vrot.lane.b32.xlu0 %v2805, 64
        %v3767 = vpop.permute.xlu0 %3766
        %3768 = vrot.lane.b32.xlu0 %v2806, 64
        %v3769 = vpop.permute.xlu0 %3768
        %3770 = vrot.lane.b32.xlu0 %v2807, 64
        %v3771 = vpop.permute.xlu0 %3770
        %3772 = vrot.lane.b32.xlu0 %v2808, 64
        %v3773 = vpop.permute.xlu0 %3772
        %3774 = vrot.lane.b32.xlu0 %v2809, 64
        %v3775 = vpop.permute.xlu0 %3774
        %3776 = vrot.lane.b32.xlu0 %v2810, 64
        %v3777 = vpop.permute.xlu0 %3776
        %3778 = vrot.lane.b32.xlu0 %v2811, 64
        %v3779 = vpop.permute.xlu0 %3778
        %3780 = vrot.lane.b32.xlu0 %v2812, 64
        %v3781 = vpop.permute.xlu0 %3780
        %3782 = vrot.lane.b32.xlu0 %v2813, 64
        %v3783 = vpop.permute.xlu0 %3782
        %3784 = vrot.lane.b32.xlu0 %v2814, 64
        %v3785 = vpop.permute.xlu0 %3784
        %3786 = vrot.lane.b32.xlu0 %v2815, 64
        %v3787 = vpop.permute.xlu0 %3786
        %3788 = vrot.lane.b32.xlu0 %v2816, 64
        %v3789 = vpop.permute.xlu0 %3788
        %3790 = vrot.lane.b32.xlu0 %v2817, 64
        %v3791 = vpop.permute.xlu0 %3790
        %3792 = vrot.lane.b32.xlu0 %v2818, 64
        %v3793 = vpop.permute.xlu0 %3792
        %3794 = vrot.lane.b32.xlu0 %v2819, 64
        %v3795 = vpop.permute.xlu0 %3794
        %3796 = vrot.lane.b32.xlu0 %v2820, 64
        %v3797 = vpop.permute.xlu0 %3796
        %3798 = vrot.lane.b32.xlu0 %v2821, 64
        %v3799 = vpop.permute.xlu0 %3798
        %3800 = vrot.lane.b32.xlu0 %v2822, 64
        %v3801 = vpop.permute.xlu0 %3800
        %3802 = vrot.lane.b32.xlu0 %v2823, 64
        %v3803 = vpop.permute.xlu0 %3802
        %3804 = vrot.lane.b32.xlu0 %v2824, 64
        %v3805 = vpop.permute.xlu0 %3804
        %3806 = vrot.lane.b32.xlu0 %v2825, 64
        %v3807 = vpop.permute.xlu0 %3806
        %3808 = vrot.lane.b32.xlu0 %v2826, 64
        %v3809 = vpop.permute.xlu0 %3808
        %3810 = vrot.lane.b32.xlu0 %v2827, 64
        %v3811 = vpop.permute.xlu0 %3810
        %3812 = vrot.lane.b32.xlu0 %v2828, 64
        %v3813 = vpop.permute.xlu0 %3812
        %3814 = vrot.lane.b32.xlu0 %v2829, 64
        %v3815 = vpop.permute.xlu0 %3814
        %3816 = vrot.lane.b32.xlu0 %v2830, 64
        %v3817 = vpop.permute.xlu0 %3816
        %3818 = vrot.lane.b32.xlu0 %v2831, 64
        %v3819 = vpop.permute.xlu0 %3818
        %3820 = vrot.lane.b32.xlu0 %v2832, 64
        %v3821 = vpop.permute.xlu0 %3820
        %3822 = vrot.lane.b32.xlu0 %v2833, 64
        %v3823 = vpop.permute.xlu0 %3822
        %3824 = vrot.lane.b32.xlu0 %v2834, 64
        %v3825 = vpop.permute.xlu0 %3824
        %3826 = vrot.lane.b32.xlu0 %v2835, 64
        %v3827 = vpop.permute.xlu0 %3826
        %v3860 = vsel %vm386, %v2548, %v2869
        %v3861 = vsel %vm386, %v2549, %v2871
        %v3862 = vsel %vm386, %v2550, %v2873
        %v3863 = vsel %vm386, %v2551, %v2875
        %v3864 = vsel %vm386, %v2552, %v2877
        %v3865 = vsel %vm386, %v2553, %v2879
        %v3866 = vsel %vm386, %v2554, %v2881
        %v3867 = vsel %vm386, %v2555, %v2883
        %v3868 = vsel %vm386, %v2556, %v2885
        %v3869 = vsel %vm386, %v2557, %v2887
        %v3870 = vsel %vm386, %v2558, %v2889
        %v3871 = vsel %vm386, %v2559, %v2891
        %v3872 = vsel %vm386, %v2560, %v2893
        %v3873 = vsel %vm386, %v2561, %v2895
        %v3874 = vsel %vm386, %v2562, %v2897
        %v3875 = vsel %vm386, %v2563, %v2899
        %v3876 = vsel %vm386, %v2564, %v2901
        %v3877 = vsel %vm386, %v2565, %v2903
        %v3878 = vsel %vm386, %v2566, %v2905
        %v3879 = vsel %vm386, %v2567, %v2907
        %v3880 = vsel %vm386, %v2568, %v2909
        %v3881 = vsel %vm386, %v2569, %v2911
        %v3882 = vsel %vm386, %v2570, %v2913
        %v3883 = vsel %vm386, %v2571, %v2915
        %v3884 = vsel %vm386, %v2572, %v2917
        %v3885 = vsel %vm386, %v2573, %v2919
        %v3886 = vsel %vm386, %v2574, %v2921
        %v3887 = vsel %vm386, %v2575, %v2923
        %v3888 = vsel %vm386, %v2576, %v2925
        %v3889 = vsel %vm386, %v2577, %v2927
        %v3890 = vsel %vm386, %v2578, %v2929
        %v3891 = vsel %vm386, %v2579, %v2931
        %v3892 = vsel %vm1923, %v3860, %v2997
        %v3893 = vsel %vm1923, %v3861, %v2999
        %v3894 = vsel %vm1923, %v3862, %v3001
        %v3895 = vsel %vm1923, %v3863, %v3003
        %v3896 = vsel %vm1923, %v3864, %v3005
        %v3897 = vsel %vm1923, %v3865, %v3007
        %v3898 = vsel %vm1923, %v3866, %v3009
        %v3899 = vsel %vm1923, %v3867, %v3011
        %v3900 = vsel %vm1923, %v3868, %v3013
        %v3901 = vsel %vm1923, %v3869, %v3015
        %v3902 = vsel %vm1923, %v3870, %v3017
        %v3903 = vsel %vm1923, %v3871, %v3019
        %v3904 = vsel %vm1923, %v3872, %v3021
        %v3905 = vsel %vm1923, %v3873, %v3023
        %v3906 = vsel %vm1923, %v3874, %v3025
        %v3907 = vsel %vm1923, %v3875, %v3027
        %v3908 = vsel %vm1923, %v3876, %v3029
        %v3909 = vsel %vm1923, %v3877, %v3031
        %v3910 = vsel %vm1923, %v3878, %v3033
        %v3911 = vsel %vm1923, %v3879, %v3035
        %v3912 = vsel %vm1923, %v3880, %v3037
        %v3913 = vsel %vm1923, %v3881, %v3039
        %v3914 = vsel %vm1923, %v3882, %v3041
        %v3915 = vsel %vm1923, %v3883, %v3043
        %v3916 = vsel %vm1923, %v3884, %v3045
        %v3917 = vsel %vm1923, %v3885, %v3047
        %v3918 = vsel %vm1923, %v3886, %v3049
        %v3919 = vsel %vm1923, %v3887, %v3051
        %v3920 = vsel %vm1923, %v3888, %v3053
        %v3921 = vsel %vm1923, %v3889, %v3055
        %v3922 = vsel %vm1923, %v3890, %v3057
        %v3923 = vsel %vm1923, %v3891, %v3059
        %v3924 = vsel %vm1989, %v3892, %v3125
        %v3925 = vsel %vm1989, %v3893, %v3127
        %v3926 = vsel %vm1989, %v3894, %v3129
        %v3927 = vsel %vm1989, %v3895, %v3131
        %v3928 = vsel %vm1989, %v3896, %v3133
        %v3929 = vsel %vm1989, %v3897, %v3135
        %v3930 = vsel %vm1989, %v3898, %v3137
        %v3931 = vsel %vm1989, %v3899, %v3139
        %v3932 = vsel %vm1989, %v3900, %v3141
        %v3933 = vsel %vm1989, %v3901, %v3143
        %v3934 = vsel %vm1989, %v3902, %v3145
        %v3935 = vsel %vm1989, %v3903, %v3147
        %v3936 = vsel %vm1989, %v3904, %v3149
        %v3937 = vsel %vm1989, %v3905, %v3151
        %v3938 = vsel %vm1989, %v3906, %v3153
        %v3939 = vsel %vm1989, %v3907, %v3155
        %v3940 = vsel %vm1989, %v3908, %v3157
        %v3941 = vsel %vm1989, %v3909, %v3159
        %v3942 = vsel %vm1989, %v3910, %v3161
        %v3943 = vsel %vm1989, %v3911, %v3163
        %v3944 = vsel %vm1989, %v3912, %v3165
        %v3945 = vsel %vm1989, %v3913, %v3167
        %v3946 = vsel %vm1989, %v3914, %v3169
        %v3947 = vsel %vm1989, %v3915, %v3171
        %v3948 = vsel %vm1989, %v3916, %v3173
        %v3949 = vsel %vm1989, %v3917, %v3175
        %v3950 = vsel %vm1989, %v3918, %v3177
        %v3951 = vsel %vm1989, %v3919, %v3179
        %v3952 = vsel %vm1989, %v3920, %v3181
        %v3953 = vsel %vm1989, %v3921, %v3183
        %v3954 = vsel %vm1989, %v3922, %v3185
        %v3955 = vsel %vm1989, %v3923, %v3187
        %v3956 = vsel %vm2055, %v3924, %v3253
        %v3957 = vsel %vm2055, %v3925, %v3255
        %v3958 = vsel %vm2055, %v3926, %v3257
        %v3959 = vsel %vm2055, %v3927, %v3259
        %v3960 = vsel %vm2055, %v3928, %v3261
        %v3961 = vsel %vm2055, %v3929, %v3263
        %v3962 = vsel %vm2055, %v3930, %v3265
        %v3963 = vsel %vm2055, %v3931, %v3267
        %v3964 = vsel %vm2055, %v3932, %v3269
        %v3965 = vsel %vm2055, %v3933, %v3271
        %v3966 = vsel %vm2055, %v3934, %v3273
        %v3967 = vsel %vm2055, %v3935, %v3275
        %v3968 = vsel %vm2055, %v3936, %v3277
        %v3969 = vsel %vm2055, %v3937, %v3279
        %v3970 = vsel %vm2055, %v3938, %v3281
        %v3971 = vsel %vm2055, %v3939, %v3283
        %v3972 = vsel %vm2055, %v3940, %v3285
        %v3973 = vsel %vm2055, %v3941, %v3287
        %v3974 = vsel %vm2055, %v3942, %v3289
        %v3975 = vsel %vm2055, %v3943, %v3291
        %v3976 = vsel %vm2055, %v3944, %v3293
        %v3977 = vsel %vm2055, %v3945, %v3295
        %v3978 = vsel %vm2055, %v3946, %v3297
        %v3979 = vsel %vm2055, %v3947, %v3299
        %v3980 = vsel %vm2055, %v3948, %v3301
        %v3981 = vsel %vm2055, %v3949, %v3303
        %v3982 = vsel %vm2055, %v3950, %v3305
        %v3983 = vsel %vm2055, %v3951, %v3307
        %v3984 = vsel %vm2055, %v3952, %v3309
        %v3985 = vsel %vm2055, %v3953, %v3311
        %v3986 = vsel %vm2055, %v3954, %v3313
        %v3987 = vsel %vm2055, %v3955, %v3315
        %vm3988 = vcmask 326656
        %v3989 = vsel %vm3988, %v3956, %v3381
        %v3990 = vsel %vm3988, %v3957, %v3383
        %v3991 = vsel %vm3988, %v3958, %v3385
        %v3992 = vsel %vm3988, %v3959, %v3387
        %v3993 = vsel %vm3988, %v3960, %v3389
        %v3994 = vsel %vm3988, %v3961, %v3391
        %v3995 = vsel %vm3988, %v3962, %v3393
        %v3996 = vsel %vm3988, %v3963, %v3395
        %v3997 = vsel %vm3988, %v3964, %v3397
        %v3998 = vsel %vm3988, %v3965, %v3399
        %v3999 = vsel %vm3988, %v3966, %v3401
        %v4000 = vsel %vm3988, %v3967, %v3403
        %v4001 = vsel %vm3988, %v3968, %v3405
        %v4002 = vsel %vm3988, %v3969, %v3407
        %v4003 = vsel %vm3988, %v3970, %v3409
        %v4004 = vsel %vm3988, %v3971, %v3411
        %v4005 = vsel %vm3988, %v3972, %v3413
        %v4006 = vsel %vm3988, %v3973, %v3415
        %v4007 = vsel %vm3988, %v3974, %v3417
        %v4008 = vsel %vm3988, %v3975, %v3419
        %v4009 = vsel %vm3988, %v3976, %v3421
        %v4010 = vsel %vm3988, %v3977, %v3423
        %v4011 = vsel %vm3988, %v3978, %v3425
        %v4012 = vsel %vm3988, %v3979, %v3427
        %v4013 = vsel %vm3988, %v3980, %v3429
        %v4014 = vsel %vm3988, %v3981, %v3431
        %v4015 = vsel %vm3988, %v3982, %v3433
        %v4016 = vsel %vm3988, %v3983, %v3435
        %v4017 = vsel %vm3988, %v3984, %v3437
        %v4018 = vsel %vm3988, %v3985, %v3439
        %v4019 = vsel %vm3988, %v3986, %v3441
        %v4020 = vsel %vm3988, %v3987, %v3443
        %vm4021 = vcmask 392192
        %v4022 = vsel %vm4021, %v3989, %v3509
        %v4023 = vsel %vm4021, %v3990, %v3511
        %v4024 = vsel %vm4021, %v3991, %v3513
        %v4025 = vsel %vm4021, %v3992, %v3515
        %v4026 = vsel %vm4021, %v3993, %v3517
        %v4027 = vsel %vm4021, %v3994, %v3519
        %v4028 = vsel %vm4021, %v3995, %v3521
        %v4029 = vsel %vm4021, %v3996, %v3523
        %v4030 = vsel %vm4021, %v3997, %v3525
        %v4031 = vsel %vm4021, %v3998, %v3527
        %v4032 = vsel %vm4021, %v3999, %v3529
        %v4033 = vsel %vm4021, %v4000, %v3531
        %v4034 = vsel %vm4021, %v4001, %v3533
        %v4035 = vsel %vm4021, %v4002, %v3535
        %v4036 = vsel %vm4021, %v4003, %v3537
        %v4037 = vsel %vm4021, %v4004, %v3539
        %v4038 = vsel %vm4021, %v4005, %v3541
        %v4039 = vsel %vm4021, %v4006, %v3543
        %v4040 = vsel %vm4021, %v4007, %v3545
        %v4041 = vsel %vm4021, %v4008, %v3547
        %v4042 = vsel %vm4021, %v4009, %v3549
        %v4043 = vsel %vm4021, %v4010, %v3551
        %v4044 = vsel %vm4021, %v4011, %v3553
        %v4045 = vsel %vm4021, %v4012, %v3555
        %v4046 = vsel %vm4021, %v4013, %v3557
        %v4047 = vsel %vm4021, %v4014, %v3559
        %v4048 = vsel %vm4021, %v4015, %v3561
        %v4049 = vsel %vm4021, %v4016, %v3563
        %v4050 = vsel %vm4021, %v4017, %v3565
        %v4051 = vsel %vm4021, %v4018, %v3567
        %v4052 = vsel %vm4021, %v4019, %v3569
        %v4053 = vsel %vm4021, %v4020, %v3571
        %vm4054 = vcmask 457728
        %v4055 = vsel %vm4054, %v4022, %v3637
        %v4056 = vsel %vm4054, %v4023, %v3639
        %v4057 = vsel %vm4054, %v4024, %v3641
        %v4058 = vsel %vm4054, %v4025, %v3643
        %v4059 = vsel %vm4054, %v4026, %v3645
        %v4060 = vsel %vm4054, %v4027, %v3647
        %v4061 = vsel %vm4054, %v4028, %v3649
        %v4062 = vsel %vm4054, %v4029, %v3651
        %v4063 = vsel %vm4054, %v4030, %v3653
        %v4064 = vsel %vm4054, %v4031, %v3655
        %v4065 = vsel %vm4054, %v4032, %v3657
        %v4066 = vsel %vm4054, %v4033, %v3659
        %v4067 = vsel %vm4054, %v4034, %v3661
        %v4068 = vsel %vm4054, %v4035, %v3663
        %v4069 = vsel %vm4054, %v4036, %v3665
        %v4070 = vsel %vm4054, %v4037, %v3667
        %v4071 = vsel %vm4054, %v4038, %v3669
        %v4072 = vsel %vm4054, %v4039, %v3671
        %v4073 = vsel %vm4054, %v4040, %v3673
        %v4074 = vsel %vm4054, %v4041, %v3675
        %v4075 = vsel %vm4054, %v4042, %v3677
        %v4076 = vsel %vm4054, %v4043, %v3679
        %v4077 = vsel %vm4054, %v4044, %v3681
        %v4078 = vsel %vm4054, %v4045, %v3683
        %v4079 = vsel %vm4054, %v4046, %v3685
        %v4080 = vsel %vm4054, %v4047, %v3687
        %v4081 = vsel %vm4054, %v4048, %v3689
        %v4082 = vsel %vm4054, %v4049, %v3691
        %v4083 = vsel %vm4054, %v4050, %v3693
        %v4084 = vsel %vm4054, %v4051, %v3695
        %v4085 = vsel %vm4054, %v4052, %v3697
        %v4086 = vsel %vm4054, %v4053, %v3699
        %vm4087 = vcmask 523264
        %v4088 = vsel %vm4087, %v4055, %v3765
        %v4089 = vsel %vm4087, %v4056, %v3767
        %v4090 = vsel %vm4087, %v4057, %v3769
        %v4091 = vsel %vm4087, %v4058, %v3771
        %v4092 = vsel %vm4087, %v4059, %v3773
        %v4093 = vsel %vm4087, %v4060, %v3775
        %v4094 = vsel %vm4087, %v4061, %v3777
        %v4095 = vsel %vm4087, %v4062, %v3779
        %v4096 = vsel %vm4087, %v4063, %v3781
        %v4097 = vsel %vm4087, %v4064, %v3783
        %v4098 = vsel %vm4087, %v4065, %v3785
        %v4099 = vsel %vm4087, %v4066, %v3787
        %v4100 = vsel %vm4087, %v4067, %v3789
        %v4101 = vsel %vm4087, %v4068, %v3791
        %v4102 = vsel %vm4087, %v4069, %v3793
        %v4103 = vsel %vm4087, %v4070, %v3795
        %v4104 = vsel %vm4087, %v4071, %v3797
        %v4105 = vsel %vm4087, %v4072, %v3799
        %v4106 = vsel %vm4087, %v4073, %v3801
        %v4107 = vsel %vm4087, %v4074, %v3803
        %v4108 = vsel %vm4087, %v4075, %v3805
        %v4109 = vsel %vm4087, %v4076, %v3807
        %v4110 = vsel %vm4087, %v4077, %v3809
        %v4111 = vsel %vm4087, %v4078, %v3811
        %v4112 = vsel %vm4087, %v4079, %v3813
        %v4113 = vsel %vm4087, %v4080, %v3815
        %v4114 = vsel %vm4087, %v4081, %v3817
        %v4115 = vsel %vm4087, %v4082, %v3819
        %v4116 = vsel %vm4087, %v4083, %v3821
        %v4117 = vsel %vm4087, %v4084, %v3823
        %v4118 = vsel %vm4087, %v4085, %v3825
        %v4119 = vsel %vm4087, %v4086, %v3827
        %v4120 = vpack.c.bf16 %v4089, %v4088
        %v4121 = vpack.c.bf16 %v4091, %v4090
        %v4122 = vpack.c.bf16 %v4093, %v4092
        %v4123 = vpack.c.bf16 %v4095, %v4094
        %v4124 = vpack.c.bf16 %v4097, %v4096
        %v4125 = vpack.c.bf16 %v4099, %v4098
        %v4126 = vpack.c.bf16 %v4101, %v4100
        %v4127 = vpack.c.bf16 %v4103, %v4102
        %v4128 = vpack.c.bf16 %v4105, %v4104
        %v4129 = vpack.c.bf16 %v4107, %v4106
        %v4130 = vpack.c.bf16 %v4109, %v4108
        %v4131 = vpack.c.bf16 %v4111, %v4110
        %v4132 = vpack.c.bf16 %v4113, %v4112
        %v4133 = vpack.c.bf16 %v4115, %v4114
        %v4134 = vpack.c.bf16 %v4117, %v4116
        %v4135 = vpack.c.bf16 %v4119, %v4118
        %v4145 = vunpack.c.l.b16 %v2507
        %v4146 = vunpack.c.l.b16 %v2508
        %v4147 = vunpack.c.l.b16 %v2509
        %v4148 = vunpack.c.l.b16 %v2510
        %v4149 = vunpack.c.l.b16 %v2511
        %v4150 = vunpack.c.l.b16 %v2512
        %v4151 = vunpack.c.l.b16 %v2513
        %v4152 = vunpack.c.l.b16 %v2514
        %v4153 = vunpack.c.l.b16 %v2515
        %v4154 = vpack.c.b16 %v4146, %v4145
        %v4155 = vpack.c.b16 %v4148, %v4147
        %v4156 = vpack.c.b16 %v4150, %v4149
        %v4157 = vpack.c.b16 %v4152, %v4151
        %v4158 = vpack.c.b16 %v4153, %v4153
        %vm4163 = vcmask 588800
        %v4165 = vsel %vm4163, %v4120, 0
        %v4168 = vsel %vm4163, %v4121, 0
        %v4171 = vsel %vm4163, %v4122, 0
        %v4174 = vsel %vm4163, %v4123, 0
        %v4177 = vsel %vm4163, %v4124, 0
        %v4180 = vsel %vm4163, %v4125, 0
        %v4183 = vsel %vm4163, %v4126, 0
        %v4186 = vsel %vm4163, %v4127, 0
        %v4189 = vsel %vm4163, %v4128, 0
        %v4192 = vsel %vm4163, %v4129, 0
        %v4195 = vsel %vm4163, %v4130, 0
        %v4198 = vsel %vm4163, %v4131, 0
        %v4201 = vsel %vm4163, %v4132, 0
        %v4204 = vsel %vm4163, %v4133, 0
        %v4207 = vsel %vm4163, %v4134, 0
        %v4210 = vsel %vm4163, %v4135, 0
        %vm4212 = vcmask 1043456
        %v4214 = vsel %vm4212, %v4158, 0
        %4216 = vmatprep.subr.bf16.mxu0 0
        %4217 = vmatpush1.bf16.msra.mxu0 0
        %4218 = vmatprep.subr.bf16.mxu0 0
        %4219 = vmatpush1.bf16.msra.mxu0 0
        %4220 = vmatprep.subr.bf16.mxu0 0
        %4221 = vmatpush1.bf16.msra.mxu0 0
        %4222 = vmatprep.subr.bf16.mxu0 0
        %4223 = vmatpush1.bf16.msra.mxu0 %v4214
        %4224 = vmatprep.subr.bf16.mxu0 0
        %4225 = vmatpush1.bf16.msra.mxu0 %v4157
        %4226 = vmatprep.subr.bf16.mxu0 0
        %4227 = vmatpush1.bf16.msra.mxu0 %v4156
        %4228 = vmatprep.subr.bf16.mxu0 0
        %4229 = vmatpush1.bf16.msra.mxu0 %v4155
        %4230 = vmatprep.subr.bf16.mxu0 0
        %4231 = vmatpush1.bf16.msra.mxu0 %v4154
        %4232 = vmatprep.subr.bf16.mxu0 0
        %4233 = vmatpush2.bf16.msra.mxu0 0
        %4234 = vmatprep.subr.bf16.mxu0 0
        %4235 = vmatpush2.bf16.msra.mxu0 0
        %4236 = vmatprep.subr.bf16.mxu0 0
        %4237 = vmatpush2.bf16.msra.mxu0 0
        %4238 = vmatprep.subr.bf16.mxu0 0
        %4239 = vmatpush2.bf16.msra.mxu0 0
        %4240 = vmatprep.subr.bf16.mxu0 0
        %4241 = vmatpush2.bf16.msra.mxu0 0
        %4242 = vmatprep.subr.bf16.mxu0 0
        %4243 = vmatpush2.bf16.msra.mxu0 0
        %4244 = vmatprep.subr.bf16.mxu0 0
        %4245 = vmatpush2.bf16.msra.mxu0 0
        %4246 = vmatprep.subr.bf16.mxu0 0
        %4247 = vmatpush2.bf16.msra.mxu0 0
        %4248 = vmatprep.mubr.bf16.mxu0 0
        %4249 = vmatmul.mubr.bf16.gmra.mxu0 %v4165
        %v4250 = vpop.f32.mrf.mxu0
        %v4251 = vadd.f32 0.0, %v4250
        %v4252 = vpop.f32.mrf.mxu0
        %v4253 = vpop.f32.mrf.mxu0
        %v4254 = vadd.f32 0.0, %v4253
        %v4255 = vpop.f32.mrf.mxu0
        %4256 = vmatprep.mubr.bf16.mxu0 0
        %4257 = vmatmul.mubr.bf16.gmra.mxu0 %v4168
        %v4258 = vpop.f32.mrf.mxu0
        %v4259 = vadd.f32 0.0, %v4258
        %v4260 = vpop.f32.mrf.mxu0
        %v4261 = vpop.f32.mrf.mxu0
        %v4262 = vadd.f32 0.0, %v4261
        %v4263 = vpop.f32.mrf.mxu0
        %4264 = vmatprep.mubr.bf16.mxu0 0
        %4265 = vmatmul.mubr.bf16.gmra.mxu0 %v4171
        %v4266 = vpop.f32.mrf.mxu0
        %v4267 = vadd.f32 0.0, %v4266
        %v4268 = vpop.f32.mrf.mxu0
        %v4269 = vpop.f32.mrf.mxu0
        %v4270 = vadd.f32 0.0, %v4269
        %v4271 = vpop.f32.mrf.mxu0
        %4272 = vmatprep.mubr.bf16.mxu0 0
        %4273 = vmatmul.mubr.bf16.gmra.mxu0 %v4174
        %v4274 = vpop.f32.mrf.mxu0
        %v4275 = vadd.f32 0.0, %v4274
        %v4276 = vpop.f32.mrf.mxu0
        %v4277 = vpop.f32.mrf.mxu0
        %v4278 = vadd.f32 0.0, %v4277
        %v4279 = vpop.f32.mrf.mxu0
        %4280 = vmatprep.mubr.bf16.mxu0 0
        %4281 = vmatmul.mubr.bf16.gmra.mxu0 %v4177
        %v4282 = vpop.f32.mrf.mxu0
        %v4283 = vadd.f32 0.0, %v4282
        %v4284 = vpop.f32.mrf.mxu0
        %v4285 = vpop.f32.mrf.mxu0
        %v4286 = vadd.f32 0.0, %v4285
        %v4287 = vpop.f32.mrf.mxu0
        %4288 = vmatprep.mubr.bf16.mxu0 0
        %4289 = vmatmul.mubr.bf16.gmra.mxu0 %v4180
        %v4290 = vpop.f32.mrf.mxu0
        %v4291 = vadd.f32 0.0, %v4290
        %v4292 = vpop.f32.mrf.mxu0
        %v4293 = vpop.f32.mrf.mxu0
        %v4294 = vadd.f32 0.0, %v4293
        %v4295 = vpop.f32.mrf.mxu0
        %4296 = vmatprep.mubr.bf16.mxu0 0
        %4297 = vmatmul.mubr.bf16.gmra.mxu0 %v4183
        %v4298 = vpop.f32.mrf.mxu0
        %v4299 = vadd.f32 0.0, %v4298
        %v4300 = vpop.f32.mrf.mxu0
        %v4301 = vpop.f32.mrf.mxu0
        %v4302 = vadd.f32 0.0, %v4301
        %v4303 = vpop.f32.mrf.mxu0
        %4304 = vmatprep.mubr.bf16.mxu0 0
        %4305 = vmatmul.mubr.bf16.gmra.mxu0 %v4186
        %v4306 = vpop.f32.mrf.mxu0
        %v4307 = vadd.f32 0.0, %v4306
        %v4308 = vpop.f32.mrf.mxu0
        %v4309 = vpop.f32.mrf.mxu0
        %v4310 = vadd.f32 0.0, %v4309
        %v4311 = vpop.f32.mrf.mxu0
        %4312 = vmatprep.mubr.bf16.mxu0 0
        %4313 = vmatmul.mubr.bf16.gmra.mxu0 %v4189
        %v4314 = vpop.f32.mrf.mxu0
        %v4315 = vadd.f32 0.0, %v4314
        %v4316 = vpop.f32.mrf.mxu0
        %v4317 = vpop.f32.mrf.mxu0
        %v4318 = vadd.f32 0.0, %v4317
        %v4319 = vpop.f32.mrf.mxu0
        %4320 = vmatprep.mubr.bf16.mxu0 0
        %4321 = vmatmul.mubr.bf16.gmra.mxu0 %v4192
        %v4322 = vpop.f32.mrf.mxu0
        %v4323 = vadd.f32 0.0, %v4322
        %v4324 = vpop.f32.mrf.mxu0
        %v4325 = vpop.f32.mrf.mxu0
        %v4326 = vadd.f32 0.0, %v4325
        %v4327 = vpop.f32.mrf.mxu0
        %4328 = vmatprep.mubr.bf16.mxu0 0
        %4329 = vmatmul.mubr.bf16.gmra.mxu0 %v4195
        %v4330 = vpop.f32.mrf.mxu0
        %v4331 = vadd.f32 0.0, %v4330
        %v4332 = vpop.f32.mrf.mxu0
        %v4333 = vpop.f32.mrf.mxu0
        %v4334 = vadd.f32 0.0, %v4333
        %v4335 = vpop.f32.mrf.mxu0
        %4336 = vmatprep.mubr.bf16.mxu0 0
        %4337 = vmatmul.mubr.bf16.gmra.mxu0 %v4198
        %v4338 = vpop.f32.mrf.mxu0
        %v4339 = vadd.f32 0.0, %v4338
        %v4340 = vpop.f32.mrf.mxu0
        %v4341 = vpop.f32.mrf.mxu0
        %v4342 = vadd.f32 0.0, %v4341
        %v4343 = vpop.f32.mrf.mxu0
        %4344 = vmatprep.mubr.bf16.mxu0 0
        %4345 = vmatmul.mubr.bf16.gmra.mxu0 %v4201
        %v4346 = vpop.f32.mrf.mxu0
        %v4347 = vadd.f32 0.0, %v4346
        %v4348 = vpop.f32.mrf.mxu0
        %v4349 = vpop.f32.mrf.mxu0
        %v4350 = vadd.f32 0.0, %v4349
        %v4351 = vpop.f32.mrf.mxu0
        %4352 = vmatprep.mubr.bf16.mxu0 0
        %4353 = vmatmul.mubr.bf16.gmra.mxu0 %v4204
        %v4354 = vpop.f32.mrf.mxu0
        %v4355 = vadd.f32 0.0, %v4354
        %v4356 = vpop.f32.mrf.mxu0
        %v4357 = vpop.f32.mrf.mxu0
        %v4358 = vadd.f32 0.0, %v4357
        %v4359 = vpop.f32.mrf.mxu0
        %4360 = vmatprep.mubr.bf16.mxu0 0
        %4361 = vmatmul.mubr.bf16.gmra.mxu0 %v4207
        %v4362 = vpop.f32.mrf.mxu0
        %v4363 = vadd.f32 0.0, %v4362
        %v4364 = vpop.f32.mrf.mxu0
        %v4365 = vpop.f32.mrf.mxu0
        %v4366 = vadd.f32 0.0, %v4365
        %v4367 = vpop.f32.mrf.mxu0
        %4368 = vmatprep.mubr.bf16.mxu0 0
        %4369 = vmatmul.mubr.bf16.gmra.mxu0 %v4210
        %v4370 = vpop.f32.mrf.mxu0
        %v4371 = vadd.f32 0.0, %v4370
        %v4372 = vpop.f32.mrf.mxu0
        %v4373 = vpop.f32.mrf.mxu0
        %v4374 = vadd.f32 0.0, %v4373
        %v4375 = vpop.f32.mrf.mxu0
        %4376 = vdwg.mxu0
        %v4377 = vld [vmem:[%s5] sm:$0x1]
        %v4379 = vlaneseq
        %v4380 = vshrl.u32 %v4379, 7
        %v4381 = vsub.s32 0, %v4380
        %v4382 = vrot.slane %v4377, %v4381
        %v4384 = vmul.f32 %v4251, %v4382
        %v4385 = vmul.f32 %v4254, %v4382
        %v4386 = vmul.f32 %v4259, %v4382
        %v4387 = vmul.f32 %v4262, %v4382
        %v4388 = vmul.f32 %v4267, %v4382
        %v4389 = vmul.f32 %v4270, %v4382
        %v4390 = vmul.f32 %v4275, %v4382
        %v4391 = vmul.f32 %v4278, %v4382
        %v4392 = vmul.f32 %v4283, %v4382
        %v4393 = vmul.f32 %v4286, %v4382
        %v4394 = vmul.f32 %v4291, %v4382
        %v4395 = vmul.f32 %v4294, %v4382
        %v4396 = vmul.f32 %v4299, %v4382
        %v4397 = vmul.f32 %v4302, %v4382
        %v4398 = vmul.f32 %v4307, %v4382
        %v4399 = vmul.f32 %v4310, %v4382
        %v4400 = vmul.f32 %v4315, %v4382
        %v4401 = vmul.f32 %v4318, %v4382
        %v4402 = vmul.f32 %v4323, %v4382
        %v4403 = vmul.f32 %v4326, %v4382
        %v4404 = vmul.f32 %v4331, %v4382
        %v4405 = vmul.f32 %v4334, %v4382
        %v4406 = vmul.f32 %v4339, %v4382
        %v4407 = vmul.f32 %v4342, %v4382
        %v4408 = vmul.f32 %v4347, %v4382
        %v4409 = vmul.f32 %v4350, %v4382
        %v4410 = vmul.f32 %v4355, %v4382
        %v4411 = vmul.f32 %v4358, %v4382
        %v4412 = vmul.f32 %v4363, %v4382
        %v4413 = vmul.f32 %v4366, %v4382
        %v4414 = vmul.f32 %v4371, %v4382
        %v4415 = vmul.f32 %v4374, %v4382
        %v4416 = vld [vmem:[%s6] sm:$0x1]
        %v4418 = vlaneseq
        %v4419 = vshrl.u32 %v4418, 7
        %v4420 = vsub.s32 0, %v4419
        %v4421 = vrot.slane %v4416, %v4420
        %v4423 = vadd.f32 %v4384, %v4421
        %v4424 = vadd.f32 %v4385, %v4421
        %v4425 = vadd.f32 %v4386, %v4421
        %v4426 = vadd.f32 %v4387, %v4421
        %v4427 = vadd.f32 %v4388, %v4421
        %v4428 = vadd.f32 %v4389, %v4421
        %v4429 = vadd.f32 %v4390, %v4421
        %v4430 = vadd.f32 %v4391, %v4421
        %v4431 = vadd.f32 %v4392, %v4421
        %v4432 = vadd.f32 %v4393, %v4421
        %v4433 = vadd.f32 %v4394, %v4421
        %v4434 = vadd.f32 %v4395, %v4421
        %v4435 = vadd.f32 %v4396, %v4421
        %v4436 = vadd.f32 %v4397, %v4421
        %v4437 = vadd.f32 %v4398, %v4421
        %v4438 = vadd.f32 %v4399, %v4421
        %v4439 = vadd.f32 %v4400, %v4421
        %v4440 = vadd.f32 %v4401, %v4421
        %v4441 = vadd.f32 %v4402, %v4421
        %v4442 = vadd.f32 %v4403, %v4421
        %v4443 = vadd.f32 %v4404, %v4421
        %v4444 = vadd.f32 %v4405, %v4421
        %v4445 = vadd.f32 %v4406, %v4421
        %v4446 = vadd.f32 %v4407, %v4421
        %v4447 = vadd.f32 %v4408, %v4421
        %v4448 = vadd.f32 %v4409, %v4421
        %v4449 = vadd.f32 %v4410, %v4421
        %v4450 = vadd.f32 %v4411, %v4421
        %v4451 = vadd.f32 %v4412, %v4421
        %v4452 = vadd.f32 %v4413, %v4421
        %v4453 = vadd.f32 %v4414, %v4421
        %v4454 = vadd.f32 %v4415, %v4421
        %vm4455 = vcmp.ge.f32.partialorder %v4423, 0.0
        %vm4456 = vcmp.ge.f32.partialorder %v4424, 0.0
        %vm4457 = vcmp.ge.f32.partialorder %v4425, 0.0
        %vm4458 = vcmp.ge.f32.partialorder %v4426, 0.0
        %vm4459 = vcmp.ge.f32.partialorder %v4427, 0.0
        %vm4460 = vcmp.ge.f32.partialorder %v4428, 0.0
        %vm4461 = vcmp.ge.f32.partialorder %v4429, 0.0
        %vm4462 = vcmp.ge.f32.partialorder %v4430, 0.0
        %vm4463 = vcmp.ge.f32.partialorder %v4431, 0.0
        %vm4464 = vcmp.ge.f32.partialorder %v4432, 0.0
        %vm4465 = vcmp.ge.f32.partialorder %v4433, 0.0
        %vm4466 = vcmp.ge.f32.partialorder %v4434, 0.0
        %vm4467 = vcmp.ge.f32.partialorder %v4435, 0.0
        %vm4468 = vcmp.ge.f32.partialorder %v4436, 0.0
        %vm4469 = vcmp.ge.f32.partialorder %v4437, 0.0
        %vm4470 = vcmp.ge.f32.partialorder %v4438, 0.0
        %vm4471 = vcmp.ge.f32.partialorder %v4439, 0.0
        %vm4472 = vcmp.ge.f32.partialorder %v4440, 0.0
        %vm4473 = vcmp.ge.f32.partialorder %v4441, 0.0
        %vm4474 = vcmp.ge.f32.partialorder %v4442, 0.0
        %vm4475 = vcmp.ge.f32.partialorder %v4443, 0.0
        %vm4476 = vcmp.ge.f32.partialorder %v4444, 0.0
        %vm4477 = vcmp.ge.f32.partialorder %v4445, 0.0
        %vm4478 = vcmp.ge.f32.partialorder %v4446, 0.0
        %vm4479 = vcmp.ge.f32.partialorder %v4447, 0.0
        %vm4480 = vcmp.ge.f32.partialorder %v4448, 0.0
        %vm4481 = vcmp.ge.f32.partialorder %v4449, 0.0
        %vm4482 = vcmp.ge.f32.partialorder %v4450, 0.0
        %vm4483 = vcmp.ge.f32.partialorder %v4451, 0.0
        %vm4484 = vcmp.ge.f32.partialorder %v4452, 0.0
        %vm4485 = vcmp.ge.f32.partialorder %v4453, 0.0
        %vm4486 = vcmp.ge.f32.partialorder %v4454, 0.0
        %v4487 = vmul.f32 %v4423, 0.01
        %v4488 = vmul.f32 %v4424, 0.01
        %v4489 = vmul.f32 %v4425, 0.01
        %v4490 = vmul.f32 %v4426, 0.01
        %v4491 = vmul.f32 %v4427, 0.01
        %v4492 = vmul.f32 %v4428, 0.01
        %v4493 = vmul.f32 %v4429, 0.01
        %v4494 = vmul.f32 %v4430, 0.01
        %v4495 = vmul.f32 %v4431, 0.01
        %v4496 = vmul.f32 %v4432, 0.01
        %v4497 = vmul.f32 %v4433, 0.01
        %v4498 = vmul.f32 %v4434, 0.01
        %v4499 = vmul.f32 %v4435, 0.01
        %v4500 = vmul.f32 %v4436, 0.01
        %v4501 = vmul.f32 %v4437, 0.01
        %v4502 = vmul.f32 %v4438, 0.01
        %v4503 = vmul.f32 %v4439, 0.01
        %v4504 = vmul.f32 %v4440, 0.01
        %v4505 = vmul.f32 %v4441, 0.01
        %v4506 = vmul.f32 %v4442, 0.01
        %v4507 = vmul.f32 %v4443, 0.01
        %v4508 = vmul.f32 %v4444, 0.01
        %v4509 = vmul.f32 %v4445, 0.01
        %v4510 = vmul.f32 %v4446, 0.01
        %v4511 = vmul.f32 %v4447, 0.01
        %v4512 = vmul.f32 %v4448, 0.01
        %v4513 = vmul.f32 %v4449, 0.01
        %v4514 = vmul.f32 %v4450, 0.01
        %v4515 = vmul.f32 %v4451, 0.01
        %v4516 = vmul.f32 %v4452, 0.01
        %v4517 = vmul.f32 %v4453, 0.01
        %v4518 = vmul.f32 %v4454, 0.01
        %v4519 = vsel %vm4455, %v4423, %v4487
        %v4520 = vsel %vm4456, %v4424, %v4488
        %v4521 = vsel %vm4457, %v4425, %v4489
        %v4522 = vsel %vm4458, %v4426, %v4490
        %v4523 = vsel %vm4459, %v4427, %v4491
        %v4524 = vsel %vm4460, %v4428, %v4492
        %v4525 = vsel %vm4461, %v4429, %v4493
        %v4526 = vsel %vm4462, %v4430, %v4494
        %v4527 = vsel %vm4463, %v4431, %v4495
        %v4528 = vsel %vm4464, %v4432, %v4496
        %v4529 = vsel %vm4465, %v4433, %v4497
        %v4530 = vsel %vm4466, %v4434, %v4498
        %v4531 = vsel %vm4467, %v4435, %v4499
        %v4532 = vsel %vm4468, %v4436, %v4500
        %v4533 = vsel %vm4469, %v4437, %v4501
        %v4534 = vsel %vm4470, %v4438, %v4502
        %v4535 = vsel %vm4471, %v4439, %v4503
        %v4536 = vsel %vm4472, %v4440, %v4504
        %v4537 = vsel %vm4473, %v4441, %v4505
        %v4538 = vsel %vm4474, %v4442, %v4506
        %v4539 = vsel %vm4475, %v4443, %v4507
        %v4540 = vsel %vm4476, %v4444, %v4508
        %v4541 = vsel %vm4477, %v4445, %v4509
        %v4542 = vsel %vm4478, %v4446, %v4510
        %v4543 = vsel %vm4479, %v4447, %v4511
        %v4544 = vsel %vm4480, %v4448, %v4512
        %v4545 = vsel %vm4481, %v4449, %v4513
        %v4546 = vsel %vm4482, %v4450, %v4514
        %v4547 = vsel %vm4483, %v4451, %v4515
        %v4548 = vsel %vm4484, %v4452, %v4516
        %v4549 = vsel %vm4485, %v4453, %v4517
        %v4550 = vsel %vm4486, %v4454, %v4518
        %v4551 = vld [vmem:[%s384] sm:$0xff]
        %v4552 = vld [vmem:[%s384 + $0x8] sm:$0xff]
        %v4553 = vld [vmem:[%s384 + $0x10] sm:$0xff]
        %v4554 = vld [vmem:[%s384 + $0x18] sm:$0xff]
        %v4555 = vld [vmem:[%s384 + $0x20] sm:$0xff]
        %v4556 = vld [vmem:[%s384 + $0x28] sm:$0xff]
        %v4557 = vld [vmem:[%s384 + $0x30] sm:$0xff]
        %v4558 = vld [vmem:[%s384 + $0x38] sm:$0xff]
        %v4559 = vld [vmem:[%s384 + $0x40] sm:$0xff]
        %v4560 = vld [vmem:[%s384 + $0x48] sm:$0xff]
        %v4561 = vld [vmem:[%s384 + $0x50] sm:$0xff]
        %v4562 = vld [vmem:[%s384 + $0x58] sm:$0xff]
        %v4563 = vld [vmem:[%s384 + $0x60] sm:$0xff]
        %v4564 = vld [vmem:[%s384 + $0x68] sm:$0xff]
        %v4565 = vld [vmem:[%s384 + $0x70] sm:$0xff]
        %v4566 = vld [vmem:[%s384 + $0x78] sm:$0xff]
        %v4567 = vld [vmem:[%s384 + $0x80] sm:$0xff]
        %v4568 = vld [vmem:[%s384 + $0x88] sm:$0xff]
        %v4569 = vld [vmem:[%s384 + $0x90] sm:$0xff]
        %v4570 = vld [vmem:[%s384 + $0x98] sm:$0xff]
        %v4571 = vld [vmem:[%s384 + $0xa0] sm:$0xff]
        %v4572 = vld [vmem:[%s384 + $0xa8] sm:$0xff]
        %v4573 = vld [vmem:[%s384 + $0xb0] sm:$0xff]
        %v4574 = vld [vmem:[%s384 + $0xb8] sm:$0xff]
        %v4575 = vld [vmem:[%s384 + $0xc0] sm:$0xff]
        %v4576 = vld [vmem:[%s384 + $0xc8] sm:$0xff]
        %v4577 = vld [vmem:[%s384 + $0xd0] sm:$0xff]
        %v4578 = vld [vmem:[%s384 + $0xd8] sm:$0xff]
        %v4579 = vld [vmem:[%s384 + $0xe0] sm:$0xff]
        %v4580 = vld [vmem:[%s384 + $0xe8] sm:$0xff]
        %v4581 = vld [vmem:[%s384 + $0xf0] sm:$0xff]
        %v4582 = vld [vmem:[%s384 + $0xf8] sm:$0xff]
        %v4583 = vpack.c.bf16 %v4552, %v4551
        %v4584 = vpack.c.bf16 %v4554, %v4553
        %v4585 = vpack.c.bf16 %v4556, %v4555
        %v4586 = vpack.c.bf16 %v4558, %v4557
        %v4587 = vpack.c.bf16 %v4560, %v4559
        %v4588 = vpack.c.bf16 %v4562, %v4561
        %v4589 = vpack.c.bf16 %v4564, %v4563
        %v4590 = vpack.c.bf16 %v4566, %v4565
        %v4591 = vpack.c.bf16 %v4568, %v4567
        %v4592 = vpack.c.bf16 %v4570, %v4569
        %v4593 = vpack.c.bf16 %v4572, %v4571
        %v4594 = vpack.c.bf16 %v4574, %v4573
        %v4595 = vpack.c.bf16 %v4576, %v4575
        %v4596 = vpack.c.bf16 %v4578, %v4577
        %v4597 = vpack.c.bf16 %v4580, %v4579
        %v4598 = vpack.c.bf16 %v4582, %v4581
        %v4599 = vld [vmem:[%s7] sm:$0x3]
        %v4600 = vld [vmem:[%s8] sm:$0x1]
        %v4602 = vlaneseq
        %v4603 = vshrl.u32 %v4602, 7
        %v4604 = vsub.s32 0, %v4603
        %v4605 = vrot.slane %v4600, %v4604
        %v4608 = vsel %vm475, %v4583, 0
        %v4611 = vsel %vm475, %v4584, 0
        %v4614 = vsel %vm475, %v4585, 0
        %v4617 = vsel %vm475, %v4586, 0
        %v4620 = vsel %vm475, %v4587, 0
        %v4623 = vsel %vm475, %v4588, 0
        %v4626 = vsel %vm475, %v4589, 0
        %v4629 = vsel %vm475, %v4590, 0
        %v4632 = vsel %vm475, %v4591, 0
        %v4635 = vsel %vm475, %v4592, 0
        %v4638 = vsel %vm475, %v4593, 0
        %v4641 = vsel %vm475, %v4594, 0
        %v4644 = vsel %vm475, %v4595, 0
        %v4647 = vsel %vm475, %v4596, 0
        %v4650 = vsel %vm475, %v4597, 0
        %v4653 = vsel %vm475, %v4598, 0
        %v4656 = vsel %vm2168, %v4599, 0
        %4658 = vmatprep.subr.bf16.mxu0 0
        %4659 = vmatpush1.bf16.msra.mxu0 0
        %4660 = vmatprep.subr.bf16.mxu0 0
        %4661 = vmatpush1.bf16.msra.mxu0 0
        %4662 = vmatprep.subr.bf16.mxu0 0
        %4663 = vmatpush1.bf16.msra.mxu0 0
        %4664 = vmatprep.subr.bf16.mxu0 0
        %4665 = vmatpush1.bf16.msra.mxu0 0
        %4666 = vmatprep.subr.bf16.mxu0 0
        %4667 = vmatpush1.bf16.msra.mxu0 0
        %4668 = vmatprep.subr.bf16.mxu0 0
        %4669 = vmatpush1.bf16.msra.mxu0 0
        %4670 = vmatprep.subr.bf16.mxu0 0
        %4671 = vmatpush1.bf16.msra.mxu0 0
        %4672 = vmatprep.subr.bf16.mxu0 0
        %4673 = vmatpush1.bf16.msra.mxu0 %v4656
        %4674 = vmatprep.subr.bf16.mxu0 0
        %4675 = vmatpush2.bf16.msra.mxu0 0
        %4676 = vmatprep.subr.bf16.mxu0 0
        %4677 = vmatpush2.bf16.msra.mxu0 0
        %4678 = vmatprep.subr.bf16.mxu0 0
        %4679 = vmatpush2.bf16.msra.mxu0 0
        %4680 = vmatprep.subr.bf16.mxu0 0
        %4681 = vmatpush2.bf16.msra.mxu0 0
        %4682 = vmatprep.subr.bf16.mxu0 0
        %4683 = vmatpush2.bf16.msra.mxu0 0
        %4684 = vmatprep.subr.bf16.mxu0 0
        %4685 = vmatpush2.bf16.msra.mxu0 0
        %4686 = vmatprep.subr.bf16.mxu0 0
        %4687 = vmatpush2.bf16.msra.mxu0 0
        %4688 = vmatprep.subr.bf16.mxu0 0
        %4689 = vmatpush2.bf16.msra.mxu0 0
        %4690 = vmatprep.mubr.bf16.mxu0 0
        %4691 = vmatmul.mubr.bf16.gmra.mxu0 %v4608
        %v4692 = vpop.f32.mrf.mxu0
        %v4693 = vadd.f32 %v4605, %v4692
        %v4694 = vpop.f32.mrf.mxu0
        %v4695 = vpop.f32.mrf.mxu0
        %v4696 = vadd.f32 %v4605, %v4695
        %v4697 = vpop.f32.mrf.mxu0
        %4698 = vmatprep.mubr.bf16.mxu0 0
        %4699 = vmatmul.mubr.bf16.gmra.mxu0 %v4611
        %v4700 = vpop.f32.mrf.mxu0
        %v4701 = vadd.f32 %v4605, %v4700
        %v4702 = vpop.f32.mrf.mxu0
        %v4703 = vpop.f32.mrf.mxu0
        %v4704 = vadd.f32 %v4605, %v4703
        %v4705 = vpop.f32.mrf.mxu0
        %4706 = vmatprep.mubr.bf16.mxu0 0
        %4707 = vmatmul.mubr.bf16.gmra.mxu0 %v4614
        %v4708 = vpop.f32.mrf.mxu0
        %v4709 = vadd.f32 %v4605, %v4708
        %v4710 = vpop.f32.mrf.mxu0
        %v4711 = vpop.f32.mrf.mxu0
        %v4712 = vadd.f32 %v4605, %v4711
        %v4713 = vpop.f32.mrf.mxu0
        %4714 = vmatprep.mubr.bf16.mxu0 0
        %4715 = vmatmul.mubr.bf16.gmra.mxu0 %v4617
        %v4716 = vpop.f32.mrf.mxu0
        %v4717 = vadd.f32 %v4605, %v4716
        %v4718 = vpop.f32.mrf.mxu0
        %v4719 = vpop.f32.mrf.mxu0
        %v4720 = vadd.f32 %v4605, %v4719
        %v4721 = vpop.f32.mrf.mxu0
        %4722 = vmatprep.mubr.bf16.mxu0 0
        %4723 = vmatmul.mubr.bf16.gmra.mxu0 %v4620
        %v4724 = vpop.f32.mrf.mxu0
        %v4725 = vadd.f32 %v4605, %v4724
        %v4726 = vpop.f32.mrf.mxu0
        %v4727 = vpop.f32.mrf.mxu0
        %v4728 = vadd.f32 %v4605, %v4727
        %v4729 = vpop.f32.mrf.mxu0
        %4730 = vmatprep.mubr.bf16.mxu0 0
        %4731 = vmatmul.mubr.bf16.gmra.mxu0 %v4623
        %v4732 = vpop.f32.mrf.mxu0
        %v4733 = vadd.f32 %v4605, %v4732
        %v4734 = vpop.f32.mrf.mxu0
        %v4735 = vpop.f32.mrf.mxu0
        %v4736 = vadd.f32 %v4605, %v4735
        %v4737 = vpop.f32.mrf.mxu0
        %4738 = vmatprep.mubr.bf16.mxu0 0
        %4739 = vmatmul.mubr.bf16.gmra.mxu0 %v4626
        %v4740 = vpop.f32.mrf.mxu0
        %v4741 = vadd.f32 %v4605, %v4740
        %v4742 = vpop.f32.mrf.mxu0
        %v4743 = vpop.f32.mrf.mxu0
        %v4744 = vadd.f32 %v4605, %v4743
        %v4745 = vpop.f32.mrf.mxu0
        %4746 = vmatprep.mubr.bf16.mxu0 0
        %4747 = vmatmul.mubr.bf16.gmra.mxu0 %v4629
        %v4748 = vpop.f32.mrf.mxu0
        %v4749 = vadd.f32 %v4605, %v4748
        %v4750 = vpop.f32.mrf.mxu0
        %v4751 = vpop.f32.mrf.mxu0
        %v4752 = vadd.f32 %v4605, %v4751
        %v4753 = vpop.f32.mrf.mxu0
        %4754 = vmatprep.mubr.bf16.mxu0 0
        %4755 = vmatmul.mubr.bf16.gmra.mxu0 %v4632
        %v4756 = vpop.f32.mrf.mxu0
        %v4757 = vadd.f32 %v4605, %v4756
        %v4758 = vpop.f32.mrf.mxu0
        %v4759 = vpop.f32.mrf.mxu0
        %v4760 = vadd.f32 %v4605, %v4759
        %v4761 = vpop.f32.mrf.mxu0
        %4762 = vmatprep.mubr.bf16.mxu0 0
        %4763 = vmatmul.mubr.bf16.gmra.mxu0 %v4635
        %v4764 = vpop.f32.mrf.mxu0
        %v4765 = vadd.f32 %v4605, %v4764
        %v4766 = vpop.f32.mrf.mxu0
        %v4767 = vpop.f32.mrf.mxu0
        %v4768 = vadd.f32 %v4605, %v4767
        %v4769 = vpop.f32.mrf.mxu0
        %4770 = vmatprep.mubr.bf16.mxu0 0
        %4771 = vmatmul.mubr.bf16.gmra.mxu0 %v4638
        %v4772 = vpop.f32.mrf.mxu0
        %v4773 = vadd.f32 %v4605, %v4772
        %v4774 = vpop.f32.mrf.mxu0
        %v4775 = vpop.f32.mrf.mxu0
        %v4776 = vadd.f32 %v4605, %v4775
        %v4777 = vpop.f32.mrf.mxu0
        %4778 = vmatprep.mubr.bf16.mxu0 0
        %4779 = vmatmul.mubr.bf16.gmra.mxu0 %v4641
        %v4780 = vpop.f32.mrf.mxu0
        %v4781 = vadd.f32 %v4605, %v4780
        %v4782 = vpop.f32.mrf.mxu0
        %v4783 = vpop.f32.mrf.mxu0
        %v4784 = vadd.f32 %v4605, %v4783
        %v4785 = vpop.f32.mrf.mxu0
        %4786 = vmatprep.mubr.bf16.mxu0 0
        %4787 = vmatmul.mubr.bf16.gmra.mxu0 %v4644
        %v4788 = vpop.f32.mrf.mxu0
        %v4789 = vadd.f32 %v4605, %v4788
        %v4790 = vpop.f32.mrf.mxu0
        %v4791 = vpop.f32.mrf.mxu0
        %v4792 = vadd.f32 %v4605, %v4791
        %v4793 = vpop.f32.mrf.mxu0
        %4794 = vmatprep.mubr.bf16.mxu0 0
        %4795 = vmatmul.mubr.bf16.gmra.mxu0 %v4647
        %v4796 = vpop.f32.mrf.mxu0
        %v4797 = vadd.f32 %v4605, %v4796
        %v4798 = vpop.f32.mrf.mxu0
        %v4799 = vpop.f32.mrf.mxu0
        %v4800 = vadd.f32 %v4605, %v4799
        %v4801 = vpop.f32.mrf.mxu0
        %4802 = vmatprep.mubr.bf16.mxu0 0
        %4803 = vmatmul.mubr.bf16.gmra.mxu0 %v4650
        %v4804 = vpop.f32.mrf.mxu0
        %v4805 = vadd.f32 %v4605, %v4804
        %v4806 = vpop.f32.mrf.mxu0
        %v4807 = vpop.f32.mrf.mxu0
        %v4808 = vadd.f32 %v4605, %v4807
        %v4809 = vpop.f32.mrf.mxu0
        %4810 = vmatprep.mubr.bf16.mxu0 0
        %4811 = vmatmul.mubr.bf16.gmra.mxu0 %v4653
        %v4812 = vpop.f32.mrf.mxu0
        %v4813 = vadd.f32 %v4605, %v4812
        %v4814 = vpop.f32.mrf.mxu0
        %v4815 = vpop.f32.mrf.mxu0
        %v4816 = vadd.f32 %v4605, %v4815
        %v4817 = vpop.f32.mrf.mxu0
        %4818 = vdwg.mxu0
        %v4819 = vadd.f32 %v4693, %v4519
        %v4820 = vadd.f32 %v4696, %v4520
        %v4821 = vadd.f32 %v4701, %v4521
        %v4822 = vadd.f32 %v4704, %v4522
        %v4823 = vadd.f32 %v4709, %v4523
        %v4824 = vadd.f32 %v4712, %v4524
        %v4825 = vadd.f32 %v4717, %v4525
        %v4826 = vadd.f32 %v4720, %v4526
        %v4827 = vadd.f32 %v4725, %v4527
        %v4828 = vadd.f32 %v4728, %v4528
        %v4829 = vadd.f32 %v4733, %v4529
        %v4830 = vadd.f32 %v4736, %v4530
        %v4831 = vadd.f32 %v4741, %v4531
        %v4832 = vadd.f32 %v4744, %v4532
        %v4833 = vadd.f32 %v4749, %v4533
        %v4834 = vadd.f32 %v4752, %v4534
        %v4835 = vadd.f32 %v4757, %v4535
        %v4836 = vadd.f32 %v4760, %v4536
        %v4837 = vadd.f32 %v4765, %v4537
        %v4838 = vadd.f32 %v4768, %v4538
        %v4839 = vadd.f32 %v4773, %v4539
        %v4840 = vadd.f32 %v4776, %v4540
        %v4841 = vadd.f32 %v4781, %v4541
        %v4842 = vadd.f32 %v4784, %v4542
        %v4843 = vadd.f32 %v4789, %v4543
        %v4844 = vadd.f32 %v4792, %v4544
        %v4845 = vadd.f32 %v4797, %v4545
        %v4846 = vadd.f32 %v4800, %v4546
        %v4847 = vadd.f32 %v4805, %v4547
        %v4848 = vadd.f32 %v4808, %v4548
        %v4849 = vadd.f32 %v4813, %v4549
        %v4850 = vadd.f32 %v4816, %v4550
        %v4851 = vpack.c.bf16 %v4820, %v4819
        %v4852 = vpack.c.bf16 %v4822, %v4821
        %v4853 = vpack.c.bf16 %v4824, %v4823
        %v4854 = vpack.c.bf16 %v4826, %v4825
        %v4855 = vpack.c.bf16 %v4828, %v4827
        %v4856 = vpack.c.bf16 %v4830, %v4829
        %v4857 = vpack.c.bf16 %v4832, %v4831
        %v4858 = vpack.c.bf16 %v4834, %v4833
        %v4859 = vpack.c.bf16 %v4836, %v4835
        %v4860 = vpack.c.bf16 %v4838, %v4837
        %v4861 = vpack.c.bf16 %v4840, %v4839
        %v4862 = vpack.c.bf16 %v4842, %v4841
        %v4863 = vpack.c.bf16 %v4844, %v4843
        %v4864 = vpack.c.bf16 %v4846, %v4845
        %v4865 = vpack.c.bf16 %v4848, %v4847
        %v4866 = vpack.c.bf16 %v4850, %v4849
        %v4867 = vld [vmem:[%s9] sm:$0xf]
        %v4868 = vld [vmem:[%s10] sm:$0x1]
        %v4870 = vlaneseq
        %v4871 = vshrl.u32 %v4870, 7
        %v4872 = vsub.s32 0, %v4871
        %v4873 = vrot.slane %v4868, %v4872
        %v4876 = vsel %vm386, %v4851, 0
        %v4879 = vsel %vm386, %v4852, 0
        %v4882 = vsel %vm386, %v4853, 0
        %v4885 = vsel %vm386, %v4854, 0
        %v4888 = vsel %vm386, %v4855, 0
        %v4891 = vsel %vm386, %v4856, 0
        %v4894 = vsel %vm386, %v4857, 0
        %v4897 = vsel %vm386, %v4858, 0
        %v4900 = vsel %vm386, %v4859, 0
        %v4903 = vsel %vm386, %v4860, 0
        %v4906 = vsel %vm386, %v4861, 0
        %v4909 = vsel %vm386, %v4862, 0
        %v4912 = vsel %vm386, %v4863, 0
        %v4915 = vsel %vm386, %v4864, 0
        %v4918 = vsel %vm386, %v4865, 0
        %v4921 = vsel %vm386, %v4866, 0
        %v4924 = vsel %vm4212, %v4867, 0
        %4926 = vmatprep.subr.bf16.mxu0 0
        %4927 = vmatpush1.bf16.msra.mxu0 0
        %4928 = vmatprep.subr.bf16.mxu0 0
        %4929 = vmatpush1.bf16.msra.mxu0 0
        %4930 = vmatprep.subr.bf16.mxu0 0
        %4931 = vmatpush1.bf16.msra.mxu0 0
        %4932 = vmatprep.subr.bf16.mxu0 0
        %4933 = vmatpush1.bf16.msra.mxu0 0
        %4934 = vmatprep.subr.bf16.mxu0 0
        %4935 = vmatpush1.bf16.msra.mxu0 0
        %4936 = vmatprep.subr.bf16.mxu0 0
        %4937 = vmatpush1.bf16.msra.mxu0 0
        %4938 = vmatprep.subr.bf16.mxu0 0
        %4939 = vmatpush1.bf16.msra.mxu0 0
        %4940 = vmatprep.subr.bf16.mxu0 0
        %4941 = vmatpush1.bf16.msra.mxu0 %v4924
        %4942 = vmatprep.subr.bf16.mxu0 0
        %4943 = vmatpush2.bf16.msra.mxu0 0
        %4944 = vmatprep.subr.bf16.mxu0 0
        %4945 = vmatpush2.bf16.msra.mxu0 0
        %4946 = vmatprep.subr.bf16.mxu0 0
        %4947 = vmatpush2.bf16.msra.mxu0 0
        %4948 = vmatprep.subr.bf16.mxu0 0
        %4949 = vmatpush2.bf16.msra.mxu0 0
        %4950 = vmatprep.subr.bf16.mxu0 0
        %4951 = vmatpush2.bf16.msra.mxu0 0
        %4952 = vmatprep.subr.bf16.mxu0 0
        %4953 = vmatpush2.bf16.msra.mxu0 0
        %4954 = vmatprep.subr.bf16.mxu0 0
        %4955 = vmatpush2.bf16.msra.mxu0 0
        %4956 = vmatprep.subr.bf16.mxu0 0
        %4957 = vmatpush2.bf16.msra.mxu0 0
        %4958 = vmatprep.mubr.bf16.mxu0 0
        %4959 = vmatmul.mubr.bf16.gmra.mxu0 %v4876
        %v4960 = vpop.f32.mrf.mxu0
        %v4961 = vadd.f32 %v4873, %v4960
        %v4962 = vpop.f32.mrf.mxu0
        %v4963 = vpop.f32.mrf.mxu0
        %v4964 = vadd.f32 %v4873, %v4963
        %v4965 = vpop.f32.mrf.mxu0
        %4966 = vmatprep.mubr.bf16.mxu0 0
        %4967 = vmatmul.mubr.bf16.gmra.mxu0 %v4879
        %v4968 = vpop.f32.mrf.mxu0
        %v4969 = vadd.f32 %v4873, %v4968
        %v4970 = vpop.f32.mrf.mxu0
        %v4971 = vpop.f32.mrf.mxu0
        %v4972 = vadd.f32 %v4873, %v4971
        %v4973 = vpop.f32.mrf.mxu0
        %4974 = vmatprep.mubr.bf16.mxu0 0
        %4975 = vmatmul.mubr.bf16.gmra.mxu0 %v4882
        %v4976 = vpop.f32.mrf.mxu0
        %v4977 = vadd.f32 %v4873, %v4976
        %v4978 = vpop.f32.mrf.mxu0
        %v4979 = vpop.f32.mrf.mxu0
        %v4980 = vadd.f32 %v4873, %v4979
        %v4981 = vpop.f32.mrf.mxu0
        %4982 = vmatprep.mubr.bf16.mxu0 0
        %4983 = vmatmul.mubr.bf16.gmra.mxu0 %v4885
        %v4984 = vpop.f32.mrf.mxu0
        %v4985 = vadd.f32 %v4873, %v4984
        %v4986 = vpop.f32.mrf.mxu0
        %v4987 = vpop.f32.mrf.mxu0
        %v4988 = vadd.f32 %v4873, %v4987
        %v4989 = vpop.f32.mrf.mxu0
        %4990 = vmatprep.mubr.bf16.mxu0 0
        %4991 = vmatmul.mubr.bf16.gmra.mxu0 %v4888
        %v4992 = vpop.f32.mrf.mxu0
        %v4993 = vadd.f32 %v4873, %v4992
        %v4994 = vpop.f32.mrf.mxu0
        %v4995 = vpop.f32.mrf.mxu0
        %v4996 = vadd.f32 %v4873, %v4995
        %v4997 = vpop.f32.mrf.mxu0
        %4998 = vmatprep.mubr.bf16.mxu0 0
        %4999 = vmatmul.mubr.bf16.gmra.mxu0 %v4891
        %v5000 = vpop.f32.mrf.mxu0
        %v5001 = vadd.f32 %v4873, %v5000
        %v5002 = vpop.f32.mrf.mxu0
        %v5003 = vpop.f32.mrf.mxu0
        %v5004 = vadd.f32 %v4873, %v5003
        %v5005 = vpop.f32.mrf.mxu0
        %5006 = vmatprep.mubr.bf16.mxu0 0
        %5007 = vmatmul.mubr.bf16.gmra.mxu0 %v4894
        %v5008 = vpop.f32.mrf.mxu0
        %v5009 = vadd.f32 %v4873, %v5008
        %v5010 = vpop.f32.mrf.mxu0
        %v5011 = vpop.f32.mrf.mxu0
        %v5012 = vadd.f32 %v4873, %v5011
        %v5013 = vpop.f32.mrf.mxu0
        %5014 = vmatprep.mubr.bf16.mxu0 0
        %5015 = vmatmul.mubr.bf16.gmra.mxu0 %v4897
        %v5016 = vpop.f32.mrf.mxu0
        %v5017 = vadd.f32 %v4873, %v5016
        %v5018 = vpop.f32.mrf.mxu0
        %v5019 = vpop.f32.mrf.mxu0
        %v5020 = vadd.f32 %v4873, %v5019
        %v5021 = vpop.f32.mrf.mxu0
        %5022 = vmatprep.mubr.bf16.mxu0 0
        %5023 = vmatmul.mubr.bf16.gmra.mxu0 %v4900
        %v5024 = vpop.f32.mrf.mxu0
        %v5025 = vadd.f32 %v4873, %v5024
        %v5026 = vpop.f32.mrf.mxu0
        %v5027 = vpop.f32.mrf.mxu0
        %v5028 = vadd.f32 %v4873, %v5027
        %v5029 = vpop.f32.mrf.mxu0
        %5030 = vmatprep.mubr.bf16.mxu0 0
        %5031 = vmatmul.mubr.bf16.gmra.mxu0 %v4903
        %v5032 = vpop.f32.mrf.mxu0
        %v5033 = vadd.f32 %v4873, %v5032
        %v5034 = vpop.f32.mrf.mxu0
        %v5035 = vpop.f32.mrf.mxu0
        %v5036 = vadd.f32 %v4873, %v5035
        %v5037 = vpop.f32.mrf.mxu0
        %5038 = vmatprep.mubr.bf16.mxu0 0
        %5039 = vmatmul.mubr.bf16.gmra.mxu0 %v4906
        %v5040 = vpop.f32.mrf.mxu0
        %v5041 = vadd.f32 %v4873, %v5040
        %v5042 = vpop.f32.mrf.mxu0
        %v5043 = vpop.f32.mrf.mxu0
        %v5044 = vadd.f32 %v4873, %v5043
        %v5045 = vpop.f32.mrf.mxu0
        %5046 = vmatprep.mubr.bf16.mxu0 0
        %5047 = vmatmul.mubr.bf16.gmra.mxu0 %v4909
        %v5048 = vpop.f32.mrf.mxu0
        %v5049 = vadd.f32 %v4873, %v5048
        %v5050 = vpop.f32.mrf.mxu0
        %v5051 = vpop.f32.mrf.mxu0
        %v5052 = vadd.f32 %v4873, %v5051
        %v5053 = vpop.f32.mrf.mxu0
        %5054 = vmatprep.mubr.bf16.mxu0 0
        %5055 = vmatmul.mubr.bf16.gmra.mxu0 %v4912
        %v5056 = vpop.f32.mrf.mxu0
        %v5057 = vadd.f32 %v4873, %v5056
        %v5058 = vpop.f32.mrf.mxu0
        %v5059 = vpop.f32.mrf.mxu0
        %v5060 = vadd.f32 %v4873, %v5059
        %v5061 = vpop.f32.mrf.mxu0
        %5062 = vmatprep.mubr.bf16.mxu0 0
        %5063 = vmatmul.mubr.bf16.gmra.mxu0 %v4915
        %v5064 = vpop.f32.mrf.mxu0
        %v5065 = vadd.f32 %v4873, %v5064
        %v5066 = vpop.f32.mrf.mxu0
        %v5067 = vpop.f32.mrf.mxu0
        %v5068 = vadd.f32 %v4873, %v5067
        %v5069 = vpop.f32.mrf.mxu0
        %5070 = vmatprep.mubr.bf16.mxu0 0
        %5071 = vmatmul.mubr.bf16.gmra.mxu0 %v4918
        %v5072 = vpop.f32.mrf.mxu0
        %v5073 = vadd.f32 %v4873, %v5072
        %v5074 = vpop.f32.mrf.mxu0
        %v5075 = vpop.f32.mrf.mxu0
        %v5076 = vadd.f32 %v4873, %v5075
        %v5077 = vpop.f32.mrf.mxu0
        %5078 = vmatprep.mubr.bf16.mxu0 0
        %5079 = vmatmul.mubr.bf16.gmra.mxu0 %v4921
        %v5080 = vpop.f32.mrf.mxu0
        %v5081 = vadd.f32 %v4873, %v5080
        %v5082 = vpop.f32.mrf.mxu0
        %v5083 = vpop.f32.mrf.mxu0
        %v5084 = vadd.f32 %v4873, %v5083
        %v5085 = vpop.f32.mrf.mxu0
        %5086 = vdwg.mxu0
        %5087 = vst.msk [vmem:[%s379] sm:$0xff] %vm2055, %v4961
        %5088 = vst.msk [vmem:[%s379 + $0x8] sm:$0xff] %vm2055, %v4964
        %5089 = vst.msk [vmem:[%s379 + $0x10] sm:$0xff] %vm2055, %v4969
        %5090 = vst.msk [vmem:[%s379 + $0x18] sm:$0xff] %vm2055, %v4972
        %5091 = vst.msk [vmem:[%s379 + $0x20] sm:$0xff] %vm2055, %v4977
        %5092 = vst.msk [vmem:[%s379 + $0x28] sm:$0xff] %vm2055, %v4980
        %5093 = vst.msk [vmem:[%s379 + $0x30] sm:$0xff] %vm2055, %v4985
        %5094 = vst.msk [vmem:[%s379 + $0x38] sm:$0xff] %vm2055, %v4988
        %5095 = vst.msk [vmem:[%s379 + $0x40] sm:$0xff] %vm2055, %v4993
        %5096 = vst.msk [vmem:[%s379 + $0x48] sm:$0xff] %vm2055, %v4996
        %5097 = vst.msk [vmem:[%s379 + $0x50] sm:$0xff] %vm2055, %v5001
        %5098 = vst.msk [vmem:[%s379 + $0x58] sm:$0xff] %vm2055, %v5004
        %5099 = vst.msk [vmem:[%s379 + $0x60] sm:$0xff] %vm2055, %v5009
        %5100 = vst.msk [vmem:[%s379 + $0x68] sm:$0xff] %vm2055, %v5012
        %5101 = vst.msk [vmem:[%s379 + $0x70] sm:$0xff] %vm2055, %v5017
        %5102 = vst.msk [vmem:[%s379 + $0x78] sm:$0xff] %vm2055, %v5020
        %5103 = vst.msk [vmem:[%s379 + $0x80] sm:$0xff] %vm2055, %v5025
        %5104 = vst.msk [vmem:[%s379 + $0x88] sm:$0xff] %vm2055, %v5028
        %5105 = vst.msk [vmem:[%s379 + $0x90] sm:$0xff] %vm2055, %v5033
        %5106 = vst.msk [vmem:[%s379 + $0x98] sm:$0xff] %vm2055, %v5036
        %5107 = vst.msk [vmem:[%s379 + $0xa0] sm:$0xff] %vm2055, %v5041
        %5108 = vst.msk [vmem:[%s379 + $0xa8] sm:$0xff] %vm2055, %v5044
        %5109 = vst.msk [vmem:[%s379 + $0xb0] sm:$0xff] %vm2055, %v5049
        %5110 = vst.msk [vmem:[%s379 + $0xb8] sm:$0xff] %vm2055, %v5052
        %5111 = vst.msk [vmem:[%s379 + $0xc0] sm:$0xff] %vm2055, %v5057
        %5112 = vst.msk [vmem:[%s379 + $0xc8] sm:$0xff] %vm2055, %v5060
        %5113 = vst.msk [vmem:[%s379 + $0xd0] sm:$0xff] %vm2055, %v5065
        %5114 = vst.msk [vmem:[%s379 + $0xd8] sm:$0xff] %vm2055, %v5068
        %5115 = vst.msk [vmem:[%s379 + $0xe0] sm:$0xff] %vm2055, %v5073
        %5116 = vst.msk [vmem:[%s379 + $0xe8] sm:$0xff] %vm2055, %v5076
        %5117 = vst.msk [vmem:[%s379 + $0xf0] sm:$0xff] %vm2055, %v5081
        %5118 = vst.msk [vmem:[%s379 + $0xf8] sm:$0xff] %vm2055, %v5084
        %s5119 = sand.u32 %s269, 1
        %s5120 = scalar_lea.sflag [#allocation4], %s5119
        %s5121 = sand.u32 %s269, 1
        %s5122 = smul.addr %s5121, 256
        %s5123 = scalar_lea.vmem [#allocation3], %s5122
        // Predicated region
        $region65: #{tpu_custom_call.1} parent=63 // pred_check
          %p5124 = pneg %p279
        $region66: #{tpu_custom_call.1} parent=63 // pred_check_branch
          %5126 = sbr.rel (%p5124) target = $region68
        $region67: #{tpu_custom_call.1} parent=63 // pred_region
          %s5128 = ssub.s32 4096, 4096
          %5129 = vsyncadd %s5120, %s5128
          %s5130 = smul.addr %s25, 32
          %s5131 = smul.addr %s5130, 128
          %s5132 = scalar_lea.hbm %s11, %s5131
          %s5133 = sshll.u32 %s5123, 4
          %s5134 = int_to_ptr.vmem [resolvable:$true] %s5133
          %5139 = dma.vmem_to_hbm [thread:$0]  %s5134, 4096, %s5132, %s5120, 128, 128, 8
        $region68: #{tpu_custom_call.1} parent=63 // pred_fallthru
          _
      $region64: #{tpu_custom_call.1} parent=5 // pred_fallthru
        _
      %p5140 = scmp.le.s32.totalorder 2, %s20
      // Predicated region
      $region69: #{tpu_custom_call.1} parent=5 // pred_check
        %p5141 = pneg %p5140
      $region70: #{tpu_custom_call.1} parent=5 // pred_check_branch
        %5143 = sbr.rel (%p5141) target = $region72
      $region71: #{tpu_custom_call.1} parent=5 // pred_region
        %s5144 = ssub.s32 %s20, 2
        // Predicated region
        $region73: #{tpu_custom_call.1} parent=71 // pred_check
          %p5145 = pneg %p285
        $region74: #{tpu_custom_call.1} parent=71 // pred_check_branch
          %5147 = sbr.rel (%p5145) target = $region76
        $region75: #{tpu_custom_call.1} parent=71 // pred_region
          %s5148 = sand.u32 %s270, 1
          %s5149 = scalar_lea.sflag [#allocation4], %s5148
          %s5150 = sand.u32 %s270, 1
          %s5151 = smul.addr %s5150, 256
          %s5152 = scalar_lea.vmem [#allocation3], %s5151
          %5153 = dma.done %s5149, 4096
        $region76: #{tpu_custom_call.1} parent=71 // pred_fallthru
          _
      $region72: #{tpu_custom_call.1} parent=5 // pred_fallthru
        _
    $region6: #{tpu_custom_call.1} parent=1 // loop_footer
      %s24 = sadd.s32 1, %s20
    $region7: #{tpu_custom_call.1} parent=1 // loop_footer_branch
      %19 = sbr.rel target = $region3
    $region8: #{tpu_custom_call.1} parent=1 // loop_exit
      _
    %5154 = vsyncpa [#allocation4], 1
    %s5155 = scalar_lea.sflag [#allocation4], 1
    %5156 = vsyncpa %s5155, 1

</llo_original>
